<compile_context>
chip_gen: v7x
topology: tpu7x:2x2x1
jax: 0.10.0
libtpu: 0.0.40
codegen_flags: <defaults>
</compile_context>

<pallas_src>
import functools
import math

import jax
import jax.numpy as jnp
from jax.experimental import pallas as pl
from jax.experimental.pallas import tpu as pltpu


# ------------------------------ Fused kernel --------------------------------

def _fused_kernel(*refs, num_heads, bb, use_text, return_attn, ti_pad):
    if return_attn:
        *rest, out_ref, attn_ref = refs
    else:
        *rest, out_ref = refs
        attn_ref = None
    (tmask_ref, exp_ref, img_ref, txt_ref,
     it_wqkv, it_bqkv, it_wo, it_bo,
     cr_wqkv, cr_bqkv, cr_wo, cr_bo,
     sa_wqkv, sa_bqkv, sa_wo, sa_bo,
     w1_ref, b1_ref, w2_ref, b2_ref, lngb_ref) = rest

    E = exp_ref.shape[-1]
    H = num_heads
    D = E // H
    Te = exp_ref.shape[1]
    Ti = img_ref.shape[1]
    Tt = txt_ref.shape[1]
    scale = 1.0 / math.sqrt(D)
    b0 = pl.program_id(0) * bb                      # first sample of this block
    lngb = lngb_ref[...].astype(jnp.float32)        # (8, E)

    # ---------------------------- helpers -----------------------------------
    def layer_norm(x2, row):                        # x2: (bb*T, E) f32
        g = lngb[row:row + 1, :]
        b = lngb[row + 1:row + 2, :]
        mu = jnp.mean(x2, axis=-1, keepdims=True)
        var = jnp.mean((x2 - mu) ** 2, axis=-1, keepdims=True)
        return (x2 - mu) * jax.lax.rsqrt(var + 1e-5) * g + b

    def mm(x_f32, w_bf16):                          # bf16 MXU, f32 accumulate
        return jnp.dot(x_f32.astype(jnp.bfloat16), w_bf16,
                       preferred_element_type=jnp.float32)

    def flat(x3):                                   # (bb, T, E) -> (bb*T, E)
        parts = [x3[b] for b in range(bb)]
        return parts[0] if bb == 1 else jnp.concatenate(parts, axis=0)

    def unflat(x2, t):                              # (bb*t, E) -> (bb, t, E)
        return jnp.stack([x2[b * t:(b + 1) * t, :] for b in range(bb)], axis=0)

    def split_heads(x2, t):                         # (bb*t, E) -> (bb*H, t, D)
        parts = []
        for b in range(bb):
            rows = x2[b * t:(b + 1) * t, :]
            for h in range(H):
                parts.append(rows[:, h * D:(h + 1) * D])
        return jnp.stack(parts, axis=0)

    def merge_heads(o3, t):                         # (bb*H, t, D) -> (bb*t, E)
        rows = [jnp.concatenate([o3[b * H + h] for h in range(H)], axis=-1)
                for b in range(bb)]
        return rows[0] if bb == 1 else jnp.concatenate(rows, axis=0)

    def mha(xq2, xkv2, tq, tk, wqkv_ref, bqkv_ref, wo_ref, bo_ref,
            fused_qkv, need_probs):
        wqkv = wqkv_ref[...]                        # bf16 (E, 3E) (= in_proj.T)
        bqkv = bqkv_ref[...].astype(jnp.float32)    # (1, 3E)
        if fused_qkv:
            # Self-attention: one (bb*T, E)@(E, 3E) matmul gives q, k, v.
            qkv = mm(xq2, wqkv) + bqkv
            q2, k2, v2 = qkv[:, :E], qkv[:, E:2 * E], qkv[:, 2 * E:]
        else:
            q2 = mm(xq2, wqkv[:, :E]) + bqkv[:, :E]
            kv = mm(xkv2, wqkv[:, E:]) + bqkv[:, E:]
            k2, v2 = kv[:, :E], kv[:, E:]

        # One batched dot_general over the (sample, head) leading dim.
        qh = split_heads(q2, tq)                    # (bb*H, tq, D) f32
        kh = split_heads(k2, tk)
        vh = split_heads(v2, tk)
        s = jnp.einsum('bqd,bkd->bqk',
                       qh.astype(jnp.bfloat16), kh.astype(jnp.bfloat16),
                       preferred_element_type=jnp.float32) * scale
        m = jnp.max(s, axis=-1, keepdims=True)
        e = jnp.exp(s - m)
        l = jnp.sum(e, axis=-1, keepdims=True)
        # Exact normalization when the probabilities are returned to the caller
        # (rows sum to 1); approx EUP reciprocal when they are discarded.
        p = e * pl.reciprocal(l, approx=not need_probs)
        o = jnp.einsum('bqk,bkd->bqd',
                       p.astype(jnp.bfloat16), vh.astype(jnp.bfloat16),
                       preferred_element_type=jnp.float32)       # (bb*H, tq, D)
        out = mm(merge_heads(o, tq), wo_ref[...]) + bo_ref[...].astype(jnp.float32)

        p_mean = None
        if need_probs:                              # head-averaged weights
            ps = []
            for b in range(bb):
                acc = p[b * H]
                for h in range(1, H):
                    acc = acc + p[b * H + h]
                ps.append(acc * (1.0 / H))
            p_mean = jnp.stack(ps, axis=0)          # (bb, tq, tk)
        return out, p_mean

    # ---------------------------- forward ------------------------------------
    img2 = flat(img_ref[...].astype(jnp.float32))   # (bb*Ti, E)
    exp2 = flat(exp_ref[...].astype(jnp.float32))   # (bb*Te, E)

    # ---- image <- text cross-attention (+ residual + LN) ----
    if use_text:
        txt3 = txt_ref[...].astype(jnp.float32)     # (bb, Tt, E)
        parts = []
        for b in range(bb):
            mval = tmask_ref[b0 + b].astype(jnp.float32)   # SMEM scalar (0/1)
            parts.append(txt3[b] * mval)
        txt2 = parts[0] if bb == 1 else jnp.concatenate(parts, axis=0)
        att_img2, _ = mha(img2, txt2, Ti, Tt, it_wqkv, it_bqkv, it_wo, it_bo,
                          fused_qkv=False, need_probs=False)
        attended_image2 = layer_norm(att_img2 + img2, 0)
    else:
        attended_image2 = layer_norm(img2, 0)

    # ---- expert <- image cross-attention (+ residual + LN) ----
    att_exp2, attn_probs = mha(exp2, attended_image2, Te, Ti,
                               cr_wqkv, cr_bqkv, cr_wo, cr_bo,
                               fused_qkv=False, need_probs=return_attn)
    attended_expert2 = layer_norm(att_exp2 + exp2, 2)

    # ---- FFN (Linear -> ReLU -> Linear; dropouts identity) + residual + LN ----
    h1 = mm(attended_expert2, w1_ref[...]) + b1_ref[...].astype(jnp.float32)
    h1 = jnp.maximum(h1, 0.0)
    ffn2 = mm(h1, w2_ref[...]) + b2_ref[...].astype(jnp.float32)
    attended_expert2 = layer_norm(ffn2 + attended_expert2, 4)

    # ---- self-attention (+ residual + LN) ----
    refined2, _ = mha(attended_expert2, attended_expert2, Te, Te,
                      sa_wqkv, sa_bqkv, sa_wo, sa_bo,
                      fused_qkv=True, need_probs=False)
    out2 = layer_norm(attended_expert2 + refined2, 6)

    out_ref[...] = unflat(out2, Te).astype(out_ref.dtype)

    if return_attn:
        if ti_pad > Ti:                             # lane-dense writeback
            attn_probs = jnp.concatenate(
                [attn_probs, jnp.zeros((bb, Te, ti_pad - Ti), jnp.float32)],
                axis=-1)
        attn_ref[...] = attn_probs.astype(attn_ref.dtype)


# -------------------------------- Wrapper ------------------------------------

def expert_token_cross_attention(params, expert_tokens, image_patches,
                                 text_embeddings=None, text_drop_key=None,
                                 text_dropout_rate=0.5, num_heads=4,
                                 block_b=None, return_attn=True):
    B, Te, E = expert_tokens.shape
    Ti = image_patches.shape[1]
    assert E % num_heads == 0

    if text_embeddings is not None:
        Tt = text_embeddings.shape[1]
        text = text_embeddings
        mask = (jax.random.uniform(text_drop_key, (B,))
                > text_dropout_rate).astype(jnp.int32)
        use_text = True
    else:
        Tt = 1
        text = jnp.zeros((B, 1, E), expert_tokens.dtype)
        mask = jnp.zeros((B,), jnp.int32)
        use_text = False

    if block_b is None:
        # Keep >= 2 grid points when possible (v7x has 2 TensorCores), while
        # folding as many samples per step as possible into the matmul M dim.
        block_b = B if B < 2 else max(d for d in range(1, B // 2 + 1)
                                      if B % d == 0)
    assert B % block_b == 0
    nb = B // block_b
    ti_pad = ((Ti + 127) // 128) * 128              # lane-dense attn output

    it, cr, sa, fp = (params["img_txt_attn"], params["cross_attn"],
                      params["self_attn"], params["ffn"])
    weight_inputs = [it["wqkv"], it["bqkv"], it["wo"], it["bo"],
                     cr["wqkv"], cr["bqkv"], cr["wo"], cr["bo"],
                     sa["wqkv"], sa["bqkv"], sa["wo"], sa["bo"],
                     fp["w1"], fp["b1"], fp["w2"], fp["b2"],
                     params["ln_gb"]]

    in_specs = ([pl.BlockSpec((block_b, Te, E), lambda g, m: (g, 0, 0)),
                 pl.BlockSpec((block_b, Ti, E), lambda g, m: (g, 0, 0)),
                 pl.BlockSpec((block_b, Tt, E), lambda g, m: (g, 0, 0))]
                + [pl.BlockSpec(w.shape, lambda g, m: (0, 0))
                   for w in weight_inputs])
    out_specs = [pl.BlockSpec((block_b, Te, E), lambda g, m: (g, 0, 0))]
    out_shape = [jax.ShapeDtypeStruct((B, Te, E), expert_tokens.dtype)]
    if return_attn:
        out_specs.append(pl.BlockSpec((block_b, Te, ti_pad),
                                      lambda g, m: (g, 0, 0)))
        out_shape.append(jax.ShapeDtypeStruct((B, Te, ti_pad), jnp.float32))

    # VMEM budget (weights + activations, double-buffered) with headroom.
    weight_bytes = sum(int(w.size) * w.dtype.itemsize for w in weight_inputs)
    act_bytes = block_b * (Te + Ti + Tt) * E * 4
    out_bytes = block_b * Te * (E + (ti_pad if return_attn else 0)) * 4
    est = 2 * (weight_bytes + act_bytes + out_bytes)
    vmem_limit = int(min(max(6 * est, 32 * 1024 * 1024), 64 * 1024 * 1024))

    # Advisory cost estimate so XLA can schedule around the fused call.
    def _mha_flops(tq, tk):
        return 2 * tq * E * E + 2 * tk * E * 2 * E + 4 * tq * tk * E + 2 * tq * E * E
    flops = B * ((_mha_flops(Ti, Tt) if use_text else 0)
                 + _mha_flops(Te, Ti) + _mha_flops(Te, Te)
                 + 4 * Te * E * 4 * E)
    transc = B * num_heads * ((Ti * Tt if use_text else 0) + Te * Ti + Te * Te)
    bytes_acc = (int(expert_tokens.nbytes) + int(image_patches.nbytes)
                 + int(text.nbytes) + weight_bytes * nb
                 + B * Te * E * 4
                 + (B * Te * ti_pad * 4 if return_attn else 0))
    cost = pl.CostEstimate(flops=int(flops), transcendentals=int(transc),
                           bytes_accessed=int(bytes_acc))

    kernel = functools.partial(_fused_kernel, num_heads=num_heads, bb=block_b,
                               use_text=use_text, return_attn=return_attn,
                               ti_pad=ti_pad)
    outs = pl.pallas_call(
        kernel,
        grid_spec=pltpu.PrefetchScalarGridSpec(
            num_scalar_prefetch=1,                 # text-dropout mask -> SMEM
            grid=(nb,),
            in_specs=in_specs,
            out_specs=out_specs),
        out_shape=out_shape,
        compiler_params=pltpu.CompilerParams(
            dimension_semantics=("parallel",),
            vmem_limit_bytes=vmem_limit),
        cost_estimate=cost,
    )(mask, expert_tokens, image_patches, text, *weight_inputs)

    if return_attn:
        out, attn = outs
        return out, attn[:, :, :Ti]                # drop lane padding
    return outs[0], None


# ------------------------------- Param init -----------------------------------

def init_params(key, E):
    """Matmul weights stored pre-transposed (x @ W layout) and in bf16."""
    def mha_params(k):
        k1, k2, k3, k4 = jax.random.split(k, 4)
        return dict(
            wqkv=(0.02 * jax.random.normal(k1, (E, 3 * E))).astype(jnp.bfloat16),
            bqkv=0.01 * jax.random.normal(k3, (1, 3 * E), jnp.float32),
            wo=(0.02 * jax.random.normal(k2, (E, E))).astype(jnp.bfloat16),
            bo=0.01 * jax.random.normal(k4, (1, E), jnp.float32),
        )

    ks = jax.random.split(key, 8)
    gam = 1.0 + 0.05 * jax.random.normal(ks[6], (4, E), jnp.float32)
    bet = 0.05 * jax.random.normal(ks[7], (4, E), jnp.float32)
    # rows: [g_img_txt, b_img_txt, g_cross, b_cross, g_ff, b_ff, g_self, b_self]
    ln_gb = jnp.stack([gam[0], bet[0], gam[1], bet[1],
                       gam[2], bet[2], gam[3], bet[3]], axis=0)
    return dict(
        img_txt_attn=mha_params(ks[0]),
        cross_attn=mha_params(ks[1]),
        self_attn=mha_params(ks[2]),
        ffn=dict(
            w1=(0.02 * jax.random.normal(ks[3], (E, 4 * E))).astype(jnp.bfloat16),
            b1=0.01 * jax.random.normal(ks[5], (1, 4 * E), jnp.float32),
            w2=(0.02 * jax.random.normal(ks[4], (4 * E, E))).astype(jnp.bfloat16),
            b2=0.01 * jax.random.normal(ks[6], (1, E), jnp.float32),
        ),
        ln_gb=ln_gb,
    )


# ------------------------- Pure-JAX reference (check) -------------------------

def _ref_forward(params, expert, image, text, mask, num_heads, use_text):
    def ln(x, row):
        g = params["ln_gb"][row]
        b = params["ln_gb"][row + 1]
        mu = x.mean(-1, keepdims=True)
        var = ((x - mu) ** 2).mean(-1, keepdims=True)
        return (x - mu) * jax.lax.rsqrt(var + 1e-5) * g + b

    def mha(qx, kx, p):
        B, Tq, E = qx.shape
        Tk = kx.shape[1]
        D = E // num_heads
        wqkv = p["wqkv"].astype(jnp.float32)
        wo = p["wo"].astype(jnp.float32)
        q = qx @ wqkv[:, :E] + p["bqkv"][:, :E]
        k = kx @ wqkv[:, E:2 * E] + p["bqkv"][:, E:2 * E]
        v = kx @ wqkv[:, 2 * E:] + p["bqkv"][:, 2 * E:]
        q = q.reshape(B, Tq, num_heads, D).transpose(0, 2, 1, 3)
        k = k.reshape(B, Tk, num_heads, D).transpose(0, 2, 1, 3)
        v = v.reshape(B, Tk, num_heads, D).transpose(0, 2, 1, 3)
        s = jnp.einsum('bhqd,bhkd->bhqk', q, k) / math.sqrt(D)
        pw = jax.nn.softmax(s, axis=-1)
        o = jnp.einsum('bhqk,bhkd->bhqd', pw, v).transpose(0, 2, 1, 3).reshape(B, Tq, E)
        return o @ wo + p["bo"], pw.mean(axis=1)

    if use_text:
        txt = text * mask
        att_img, _ = mha(image, txt, params["img_txt_attn"])
        attended_image = ln(att_img + image, 0)
    else:
        attended_image = ln(image, 0)
    att_exp, attn_w = mha(expert, attended_image, params["cross_attn"])
    attended_expert = ln(att_exp + expert, 2)
    w1 = params["ffn"]["w1"].astype(jnp.float32)
    w2 = params["ffn"]["w2"].astype(jnp.float32)
    h = jnp.maximum(attended_expert @ w1 + params["ffn"]["b1"], 0.0)
    ffn_out = h @ w2 + params["ffn"]["b2"]
    attended_expert = ln(ffn_out + attended_expert, 4)
    refined, _ = mha(attended_expert, attended_expert, params["self_attn"])
    return ln(attended_expert + refined, 6), attn_w


# ---------------------------------- Main --------------------------------------

if __name__ == "__main__":
    key = jax.random.PRNGKey(0)
    B, E, H = 2, 32, 4
    num_abnormalities = 14
    n_patches, n_text = 16, 8

    k_param, k_e, k_i, k_t, k_drop = jax.random.split(key, 5)
    params = init_params(k_param, E)

    expert_tokens = jax.random.normal(k_e, (B, num_abnormalities, E), jnp.float32)
    image_patches = jax.random.normal(k_i, (B, n_patches, E), jnp.float32)
    text_embeddings = jax.random.normal(k_t, (B, n_text, E), jnp.float32)

    # --- with text (dropout mask applied inside the kernel) ---
    out, attn_w = expert_token_cross_attention(
        params, expert_tokens, image_patches, text_embeddings,
        text_drop_key=k_drop, text_dropout_rate=0.5, num_heads=H)
    jax.block_until_ready((out, attn_w))

    assert out.shape == (B, num_abnormalities, E)
    assert attn_w.shape == (B, num_abnormalities, n_patches)
    assert bool(jnp.all(jnp.isfinite(out))) and bool(jnp.all(jnp.isfinite(attn_w)))

    mask = (jax.random.uniform(k_drop, (B,)) > 0.5).astype(jnp.float32)
    mask = mask.reshape(B, 1, 1)
    ref_out, ref_attn = _ref_forward(params, expert_tokens, image_patches,
                                     text_embeddings, mask, H, True)
    err_out = float(jnp.max(jnp.abs(out - ref_out)))
    err_attn = float(jnp.max(jnp.abs(attn_w - ref_attn)))
    assert err_out < 5e-2, f"out mismatch: {err_out}"
    assert err_attn < 2e-2, f"attn mismatch: {err_attn}"

    # --- no-text path ---
    out_nt, attn_nt = expert_token_cross_attention(
        params, expert_tokens, image_patches, None, num_heads=H)
    jax.block_until_ready((out_nt, attn_nt))
    ref_out_nt, ref_attn_nt = _ref_forward(params, expert_tokens, image_patches,
                                           None, None, H, False)
    assert float(jnp.max(jnp.abs(out_nt - ref_out_nt))) < 5e-2
    assert float(jnp.max(jnp.abs(attn_nt - ref_attn_nt))) < 2e-2

    print("KERNEL_OK")
</pallas_src>

<mosaic_0001>
module attributes {stable_mosaic.version = 11 : i64} {
  func.func @_fused_kernel(%arg0: i32, %arg1: memref<2xi32, #tpu.memory_space<smem>>, %arg2: memref<1x14x32xf32, #tpu.memory_space<vmem>>, %arg3: memref<1x16x32xf32, #tpu.memory_space<vmem>>, %arg4: memref<1x8x32xf32, #tpu.memory_space<vmem>>, %arg5: memref<32x96xbf16, #tpu.memory_space<vmem>>, %arg6: memref<1x96xf32, #tpu.memory_space<vmem>>, %arg7: memref<32x32xbf16, #tpu.memory_space<vmem>>, %arg8: memref<1x32xf32, #tpu.memory_space<vmem>>, %arg9: memref<32x96xbf16, #tpu.memory_space<vmem>>, %arg10: memref<1x96xf32, #tpu.memory_space<vmem>>, %arg11: memref<32x32xbf16, #tpu.memory_space<vmem>>, %arg12: memref<1x32xf32, #tpu.memory_space<vmem>>, %arg13: memref<32x96xbf16, #tpu.memory_space<vmem>>, %arg14: memref<1x96xf32, #tpu.memory_space<vmem>>, %arg15: memref<32x32xbf16, #tpu.memory_space<vmem>>, %arg16: memref<1x32xf32, #tpu.memory_space<vmem>>, %arg17: memref<32x128xbf16, #tpu.memory_space<vmem>>, %arg18: memref<1x128xf32, #tpu.memory_space<vmem>>, %arg19: memref<128x32xbf16, #tpu.memory_space<vmem>>, %arg20: memref<1x32xf32, #tpu.memory_space<vmem>>, %arg21: memref<8x32xf32, #tpu.memory_space<vmem>>, %arg22: memref<1x14x32xf32, #tpu.memory_space<vmem>>, %arg23: memref<1x14x128xf32, #tpu.memory_space<vmem>>) attributes {dimension_semantics = [#tpu.dimension_semantics<parallel>], iteration_bounds = array<i64: 2>, scalar_prefetch = 1 : i64, scratch_operands = 0 : i64, tpu.core_type = #tpu.core_type<tc>, window_params = [{transform_indices = @transform_0, window_bounds = array<i64: 1, 14, 32>}, {transform_indices = @transform_1, window_bounds = array<i64: 1, 16, 32>}, {transform_indices = @transform_2, window_bounds = array<i64: 1, 8, 32>}, {pipeline_mode = #tpu.pipeline_mode<synchronous>, transform_indices = @transform_3, window_bounds = array<i64: 32, 96>}, {pipeline_mode = #tpu.pipeline_mode<synchronous>, transform_indices = @transform_4, window_bounds = array<i64: 1, 96>}, {pipeline_mode = #tpu.pipeline_mode<synchronous>, transform_indices = @transform_5, window_bounds = array<i64: 32, 32>}, {pipeline_mode = #tpu.pipeline_mode<synchronous>, transform_indices = @transform_6, window_bounds = array<i64: 1, 32>}, {pipeline_mode = #tpu.pipeline_mode<synchronous>, transform_indices = @transform_7, window_bounds = array<i64: 32, 96>}, {pipeline_mode = #tpu.pipeline_mode<synchronous>, transform_indices = @transform_8, window_bounds = array<i64: 1, 96>}, {pipeline_mode = #tpu.pipeline_mode<synchronous>, transform_indices = @transform_9, window_bounds = array<i64: 32, 32>}, {pipeline_mode = #tpu.pipeline_mode<synchronous>, transform_indices = @transform_10, window_bounds = array<i64: 1, 32>}, {pipeline_mode = #tpu.pipeline_mode<synchronous>, transform_indices = @transform_11, window_bounds = array<i64: 32, 96>}, {pipeline_mode = #tpu.pipeline_mode<synchronous>, transform_indices = @transform_12, window_bounds = array<i64: 1, 96>}, {pipeline_mode = #tpu.pipeline_mode<synchronous>, transform_indices = @transform_13, window_bounds = array<i64: 32, 32>}, {pipeline_mode = #tpu.pipeline_mode<synchronous>, transform_indices = @transform_14, window_bounds = array<i64: 1, 32>}, {pipeline_mode = #tpu.pipeline_mode<synchronous>, transform_indices = @transform_15, window_bounds = array<i64: 32, 128>}, {pipeline_mode = #tpu.pipeline_mode<synchronous>, transform_indices = @transform_16, window_bounds = array<i64: 1, 128>}, {pipeline_mode = #tpu.pipeline_mode<synchronous>, transform_indices = @transform_17, window_bounds = array<i64: 128, 32>}, {pipeline_mode = #tpu.pipeline_mode<synchronous>, transform_indices = @transform_18, window_bounds = array<i64: 1, 32>}, {pipeline_mode = #tpu.pipeline_mode<synchronous>, transform_indices = @transform_19, window_bounds = array<i64: 8, 32>}, {transform_indices = @transform_20, window_bounds = array<i64: 1, 14, 32>}, {transform_indices = @transform_21, window_bounds = array<i64: 1, 14, 128>}]} {
    %c1_i32 = arith.constant 1 : i32
    %0 = arith.muli %arg0, %c1_i32 : i32
    %c0 = arith.constant 0 : index
    %c0_0 = arith.constant 0 : index
    %1 = vector.load %arg21[%c0, %c0_0] : memref<8x32xf32, #tpu.memory_space<vmem>>, vector<8x32xf32>
    %c0_1 = arith.constant 0 : index
    %c0_2 = arith.constant 0 : index
    %c0_3 = arith.constant 0 : index
    %2 = vector.load %arg3[%c0_1, %c0_2, %c0_3] : memref<1x16x32xf32, #tpu.memory_space<vmem>>, vector<1x16x32xf32>
    %3 = vector.shape_cast %2 : vector<1x16x32xf32> to vector<16x32xf32>
    %c0_4 = arith.constant 0 : index
    %c0_5 = arith.constant 0 : index
    %c0_6 = arith.constant 0 : index
    %4 = vector.load %arg2[%c0_4, %c0_5, %c0_6] : memref<1x14x32xf32, #tpu.memory_space<vmem>>, vector<1x14x32xf32>
    %5 = vector.shape_cast %4 : vector<1x14x32xf32> to vector<14x32xf32>
    %c0_7 = arith.constant 0 : index
    %c0_8 = arith.constant 0 : index
    %c0_9 = arith.constant 0 : index
    %6 = vector.load %arg4[%c0_7, %c0_8, %c0_9] : memref<1x8x32xf32, #tpu.memory_space<vmem>>, vector<1x8x32xf32>
    %c0_i32 = arith.constant 0 : i32
    %7 = arith.addi %0, %c0_i32 : i32
    %8 = arith.index_cast %7 : i32 to index
    %9 = memref.load %arg1[%8] : memref<2xi32, #tpu.memory_space<smem>>
    %10 = arith.sitofp %9 : i32 to f32
    %11 = vector.shape_cast %6 : vector<1x8x32xf32> to vector<8x32xf32>
    %12 = vector.broadcast %10 : f32 to vector<8x32xf32>
    %13 = arith.mulf %11, %12 : vector<8x32xf32>
    %c0_10 = arith.constant 0 : index
    %c0_11 = arith.constant 0 : index
    %14 = vector.load %arg5[%c0_10, %c0_11] : memref<32x96xbf16, #tpu.memory_space<vmem>>, vector<32x96xbf16>
    %c0_12 = arith.constant 0 : index
    %c0_13 = arith.constant 0 : index
    %15 = vector.load %arg6[%c0_12, %c0_13] : memref<1x96xf32, #tpu.memory_space<vmem>>, vector<1x96xf32>
    %16 = vector.extract_strided_slice %14 {offsets = [0, 0], sizes = [32, 32], strides = [1, 1]} : vector<32x96xbf16> to vector<32x32xbf16>
    %17 = arith.truncf %3 : vector<16x32xf32> to vector<16x32xbf16>
    %cst = arith.constant dense<0.000000e+00> : vector<16x32xf32>
    %18 = tpu.matmul %17, %16, %cst {dimension_numbers = #tpu.dot_dimension_numbers<[1], [0], [0], [1], [0, 0, 1, 1], [], []>} : vector<16x32xbf16>, vector<32x32xbf16>, vector<16x32xf32> -> vector<16x32xf32>
    %19 = vector.extract_strided_slice %15 {offsets = [0, 0], sizes = [1, 32], strides = [1, 1]} : vector<1x96xf32> to vector<1x32xf32>
    %20 = vector.broadcast %19 : vector<1x32xf32> to vector<16x32xf32>
    %21 = arith.addf %18, %20 : vector<16x32xf32>
    %22 = vector.extract_strided_slice %14 {offsets = [0, 32], sizes = [32, 64], strides = [1, 1]} : vector<32x96xbf16> to vector<32x64xbf16>
    %23 = arith.truncf %13 : vector<8x32xf32> to vector<8x32xbf16>
    %cst_14 = arith.constant dense<0.000000e+00> : vector<8x64xf32>
    %24 = tpu.matmul %23, %22, %cst_14 {dimension_numbers = #tpu.dot_dimension_numbers<[1], [0], [0], [1], [0, 0, 1, 1], [], []>} : vector<8x32xbf16>, vector<32x64xbf16>, vector<8x64xf32> -> vector<8x64xf32>
    %25 = vector.extract_strided_slice %15 {offsets = [0, 32], sizes = [1, 64], strides = [1, 1]} : vector<1x96xf32> to vector<1x64xf32>
    %26 = vector.broadcast %25 : vector<1x64xf32> to vector<8x64xf32>
    %27 = arith.addf %24, %26 : vector<8x64xf32>
    %28 = vector.extract_strided_slice %27 {offsets = [0, 0], sizes = [8, 32], strides = [1, 1]} : vector<8x64xf32> to vector<8x32xf32>
    %29 = vector.extract_strided_slice %27 {offsets = [0, 32], sizes = [8, 32], strides = [1, 1]} : vector<8x64xf32> to vector<8x32xf32>
    %30 = vector.extract_strided_slice %21 {offsets = [0, 0], sizes = [16, 8], strides = [1, 1]} : vector<16x32xf32> to vector<16x8xf32>
    %31 = vector.extract_strided_slice %21 {offsets = [0, 8], sizes = [16, 8], strides = [1, 1]} : vector<16x32xf32> to vector<16x8xf32>
    %32 = vector.extract_strided_slice %21 {offsets = [0, 16], sizes = [16, 8], strides = [1, 1]} : vector<16x32xf32> to vector<16x8xf32>
    %33 = vector.extract_strided_slice %21 {offsets = [0, 24], sizes = [16, 8], strides = [1, 1]} : vector<16x32xf32> to vector<16x8xf32>
    %34 = vector.shape_cast %30 : vector<16x8xf32> to vector<1x16x8xf32>
    %35 = vector.shape_cast %31 : vector<16x8xf32> to vector<1x16x8xf32>
    %36 = vector.shape_cast %32 : vector<16x8xf32> to vector<1x16x8xf32>
    %37 = vector.shape_cast %33 : vector<16x8xf32> to vector<1x16x8xf32>
    %38 = tpu.concatenate %34, %35, %36, %37 in 0 : vector<1x16x8xf32>, vector<1x16x8xf32>, vector<1x16x8xf32>, vector<1x16x8xf32> -> vector<4x16x8xf32>
    %39 = vector.extract_strided_slice %28 {offsets = [0, 0], sizes = [8, 8], strides = [1, 1]} : vector<8x32xf32> to vector<8x8xf32>
    %40 = vector.extract_strided_slice %28 {offsets = [0, 8], sizes = [8, 8], strides = [1, 1]} : vector<8x32xf32> to vector<8x8xf32>
    %41 = vector.extract_strided_slice %28 {offsets = [0, 16], sizes = [8, 8], strides = [1, 1]} : vector<8x32xf32> to vector<8x8xf32>
    %42 = vector.extract_strided_slice %28 {offsets = [0, 24], sizes = [8, 8], strides = [1, 1]} : vector<8x32xf32> to vector<8x8xf32>
    %43 = vector.shape_cast %39 : vector<8x8xf32> to vector<1x8x8xf32>
    %44 = vector.shape_cast %40 : vector<8x8xf32> to vector<1x8x8xf32>
    %45 = vector.shape_cast %41 : vector<8x8xf32> to vector<1x8x8xf32>
    %46 = vector.shape_cast %42 : vector<8x8xf32> to vector<1x8x8xf32>
    %47 = tpu.concatenate %43, %44, %45, %46 in 0 : vector<1x8x8xf32>, vector<1x8x8xf32>, vector<1x8x8xf32>, vector<1x8x8xf32> -> vector<4x8x8xf32>
    %48 = vector.extract_strided_slice %29 {offsets = [0, 0], sizes = [8, 8], strides = [1, 1]} : vector<8x32xf32> to vector<8x8xf32>
    %49 = vector.extract_strided_slice %29 {offsets = [0, 8], sizes = [8, 8], strides = [1, 1]} : vector<8x32xf32> to vector<8x8xf32>
    %50 = vector.extract_strided_slice %29 {offsets = [0, 16], sizes = [8, 8], strides = [1, 1]} : vector<8x32xf32> to vector<8x8xf32>
    %51 = vector.extract_strided_slice %29 {offsets = [0, 24], sizes = [8, 8], strides = [1, 1]} : vector<8x32xf32> to vector<8x8xf32>
    %52 = vector.shape_cast %48 : vector<8x8xf32> to vector<1x8x8xf32>
    %53 = vector.shape_cast %49 : vector<8x8xf32> to vector<1x8x8xf32>
    %54 = vector.shape_cast %50 : vector<8x8xf32> to vector<1x8x8xf32>
    %55 = vector.shape_cast %51 : vector<8x8xf32> to vector<1x8x8xf32>
    %56 = tpu.concatenate %52, %53, %54, %55 in 0 : vector<1x8x8xf32>, vector<1x8x8xf32>, vector<1x8x8xf32>, vector<1x8x8xf32> -> vector<4x8x8xf32>
    %57 = arith.truncf %38 : vector<4x16x8xf32> to vector<4x16x8xbf16>
    %58 = arith.truncf %47 : vector<4x8x8xf32> to vector<4x8x8xbf16>
    "tpu.trace_start"() <{level = 10 : i32, message = "bqd,bkd->bqk"}> : () -> ()
    %cst_15 = arith.constant dense<0.000000e+00> : vector<4x16x8xf32>
    %59 = tpu.matmul %57, %58, %cst_15 {dimension_numbers = #tpu.dot_dimension_numbers<[2], [2], [1], [1], [0, 0, 0, 1, 1, 1], [0], [0]>} : vector<4x16x8xbf16>, vector<4x8x8xbf16>, vector<4x16x8xf32> -> vector<4x16x8xf32>
    "tpu.trace_stop"() : () -> ()
    %cst_16 = arith.constant 0.353553385 : f32
    %60 = vector.broadcast %cst_16 : f32 to vector<4x16x8xf32>
    %61 = arith.mulf %59, %60 : vector<4x16x8xf32>
    %cst_17 = arith.constant dense<0xFF800000> : vector<4x16xf32>
    %62 = vector.multi_reduction <maximumf>, %61, %cst_17 [2] : vector<4x16x8xf32> to vector<4x16xf32>
    %63 = vector.shape_cast %62 : vector<4x16xf32> to vector<4x16x1xf32>
    %64 = vector.broadcast %63 : vector<4x16x1xf32> to vector<4x16x8xf32>
    %65 = arith.subf %61, %64 : vector<4x16x8xf32>
    %66 = math.exp %65 : vector<4x16x8xf32>
    %cst_18 = arith.constant dense<0.000000e+00> : vector<4x16xf32>
    %67 = vector.multi_reduction <add>, %66, %cst_18 [2] : vector<4x16x8xf32> to vector<4x16xf32>
    %68 = vector.shape_cast %67 : vector<4x16xf32> to vector<4x16x1xf32>
    %69 = tpu.reciprocal %68 {approx = true} : vector<4x16x1xf32> -> vector<4x16x1xf32>
    %70 = vector.broadcast %69 : vector<4x16x1xf32> to vector<4x16x8xf32>
    %71 = arith.mulf %66, %70 : vector<4x16x8xf32>
    %72 = arith.truncf %71 : vector<4x16x8xf32> to vector<4x16x8xbf16>
    %73 = arith.truncf %56 : vector<4x8x8xf32> to vector<4x8x8xbf16>
    "tpu.trace_start"() <{level = 10 : i32, message = "bqk,bkd->bqd"}> : () -> ()
    %cst_19 = arith.constant dense<0.000000e+00> : vector<4x16x8xf32>
    %74 = tpu.matmul %72, %73, %cst_19 {dimension_numbers = #tpu.dot_dimension_numbers<[2], [1], [1], [2], [0, 0, 0, 1, 1, 2], [0], [0]>} : vector<4x16x8xbf16>, vector<4x8x8xbf16>, vector<4x16x8xf32> -> vector<4x16x8xf32>
    "tpu.trace_stop"() : () -> ()
    %75 = vector.extract_strided_slice %74 {offsets = [0, 0, 0], sizes = [1, 16, 8], strides = [1, 1, 1]} : vector<4x16x8xf32> to vector<1x16x8xf32>
    %76 = vector.shape_cast %75 : vector<1x16x8xf32> to vector<16x8xf32>
    %77 = vector.extract_strided_slice %74 {offsets = [1, 0, 0], sizes = [1, 16, 8], strides = [1, 1, 1]} : vector<4x16x8xf32> to vector<1x16x8xf32>
    %78 = vector.shape_cast %77 : vector<1x16x8xf32> to vector<16x8xf32>
    %79 = vector.extract_strided_slice %74 {offsets = [2, 0, 0], sizes = [1, 16, 8], strides = [1, 1, 1]} : vector<4x16x8xf32> to vector<1x16x8xf32>
    %80 = vector.shape_cast %79 : vector<1x16x8xf32> to vector<16x8xf32>
    %81 = vector.extract_strided_slice %74 {offsets = [3, 0, 0], sizes = [1, 16, 8], strides = [1, 1, 1]} : vector<4x16x8xf32> to vector<1x16x8xf32>
    %82 = vector.shape_cast %81 : vector<1x16x8xf32> to vector<16x8xf32>
    %83 = tpu.concatenate %76, %78, %80, %82 in 1 : vector<16x8xf32>, vector<16x8xf32>, vector<16x8xf32>, vector<16x8xf32> -> vector<16x32xf32>
    %c0_20 = arith.constant 0 : index
    %c0_21 = arith.constant 0 : index
    %84 = vector.load %arg7[%c0_20, %c0_21] : memref<32x32xbf16, #tpu.memory_space<vmem>>, vector<32x32xbf16>
    %85 = arith.truncf %83 : vector<16x32xf32> to vector<16x32xbf16>
    %cst_22 = arith.constant dense<0.000000e+00> : vector<16x32xf32>
    %86 = tpu.matmul %85, %84, %cst_22 {dimension_numbers = #tpu.dot_dimension_numbers<[1], [0], [0], [1], [0, 0, 1, 1], [], []>} : vector<16x32xbf16>, vector<32x32xbf16>, vector<16x32xf32> -> vector<16x32xf32>
    %c0_23 = arith.constant 0 : index
    %c0_24 = arith.constant 0 : index
    %87 = vector.load %arg8[%c0_23, %c0_24] : memref<1x32xf32, #tpu.memory_space<vmem>>, vector<1x32xf32>
    %88 = vector.broadcast %87 : vector<1x32xf32> to vector<16x32xf32>
    %89 = arith.addf %86, %88 : vector<16x32xf32>
    %90 = arith.addf %89, %3 : vector<16x32xf32>
    %91 = vector.extract_strided_slice %1 {offsets = [0, 0], sizes = [1, 32], strides = [1, 1]} : vector<8x32xf32> to vector<1x32xf32>
    %92 = vector.extract_strided_slice %1 {offsets = [1, 0], sizes = [1, 32], strides = [1, 1]} : vector<8x32xf32> to vector<1x32xf32>
    %cst_25 = arith.constant dense<0.000000e+00> : vector<16xf32>
    %93 = vector.multi_reduction <add>, %90, %cst_25 [1] : vector<16x32xf32> to vector<16xf32>
    %94 = vector.shape_cast %93 : vector<16xf32> to vector<16x1xf32>
    %cst_26 = arith.constant 3.200000e+01 : f32
    %95 = vector.broadcast %cst_26 : f32 to vector<16x1xf32>
    %96 = arith.divf %94, %95 : vector<16x1xf32>
    %97 = vector.broadcast %96 : vector<16x1xf32> to vector<16x32xf32>
    %98 = arith.subf %90, %97 : vector<16x32xf32>
    %99 = arith.mulf %98, %98 : vector<16x32xf32>
    %cst_27 = arith.constant dense<0.000000e+00> : vector<16xf32>
    %100 = vector.multi_reduction <add>, %99, %cst_27 [1] : vector<16x32xf32> to vector<16xf32>
    %101 = vector.shape_cast %100 : vector<16xf32> to vector<16x1xf32>
    %cst_28 = arith.constant 3.200000e+01 : f32
    %102 = vector.broadcast %cst_28 : f32 to vector<16x1xf32>
    %103 = arith.divf %101, %102 : vector<16x1xf32>
    %104 = vector.broadcast %96 : vector<16x1xf32> to vector<16x32xf32>
    %105 = arith.subf %90, %104 : vector<16x32xf32>
    %cst_29 = arith.constant 9.99999974E-6 : f32
    %106 = vector.broadcast %cst_29 : f32 to vector<16x1xf32>
    %107 = arith.addf %103, %106 : vector<16x1xf32>
    %108 = math.rsqrt %107 : vector<16x1xf32>
    %109 = vector.broadcast %108 : vector<16x1xf32> to vector<16x32xf32>
    %110 = arith.mulf %105, %109 : vector<16x32xf32>
    %111 = vector.broadcast %91 : vector<1x32xf32> to vector<16x32xf32>
    %112 = arith.mulf %110, %111 : vector<16x32xf32>
    %113 = vector.broadcast %92 : vector<1x32xf32> to vector<16x32xf32>
    %114 = arith.addf %112, %113 : vector<16x32xf32>
    %c0_30 = arith.constant 0 : index
    %c0_31 = arith.constant 0 : index
    %115 = vector.load %arg9[%c0_30, %c0_31] : memref<32x96xbf16, #tpu.memory_space<vmem>>, vector<32x96xbf16>
    %c0_32 = arith.constant 0 : index
    %c0_33 = arith.constant 0 : index
    %116 = vector.load %arg10[%c0_32, %c0_33] : memref<1x96xf32, #tpu.memory_space<vmem>>, vector<1x96xf32>
    %117 = vector.extract_strided_slice %115 {offsets = [0, 0], sizes = [32, 32], strides = [1, 1]} : vector<32x96xbf16> to vector<32x32xbf16>
    %118 = arith.truncf %5 : vector<14x32xf32> to vector<14x32xbf16>
    %cst_34 = arith.constant dense<0.000000e+00> : vector<14x32xf32>
    %119 = tpu.matmul %118, %117, %cst_34 {dimension_numbers = #tpu.dot_dimension_numbers<[1], [0], [0], [1], [0, 0, 1, 1], [], []>} : vector<14x32xbf16>, vector<32x32xbf16>, vector<14x32xf32> -> vector<14x32xf32>
    %120 = vector.extract_strided_slice %116 {offsets = [0, 0], sizes = [1, 32], strides = [1, 1]} : vector<1x96xf32> to vector<1x32xf32>
    %121 = vector.broadcast %120 : vector<1x32xf32> to vector<14x32xf32>
    %122 = arith.addf %119, %121 : vector<14x32xf32>
    %123 = vector.extract_strided_slice %115 {offsets = [0, 32], sizes = [32, 64], strides = [1, 1]} : vector<32x96xbf16> to vector<32x64xbf16>
    %124 = arith.truncf %114 : vector<16x32xf32> to vector<16x32xbf16>
    %cst_35 = arith.constant dense<0.000000e+00> : vector<16x64xf32>
    %125 = tpu.matmul %124, %123, %cst_35 {dimension_numbers = #tpu.dot_dimension_numbers<[1], [0], [0], [1], [0, 0, 1, 1], [], []>} : vector<16x32xbf16>, vector<32x64xbf16>, vector<16x64xf32> -> vector<16x64xf32>
    %126 = vector.extract_strided_slice %116 {offsets = [0, 32], sizes = [1, 64], strides = [1, 1]} : vector<1x96xf32> to vector<1x64xf32>
    %127 = vector.broadcast %126 : vector<1x64xf32> to vector<16x64xf32>
    %128 = arith.addf %125, %127 : vector<16x64xf32>
    %129 = vector.extract_strided_slice %128 {offsets = [0, 0], sizes = [16, 32], strides = [1, 1]} : vector<16x64xf32> to vector<16x32xf32>
    %130 = vector.extract_strided_slice %128 {offsets = [0, 32], sizes = [16, 32], strides = [1, 1]} : vector<16x64xf32> to vector<16x32xf32>
    %131 = vector.extract_strided_slice %122 {offsets = [0, 0], sizes = [14, 8], strides = [1, 1]} : vector<14x32xf32> to vector<14x8xf32>
    %132 = vector.extract_strided_slice %122 {offsets = [0, 8], sizes = [14, 8], strides = [1, 1]} : vector<14x32xf32> to vector<14x8xf32>
    %133 = vector.extract_strided_slice %122 {offsets = [0, 16], sizes = [14, 8], strides = [1, 1]} : vector<14x32xf32> to vector<14x8xf32>
    %134 = vector.extract_strided_slice %122 {offsets = [0, 24], sizes = [14, 8], strides = [1, 1]} : vector<14x32xf32> to vector<14x8xf32>
    %135 = vector.shape_cast %131 : vector<14x8xf32> to vector<1x14x8xf32>
    %136 = vector.shape_cast %132 : vector<14x8xf32> to vector<1x14x8xf32>
    %137 = vector.shape_cast %133 : vector<14x8xf32> to vector<1x14x8xf32>
    %138 = vector.shape_cast %134 : vector<14x8xf32> to vector<1x14x8xf32>
    %139 = tpu.concatenate %135, %136, %137, %138 in 0 : vector<1x14x8xf32>, vector<1x14x8xf32>, vector<1x14x8xf32>, vector<1x14x8xf32> -> vector<4x14x8xf32>
    %140 = vector.extract_strided_slice %129 {offsets = [0, 0], sizes = [16, 8], strides = [1, 1]} : vector<16x32xf32> to vector<16x8xf32>
    %141 = vector.extract_strided_slice %129 {offsets = [0, 8], sizes = [16, 8], strides = [1, 1]} : vector<16x32xf32> to vector<16x8xf32>
    %142 = vector.extract_strided_slice %129 {offsets = [0, 16], sizes = [16, 8], strides = [1, 1]} : vector<16x32xf32> to vector<16x8xf32>
    %143 = vector.extract_strided_slice %129 {offsets = [0, 24], sizes = [16, 8], strides = [1, 1]} : vector<16x32xf32> to vector<16x8xf32>
    %144 = vector.shape_cast %140 : vector<16x8xf32> to vector<1x16x8xf32>
    %145 = vector.shape_cast %141 : vector<16x8xf32> to vector<1x16x8xf32>
    %146 = vector.shape_cast %142 : vector<16x8xf32> to vector<1x16x8xf32>
    %147 = vector.shape_cast %143 : vector<16x8xf32> to vector<1x16x8xf32>
    %148 = tpu.concatenate %144, %145, %146, %147 in 0 : vector<1x16x8xf32>, vector<1x16x8xf32>, vector<1x16x8xf32>, vector<1x16x8xf32> -> vector<4x16x8xf32>
    %149 = vector.extract_strided_slice %130 {offsets = [0, 0], sizes = [16, 8], strides = [1, 1]} : vector<16x32xf32> to vector<16x8xf32>
    %150 = vector.extract_strided_slice %130 {offsets = [0, 8], sizes = [16, 8], strides = [1, 1]} : vector<16x32xf32> to vector<16x8xf32>
    %151 = vector.extract_strided_slice %130 {offsets = [0, 16], sizes = [16, 8], strides = [1, 1]} : vector<16x32xf32> to vector<16x8xf32>
    %152 = vector.extract_strided_slice %130 {offsets = [0, 24], sizes = [16, 8], strides = [1, 1]} : vector<16x32xf32> to vector<16x8xf32>
    %153 = vector.shape_cast %149 : vector<16x8xf32> to vector<1x16x8xf32>
    %154 = vector.shape_cast %150 : vector<16x8xf32> to vector<1x16x8xf32>
    %155 = vector.shape_cast %151 : vector<16x8xf32> to vector<1x16x8xf32>
    %156 = vector.shape_cast %152 : vector<16x8xf32> to vector<1x16x8xf32>
    %157 = tpu.concatenate %153, %154, %155, %156 in 0 : vector<1x16x8xf32>, vector<1x16x8xf32>, vector<1x16x8xf32>, vector<1x16x8xf32> -> vector<4x16x8xf32>
    %158 = arith.truncf %139 : vector<4x14x8xf32> to vector<4x14x8xbf16>
    %159 = arith.truncf %148 : vector<4x16x8xf32> to vector<4x16x8xbf16>
    "tpu.trace_start"() <{level = 10 : i32, message = "bqd,bkd->bqk"}> : () -> ()
    %cst_36 = arith.constant dense<0.000000e+00> : vector<4x14x16xf32>
    %160 = tpu.matmul %158, %159, %cst_36 {dimension_numbers = #tpu.dot_dimension_numbers<[2], [2], [1], [1], [0, 0, 0, 1, 1, 1], [0], [0]>} : vector<4x14x8xbf16>, vector<4x16x8xbf16>, vector<4x14x16xf32> -> vector<4x14x16xf32>
    "tpu.trace_stop"() : () -> ()
    %cst_37 = arith.constant 0.353553385 : f32
    %161 = vector.broadcast %cst_37 : f32 to vector<4x14x16xf32>
    %162 = arith.mulf %160, %161 : vector<4x14x16xf32>
    %cst_38 = arith.constant dense<0xFF800000> : vector<4x14xf32>
    %163 = vector.multi_reduction <maximumf>, %162, %cst_38 [2] : vector<4x14x16xf32> to vector<4x14xf32>
    %164 = vector.shape_cast %163 : vector<4x14xf32> to vector<4x14x1xf32>
    %165 = vector.broadcast %164 : vector<4x14x1xf32> to vector<4x14x16xf32>
    %166 = arith.subf %162, %165 : vector<4x14x16xf32>
    %167 = math.exp %166 : vector<4x14x16xf32>
    %cst_39 = arith.constant dense<0.000000e+00> : vector<4x14xf32>
    %168 = vector.multi_reduction <add>, %167, %cst_39 [2] : vector<4x14x16xf32> to vector<4x14xf32>
    %169 = vector.shape_cast %168 : vector<4x14xf32> to vector<4x14x1xf32>
    %170 = tpu.reciprocal %169 : vector<4x14x1xf32> -> vector<4x14x1xf32>
    %171 = vector.broadcast %170 : vector<4x14x1xf32> to vector<4x14x16xf32>
    %172 = arith.mulf %167, %171 : vector<4x14x16xf32>
    %173 = arith.truncf %172 : vector<4x14x16xf32> to vector<4x14x16xbf16>
    %174 = arith.truncf %157 : vector<4x16x8xf32> to vector<4x16x8xbf16>
    "tpu.trace_start"() <{level = 10 : i32, message = "bqk,bkd->bqd"}> : () -> ()
    %cst_40 = arith.constant dense<0.000000e+00> : vector<4x14x8xf32>
    %175 = tpu.matmul %173, %174, %cst_40 {dimension_numbers = #tpu.dot_dimension_numbers<[2], [1], [1], [2], [0, 0, 0, 1, 1, 2], [0], [0]>} : vector<4x14x16xbf16>, vector<4x16x8xbf16>, vector<4x14x8xf32> -> vector<4x14x8xf32>
    "tpu.trace_stop"() : () -> ()
    %176 = vector.extract_strided_slice %175 {offsets = [0, 0, 0], sizes = [1, 14, 8], strides = [1, 1, 1]} : vector<4x14x8xf32> to vector<1x14x8xf32>
    %177 = vector.shape_cast %176 : vector<1x14x8xf32> to vector<14x8xf32>
    %178 = vector.extract_strided_slice %175 {offsets = [1, 0, 0], sizes = [1, 14, 8], strides = [1, 1, 1]} : vector<4x14x8xf32> to vector<1x14x8xf32>
    %179 = vector.shape_cast %178 : vector<1x14x8xf32> to vector<14x8xf32>
    %180 = vector.extract_strided_slice %175 {offsets = [2, 0, 0], sizes = [1, 14, 8], strides = [1, 1, 1]} : vector<4x14x8xf32> to vector<1x14x8xf32>
    %181 = vector.shape_cast %180 : vector<1x14x8xf32> to vector<14x8xf32>
    %182 = vector.extract_strided_slice %175 {offsets = [3, 0, 0], sizes = [1, 14, 8], strides = [1, 1, 1]} : vector<4x14x8xf32> to vector<1x14x8xf32>
    %183 = vector.shape_cast %182 : vector<1x14x8xf32> to vector<14x8xf32>
    %184 = tpu.concatenate %177, %179, %181, %183 in 1 : vector<14x8xf32>, vector<14x8xf32>, vector<14x8xf32>, vector<14x8xf32> -> vector<14x32xf32>
    %c0_41 = arith.constant 0 : index
    %c0_42 = arith.constant 0 : index
    %185 = vector.load %arg11[%c0_41, %c0_42] : memref<32x32xbf16, #tpu.memory_space<vmem>>, vector<32x32xbf16>
    %186 = arith.truncf %184 : vector<14x32xf32> to vector<14x32xbf16>
    %cst_43 = arith.constant dense<0.000000e+00> : vector<14x32xf32>
    %187 = tpu.matmul %186, %185, %cst_43 {dimension_numbers = #tpu.dot_dimension_numbers<[1], [0], [0], [1], [0, 0, 1, 1], [], []>} : vector<14x32xbf16>, vector<32x32xbf16>, vector<14x32xf32> -> vector<14x32xf32>
    %c0_44 = arith.constant 0 : index
    %c0_45 = arith.constant 0 : index
    %188 = vector.load %arg12[%c0_44, %c0_45] : memref<1x32xf32, #tpu.memory_space<vmem>>, vector<1x32xf32>
    %189 = vector.broadcast %188 : vector<1x32xf32> to vector<14x32xf32>
    %190 = arith.addf %187, %189 : vector<14x32xf32>
    %191 = vector.extract_strided_slice %172 {offsets = [0, 0, 0], sizes = [1, 14, 16], strides = [1, 1, 1]} : vector<4x14x16xf32> to vector<1x14x16xf32>
    %192 = vector.shape_cast %191 : vector<1x14x16xf32> to vector<14x16xf32>
    %193 = vector.extract_strided_slice %172 {offsets = [1, 0, 0], sizes = [1, 14, 16], strides = [1, 1, 1]} : vector<4x14x16xf32> to vector<1x14x16xf32>
    %194 = vector.shape_cast %193 : vector<1x14x16xf32> to vector<14x16xf32>
    %195 = arith.addf %192, %194 : vector<14x16xf32>
    %196 = vector.extract_strided_slice %172 {offsets = [2, 0, 0], sizes = [1, 14, 16], strides = [1, 1, 1]} : vector<4x14x16xf32> to vector<1x14x16xf32>
    %197 = vector.shape_cast %196 : vector<1x14x16xf32> to vector<14x16xf32>
    %198 = arith.addf %195, %197 : vector<14x16xf32>
    %199 = vector.extract_strided_slice %172 {offsets = [3, 0, 0], sizes = [1, 14, 16], strides = [1, 1, 1]} : vector<4x14x16xf32> to vector<1x14x16xf32>
    %200 = vector.shape_cast %199 : vector<1x14x16xf32> to vector<14x16xf32>
    %201 = arith.addf %198, %200 : vector<14x16xf32>
    %cst_46 = arith.constant 2.500000e-01 : f32
    %202 = vector.broadcast %cst_46 : f32 to vector<14x16xf32>
    %203 = arith.mulf %201, %202 : vector<14x16xf32>
    %204 = vector.shape_cast %203 : vector<14x16xf32> to vector<1x14x16xf32>
    %205 = arith.addf %190, %5 : vector<14x32xf32>
    %206 = vector.extract_strided_slice %1 {offsets = [2, 0], sizes = [1, 32], strides = [1, 1]} : vector<8x32xf32> to vector<1x32xf32>
    %207 = vector.extract_strided_slice %1 {offsets = [3, 0], sizes = [1, 32], strides = [1, 1]} : vector<8x32xf32> to vector<1x32xf32>
    %cst_47 = arith.constant dense<0.000000e+00> : vector<14xf32>
    %208 = vector.multi_reduction <add>, %205, %cst_47 [1] : vector<14x32xf32> to vector<14xf32>
    %209 = vector.shape_cast %208 : vector<14xf32> to vector<14x1xf32>
    %cst_48 = arith.constant 3.200000e+01 : f32
    %210 = vector.broadcast %cst_48 : f32 to vector<14x1xf32>
    %211 = arith.divf %209, %210 : vector<14x1xf32>
    %212 = vector.broadcast %211 : vector<14x1xf32> to vector<14x32xf32>
    %213 = arith.subf %205, %212 : vector<14x32xf32>
    %214 = arith.mulf %213, %213 : vector<14x32xf32>
    %cst_49 = arith.constant dense<0.000000e+00> : vector<14xf32>
    %215 = vector.multi_reduction <add>, %214, %cst_49 [1] : vector<14x32xf32> to vector<14xf32>
    %216 = vector.shape_cast %215 : vector<14xf32> to vector<14x1xf32>
    %cst_50 = arith.constant 3.200000e+01 : f32
    %217 = vector.broadcast %cst_50 : f32 to vector<14x1xf32>
    %218 = arith.divf %216, %217 : vector<14x1xf32>
    %219 = vector.broadcast %211 : vector<14x1xf32> to vector<14x32xf32>
    %220 = arith.subf %205, %219 : vector<14x32xf32>
    %cst_51 = arith.constant 9.99999974E-6 : f32
    %221 = vector.broadcast %cst_51 : f32 to vector<14x1xf32>
    %222 = arith.addf %218, %221 : vector<14x1xf32>
    %223 = math.rsqrt %222 : vector<14x1xf32>
    %224 = vector.broadcast %223 : vector<14x1xf32> to vector<14x32xf32>
    %225 = arith.mulf %220, %224 : vector<14x32xf32>
    %226 = vector.broadcast %206 : vector<1x32xf32> to vector<14x32xf32>
    %227 = arith.mulf %225, %226 : vector<14x32xf32>
    %228 = vector.broadcast %207 : vector<1x32xf32> to vector<14x32xf32>
    %229 = arith.addf %227, %228 : vector<14x32xf32>
    %c0_52 = arith.constant 0 : index
    %c0_53 = arith.constant 0 : index
    %230 = vector.load %arg17[%c0_52, %c0_53] : memref<32x128xbf16, #tpu.memory_space<vmem>>, vector<32x128xbf16>
    %231 = arith.truncf %229 : vector<14x32xf32> to vector<14x32xbf16>
    %cst_54 = arith.constant dense<0.000000e+00> : vector<14x128xf32>
    %232 = tpu.matmul %231, %230, %cst_54 {dimension_numbers = #tpu.dot_dimension_numbers<[1], [0], [0], [1], [0, 0, 1, 1], [], []>} : vector<14x32xbf16>, vector<32x128xbf16>, vector<14x128xf32> -> vector<14x128xf32>
    %c0_55 = arith.constant 0 : index
    %c0_56 = arith.constant 0 : index
    %233 = vector.load %arg18[%c0_55, %c0_56] : memref<1x128xf32, #tpu.memory_space<vmem>>, vector<1x128xf32>
    %234 = vector.broadcast %233 : vector<1x128xf32> to vector<14x128xf32>
    %235 = arith.addf %232, %234 : vector<14x128xf32>
    %cst_57 = arith.constant 0.000000e+00 : f32
    %236 = vector.broadcast %cst_57 : f32 to vector<14x128xf32>
    %237 = arith.maximumf %235, %236 : vector<14x128xf32>
    %c0_58 = arith.constant 0 : index
    %c0_59 = arith.constant 0 : index
    %238 = vector.load %arg19[%c0_58, %c0_59] : memref<128x32xbf16, #tpu.memory_space<vmem>>, vector<128x32xbf16>
    %239 = arith.truncf %237 : vector<14x128xf32> to vector<14x128xbf16>
    %cst_60 = arith.constant dense<0.000000e+00> : vector<14x32xf32>
    %240 = tpu.matmul %239, %238, %cst_60 {dimension_numbers = #tpu.dot_dimension_numbers<[1], [0], [0], [1], [0, 0, 1, 1], [], []>} : vector<14x128xbf16>, vector<128x32xbf16>, vector<14x32xf32> -> vector<14x32xf32>
    %c0_61 = arith.constant 0 : index
    %c0_62 = arith.constant 0 : index
    %241 = vector.load %arg20[%c0_61, %c0_62] : memref<1x32xf32, #tpu.memory_space<vmem>>, vector<1x32xf32>
    %242 = vector.broadcast %241 : vector<1x32xf32> to vector<14x32xf32>
    %243 = arith.addf %240, %242 : vector<14x32xf32>
    %244 = arith.addf %243, %229 : vector<14x32xf32>
    %245 = vector.extract_strided_slice %1 {offsets = [4, 0], sizes = [1, 32], strides = [1, 1]} : vector<8x32xf32> to vector<1x32xf32>
    %246 = vector.extract_strided_slice %1 {offsets = [5, 0], sizes = [1, 32], strides = [1, 1]} : vector<8x32xf32> to vector<1x32xf32>
    %cst_63 = arith.constant dense<0.000000e+00> : vector<14xf32>
    %247 = vector.multi_reduction <add>, %244, %cst_63 [1] : vector<14x32xf32> to vector<14xf32>
    %248 = vector.shape_cast %247 : vector<14xf32> to vector<14x1xf32>
    %cst_64 = arith.constant 3.200000e+01 : f32
    %249 = vector.broadcast %cst_64 : f32 to vector<14x1xf32>
    %250 = arith.divf %248, %249 : vector<14x1xf32>
    %251 = vector.broadcast %250 : vector<14x1xf32> to vector<14x32xf32>
    %252 = arith.subf %244, %251 : vector<14x32xf32>
    %253 = arith.mulf %252, %252 : vector<14x32xf32>
    %cst_65 = arith.constant dense<0.000000e+00> : vector<14xf32>
    %254 = vector.multi_reduction <add>, %253, %cst_65 [1] : vector<14x32xf32> to vector<14xf32>
    %255 = vector.shape_cast %254 : vector<14xf32> to vector<14x1xf32>
    %cst_66 = arith.constant 3.200000e+01 : f32
    %256 = vector.broadcast %cst_66 : f32 to vector<14x1xf32>
    %257 = arith.divf %255, %256 : vector<14x1xf32>
    %258 = vector.broadcast %250 : vector<14x1xf32> to vector<14x32xf32>
    %259 = arith.subf %244, %258 : vector<14x32xf32>
    %cst_67 = arith.constant 9.99999974E-6 : f32
    %260 = vector.broadcast %cst_67 : f32 to vector<14x1xf32>
    %261 = arith.addf %257, %260 : vector<14x1xf32>
    %262 = math.rsqrt %261 : vector<14x1xf32>
    %263 = vector.broadcast %262 : vector<14x1xf32> to vector<14x32xf32>
    %264 = arith.mulf %259, %263 : vector<14x32xf32>
    %265 = vector.broadcast %245 : vector<1x32xf32> to vector<14x32xf32>
    %266 = arith.mulf %264, %265 : vector<14x32xf32>
    %267 = vector.broadcast %246 : vector<1x32xf32> to vector<14x32xf32>
    %268 = arith.addf %266, %267 : vector<14x32xf32>
    %c0_68 = arith.constant 0 : index
    %c0_69 = arith.constant 0 : index
    %269 = vector.load %arg13[%c0_68, %c0_69] : memref<32x96xbf16, #tpu.memory_space<vmem>>, vector<32x96xbf16>
    %c0_70 = arith.constant 0 : index
    %c0_71 = arith.constant 0 : index
    %270 = vector.load %arg14[%c0_70, %c0_71] : memref<1x96xf32, #tpu.memory_space<vmem>>, vector<1x96xf32>
    %271 = arith.truncf %268 : vector<14x32xf32> to vector<14x32xbf16>
    %cst_72 = arith.constant dense<0.000000e+00> : vector<14x96xf32>
    %272 = tpu.matmul %271, %269, %cst_72 {dimension_numbers = #tpu.dot_dimension_numbers<[1], [0], [0], [1], [0, 0, 1, 1], [], []>} : vector<14x32xbf16>, vector<32x96xbf16>, vector<14x96xf32> -> vector<14x96xf32>
    %273 = vector.broadcast %270 : vector<1x96xf32> to vector<14x96xf32>
    %274 = arith.addf %272, %273 : vector<14x96xf32>
    %275 = vector.extract_strided_slice %274 {offsets = [0, 0], sizes = [14, 32], strides = [1, 1]} : vector<14x96xf32> to vector<14x32xf32>
    %276 = vector.extract_strided_slice %274 {offsets = [0, 32], sizes = [14, 32], strides = [1, 1]} : vector<14x96xf32> to vector<14x32xf32>
    %277 = vector.extract_strided_slice %274 {offsets = [0, 64], sizes = [14, 32], strides = [1, 1]} : vector<14x96xf32> to vector<14x32xf32>
    %278 = vector.extract_strided_slice %275 {offsets = [0, 0], sizes = [14, 8], strides = [1, 1]} : vector<14x32xf32> to vector<14x8xf32>
    %279 = vector.extract_strided_slice %275 {offsets = [0, 8], sizes = [14, 8], strides = [1, 1]} : vector<14x32xf32> to vector<14x8xf32>
    %280 = vector.extract_strided_slice %275 {offsets = [0, 16], sizes = [14, 8], strides = [1, 1]} : vector<14x32xf32> to vector<14x8xf32>
    %281 = vector.extract_strided_slice %275 {offsets = [0, 24], sizes = [14, 8], strides = [1, 1]} : vector<14x32xf32> to vector<14x8xf32>
    %282 = vector.shape_cast %278 : vector<14x8xf32> to vector<1x14x8xf32>
    %283 = vector.shape_cast %279 : vector<14x8xf32> to vector<1x14x8xf32>
    %284 = vector.shape_cast %280 : vector<14x8xf32> to vector<1x14x8xf32>
    %285 = vector.shape_cast %281 : vector<14x8xf32> to vector<1x14x8xf32>
    %286 = tpu.concatenate %282, %283, %284, %285 in 0 : vector<1x14x8xf32>, vector<1x14x8xf32>, vector<1x14x8xf32>, vector<1x14x8xf32> -> vector<4x14x8xf32>
    %287 = vector.extract_strided_slice %276 {offsets = [0, 0], sizes = [14, 8], strides = [1, 1]} : vector<14x32xf32> to vector<14x8xf32>
    %288 = vector.extract_strided_slice %276 {offsets = [0, 8], sizes = [14, 8], strides = [1, 1]} : vector<14x32xf32> to vector<14x8xf32>
    %289 = vector.extract_strided_slice %276 {offsets = [0, 16], sizes = [14, 8], strides = [1, 1]} : vector<14x32xf32> to vector<14x8xf32>
    %290 = vector.extract_strided_slice %276 {offsets = [0, 24], sizes = [14, 8], strides = [1, 1]} : vector<14x32xf32> to vector<14x8xf32>
    %291 = vector.shape_cast %287 : vector<14x8xf32> to vector<1x14x8xf32>
    %292 = vector.shape_cast %288 : vector<14x8xf32> to vector<1x14x8xf32>
    %293 = vector.shape_cast %289 : vector<14x8xf32> to vector<1x14x8xf32>
    %294 = vector.shape_cast %290 : vector<14x8xf32> to vector<1x14x8xf32>
    %295 = tpu.concatenate %291, %292, %293, %294 in 0 : vector<1x14x8xf32>, vector<1x14x8xf32>, vector<1x14x8xf32>, vector<1x14x8xf32> -> vector<4x14x8xf32>
    %296 = vector.extract_strided_slice %277 {offsets = [0, 0], sizes = [14, 8], strides = [1, 1]} : vector<14x32xf32> to vector<14x8xf32>
    %297 = vector.extract_strided_slice %277 {offsets = [0, 8], sizes = [14, 8], strides = [1, 1]} : vector<14x32xf32> to vector<14x8xf32>
    %298 = vector.extract_strided_slice %277 {offsets = [0, 16], sizes = [14, 8], strides = [1, 1]} : vector<14x32xf32> to vector<14x8xf32>
    %299 = vector.extract_strided_slice %277 {offsets = [0, 24], sizes = [14, 8], strides = [1, 1]} : vector<14x32xf32> to vector<14x8xf32>
    %300 = vector.shape_cast %296 : vector<14x8xf32> to vector<1x14x8xf32>
    %301 = vector.shape_cast %297 : vector<14x8xf32> to vector<1x14x8xf32>
    %302 = vector.shape_cast %298 : vector<14x8xf32> to vector<1x14x8xf32>
    %303 = vector.shape_cast %299 : vector<14x8xf32> to vector<1x14x8xf32>
    %304 = tpu.concatenate %300, %301, %302, %303 in 0 : vector<1x14x8xf32>, vector<1x14x8xf32>, vector<1x14x8xf32>, vector<1x14x8xf32> -> vector<4x14x8xf32>
    %305 = arith.truncf %286 : vector<4x14x8xf32> to vector<4x14x8xbf16>
    %306 = arith.truncf %295 : vector<4x14x8xf32> to vector<4x14x8xbf16>
    "tpu.trace_start"() <{level = 10 : i32, message = "bqd,bkd->bqk"}> : () -> ()
    %cst_73 = arith.constant dense<0.000000e+00> : vector<4x14x14xf32>
    %307 = tpu.matmul %305, %306, %cst_73 {dimension_numbers = #tpu.dot_dimension_numbers<[2], [2], [1], [1], [0, 0, 0, 1, 1, 1], [0], [0]>} : vector<4x14x8xbf16>, vector<4x14x8xbf16>, vector<4x14x14xf32> -> vector<4x14x14xf32>
    "tpu.trace_stop"() : () -> ()
    %cst_74 = arith.constant 0.353553385 : f32
    %308 = vector.broadcast %cst_74 : f32 to vector<4x14x14xf32>
    %309 = arith.mulf %307, %308 : vector<4x14x14xf32>
    %cst_75 = arith.constant dense<0xFF800000> : vector<4x14xf32>
    %310 = vector.multi_reduction <maximumf>, %309, %cst_75 [2] : vector<4x14x14xf32> to vector<4x14xf32>
    %311 = vector.shape_cast %310 : vector<4x14xf32> to vector<4x14x1xf32>
    %312 = vector.broadcast %311 : vector<4x14x1xf32> to vector<4x14x14xf32>
    %313 = arith.subf %309, %312 : vector<4x14x14xf32>
    %314 = math.exp %313 : vector<4x14x14xf32>
    %cst_76 = arith.constant dense<0.000000e+00> : vector<4x14xf32>
    %315 = vector.multi_reduction <add>, %314, %cst_76 [2] : vector<4x14x14xf32> to vector<4x14xf32>
    %316 = vector.shape_cast %315 : vector<4x14xf32> to vector<4x14x1xf32>
    %317 = tpu.reciprocal %316 {approx = true} : vector<4x14x1xf32> -> vector<4x14x1xf32>
    %318 = vector.broadcast %317 : vector<4x14x1xf32> to vector<4x14x14xf32>
    %319 = arith.mulf %314, %318 : vector<4x14x14xf32>
    %320 = arith.truncf %319 : vector<4x14x14xf32> to vector<4x14x14xbf16>
    %321 = arith.truncf %304 : vector<4x14x8xf32> to vector<4x14x8xbf16>
    "tpu.trace_start"() <{level = 10 : i32, message = "bqk,bkd->bqd"}> : () -> ()
    %cst_77 = arith.constant dense<0.000000e+00> : vector<4x14x8xf32>
    %322 = tpu.matmul %320, %321, %cst_77 {dimension_numbers = #tpu.dot_dimension_numbers<[2], [1], [1], [2], [0, 0, 0, 1, 1, 2], [0], [0]>} : vector<4x14x14xbf16>, vector<4x14x8xbf16>, vector<4x14x8xf32> -> vector<4x14x8xf32>
    "tpu.trace_stop"() : () -> ()
    %323 = vector.extract_strided_slice %322 {offsets = [0, 0, 0], sizes = [1, 14, 8], strides = [1, 1, 1]} : vector<4x14x8xf32> to vector<1x14x8xf32>
    %324 = vector.shape_cast %323 : vector<1x14x8xf32> to vector<14x8xf32>
    %325 = vector.extract_strided_slice %322 {offsets = [1, 0, 0], sizes = [1, 14, 8], strides = [1, 1, 1]} : vector<4x14x8xf32> to vector<1x14x8xf32>
    %326 = vector.shape_cast %325 : vector<1x14x8xf32> to vector<14x8xf32>
    %327 = vector.extract_strided_slice %322 {offsets = [2, 0, 0], sizes = [1, 14, 8], strides = [1, 1, 1]} : vector<4x14x8xf32> to vector<1x14x8xf32>
    %328 = vector.shape_cast %327 : vector<1x14x8xf32> to vector<14x8xf32>
    %329 = vector.extract_strided_slice %322 {offsets = [3, 0, 0], sizes = [1, 14, 8], strides = [1, 1, 1]} : vector<4x14x8xf32> to vector<1x14x8xf32>
    %330 = vector.shape_cast %329 : vector<1x14x8xf32> to vector<14x8xf32>
    %331 = tpu.concatenate %324, %326, %328, %330 in 1 : vector<14x8xf32>, vector<14x8xf32>, vector<14x8xf32>, vector<14x8xf32> -> vector<14x32xf32>
    %c0_78 = arith.constant 0 : index
    %c0_79 = arith.constant 0 : index
    %332 = vector.load %arg15[%c0_78, %c0_79] : memref<32x32xbf16, #tpu.memory_space<vmem>>, vector<32x32xbf16>
    %333 = arith.truncf %331 : vector<14x32xf32> to vector<14x32xbf16>
    %cst_80 = arith.constant dense<0.000000e+00> : vector<14x32xf32>
    %334 = tpu.matmul %333, %332, %cst_80 {dimension_numbers = #tpu.dot_dimension_numbers<[1], [0], [0], [1], [0, 0, 1, 1], [], []>} : vector<14x32xbf16>, vector<32x32xbf16>, vector<14x32xf32> -> vector<14x32xf32>
    %c0_81 = arith.constant 0 : index
    %c0_82 = arith.constant 0 : index
    %335 = vector.load %arg16[%c0_81, %c0_82] : memref<1x32xf32, #tpu.memory_space<vmem>>, vector<1x32xf32>
    %336 = vector.broadcast %335 : vector<1x32xf32> to vector<14x32xf32>
    %337 = arith.addf %334, %336 : vector<14x32xf32>
    %338 = arith.addf %268, %337 : vector<14x32xf32>
    %339 = vector.extract_strided_slice %1 {offsets = [6, 0], sizes = [1, 32], strides = [1, 1]} : vector<8x32xf32> to vector<1x32xf32>
    %340 = vector.extract_strided_slice %1 {offsets = [7, 0], sizes = [1, 32], strides = [1, 1]} : vector<8x32xf32> to vector<1x32xf32>
    %cst_83 = arith.constant dense<0.000000e+00> : vector<14xf32>
    %341 = vector.multi_reduction <add>, %338, %cst_83 [1] : vector<14x32xf32> to vector<14xf32>
    %342 = vector.shape_cast %341 : vector<14xf32> to vector<14x1xf32>
    %cst_84 = arith.constant 3.200000e+01 : f32
    %343 = vector.broadcast %cst_84 : f32 to vector<14x1xf32>
    %344 = arith.divf %342, %343 : vector<14x1xf32>
    %345 = vector.broadcast %344 : vector<14x1xf32> to vector<14x32xf32>
    %346 = arith.subf %338, %345 : vector<14x32xf32>
    %347 = arith.mulf %346, %346 : vector<14x32xf32>
    %cst_85 = arith.constant dense<0.000000e+00> : vector<14xf32>
    %348 = vector.multi_reduction <add>, %347, %cst_85 [1] : vector<14x32xf32> to vector<14xf32>
    %349 = vector.shape_cast %348 : vector<14xf32> to vector<14x1xf32>
    %cst_86 = arith.constant 3.200000e+01 : f32
    %350 = vector.broadcast %cst_86 : f32 to vector<14x1xf32>
    %351 = arith.divf %349, %350 : vector<14x1xf32>
    %352 = vector.broadcast %344 : vector<14x1xf32> to vector<14x32xf32>
    %353 = arith.subf %338, %352 : vector<14x32xf32>
    %cst_87 = arith.constant 9.99999974E-6 : f32
    %354 = vector.broadcast %cst_87 : f32 to vector<14x1xf32>
    %355 = arith.addf %351, %354 : vector<14x1xf32>
    %356 = math.rsqrt %355 : vector<14x1xf32>
    %357 = vector.broadcast %356 : vector<14x1xf32> to vector<14x32xf32>
    %358 = arith.mulf %353, %357 : vector<14x32xf32>
    %359 = vector.broadcast %339 : vector<1x32xf32> to vector<14x32xf32>
    %360 = arith.mulf %358, %359 : vector<14x32xf32>
    %361 = vector.broadcast %340 : vector<1x32xf32> to vector<14x32xf32>
    %362 = arith.addf %360, %361 : vector<14x32xf32>
    %363 = vector.shape_cast %362 : vector<14x32xf32> to vector<1x14x32xf32>
    %c0_88 = arith.constant 0 : index
    %c0_89 = arith.constant 0 : index
    %c0_90 = arith.constant 0 : index
    %364 = vector.load %arg22[%c0_88, %c0_89, %c0_90] : memref<1x14x32xf32, #tpu.memory_space<vmem>>, vector<1x14x32xf32>
    tpu.vector_store %arg22[%c0_88, %c0_89, %c0_90], %363 {strides = array<i32>} : memref<1x14x32xf32, #tpu.memory_space<vmem>>, vector<1x14x32xf32>,
    %cst_91 = arith.constant 0.000000e+00 : f32
    %365 = vector.broadcast %cst_91 : f32 to vector<1x14x112xf32>
    %366 = tpu.concatenate %204, %365 in 2 : vector<1x14x16xf32>, vector<1x14x112xf32> -> vector<1x14x128xf32>
    %c0_92 = arith.constant 0 : index
    %c0_93 = arith.constant 0 : index
    %c0_94 = arith.constant 0 : index
    %367 = vector.load %arg23[%c0_92, %c0_93, %c0_94] : memref<1x14x128xf32, #tpu.memory_space<vmem>>, vector<1x14x128xf32>
    tpu.vector_store %arg23[%c0_92, %c0_93, %c0_94], %366 {strides = array<i32>} : memref<1x14x128xf32, #tpu.memory_space<vmem>>, vector<1x14x128xf32>,
    return
  }
  func.func @transform_0(%arg0: i32, %arg1: memref<2xi32, #tpu.memory_space<smem>>) -> (i32, i32, i32) {
    %c0_i32 = arith.constant 0 : i32
    %c0_i32_0 = arith.constant 0 : i32
    %c0_i32_1 = arith.constant 0 : i32
    return %arg0, %c0_i32, %c0_i32_0 : i32, i32, i32
  }
  func.func @transform_1(%arg0: i32, %arg1: memref<2xi32, #tpu.memory_space<smem>>) -> (i32, i32, i32) {
    %c0_i32 = arith.constant 0 : i32
    %c0_i32_0 = arith.constant 0 : i32
    %c0_i32_1 = arith.constant 0 : i32
    return %arg0, %c0_i32, %c0_i32_0 : i32, i32, i32
  }
  func.func @transform_2(%arg0: i32, %arg1: memref<2xi32, #tpu.memory_space<smem>>) -> (i32, i32, i32) {
    %c0_i32 = arith.constant 0 : i32
    %c0_i32_0 = arith.constant 0 : i32
    %c0_i32_1 = arith.constant 0 : i32
    return %arg0, %c0_i32, %c0_i32_0 : i32, i32, i32
  }
  func.func @transform_3(%arg0: i32, %arg1: memref<2xi32, #tpu.memory_space<smem>>) -> (i32, i32) {
    %c0_i32 = arith.constant 0 : i32
    %c0_i32_0 = arith.constant 0 : i32
    %c0_i32_1 = arith.constant 0 : i32
    return %c0_i32, %c0_i32_0 : i32, i32
  }
  func.func @transform_4(%arg0: i32, %arg1: memref<2xi32, #tpu.memory_space<smem>>) -> (i32, i32) {
    %c0_i32 = arith.constant 0 : i32
    %c0_i32_0 = arith.constant 0 : i32
    %c0_i32_1 = arith.constant 0 : i32
    return %c0_i32, %c0_i32_0 : i32, i32
  }
  func.func @transform_5(%arg0: i32, %arg1: memref<2xi32, #tpu.memory_space<smem>>) -> (i32, i32) {
    %c0_i32 = arith.constant 0 : i32
    %c0_i32_0 = arith.constant 0 : i32
    %c0_i32_1 = arith.constant 0 : i32
    return %c0_i32, %c0_i32_0 : i32, i32
  }
  func.func @transform_6(%arg0: i32, %arg1: memref<2xi32, #tpu.memory_space<smem>>) -> (i32, i32) {
    %c0_i32 = arith.constant 0 : i32
    %c0_i32_0 = arith.constant 0 : i32
    %c0_i32_1 = arith.constant 0 : i32
    return %c0_i32, %c0_i32_0 : i32, i32
  }
  func.func @transform_7(%arg0: i32, %arg1: memref<2xi32, #tpu.memory_space<smem>>) -> (i32, i32) {
    %c0_i32 = arith.constant 0 : i32
    %c0_i32_0 = arith.constant 0 : i32
    %c0_i32_1 = arith.constant 0 : i32
    return %c0_i32, %c0_i32_0 : i32, i32
  }
  func.func @transform_8(%arg0: i32, %arg1: memref<2xi32, #tpu.memory_space<smem>>) -> (i32, i32) {
    %c0_i32 = arith.constant 0 : i32
    %c0_i32_0 = arith.constant 0 : i32
    %c0_i32_1 = arith.constant 0 : i32
    return %c0_i32, %c0_i32_0 : i32, i32
  }
  func.func @transform_9(%arg0: i32, %arg1: memref<2xi32, #tpu.memory_space<smem>>) -> (i32, i32) {
    %c0_i32 = arith.constant 0 : i32
    %c0_i32_0 = arith.constant 0 : i32
    %c0_i32_1 = arith.constant 0 : i32
    return %c0_i32, %c0_i32_0 : i32, i32
  }
  func.func @transform_10(%arg0: i32, %arg1: memref<2xi32, #tpu.memory_space<smem>>) -> (i32, i32) {
    %c0_i32 = arith.constant 0 : i32
    %c0_i32_0 = arith.constant 0 : i32
    %c0_i32_1 = arith.constant 0 : i32
    return %c0_i32, %c0_i32_0 : i32, i32
  }
  func.func @transform_11(%arg0: i32, %arg1: memref<2xi32, #tpu.memory_space<smem>>) -> (i32, i32) {
    %c0_i32 = arith.constant 0 : i32
    %c0_i32_0 = arith.constant 0 : i32
    %c0_i32_1 = arith.constant 0 : i32
    return %c0_i32, %c0_i32_0 : i32, i32
  }
  func.func @transform_12(%arg0: i32, %arg1: memref<2xi32, #tpu.memory_space<smem>>) -> (i32, i32) {
    %c0_i32 = arith.constant 0 : i32
    %c0_i32_0 = arith.constant 0 : i32
    %c0_i32_1 = arith.constant 0 : i32
    return %c0_i32, %c0_i32_0 : i32, i32
  }
  func.func @transform_13(%arg0: i32, %arg1: memref<2xi32, #tpu.memory_space<smem>>) -> (i32, i32) {
    %c0_i32 = arith.constant 0 : i32
    %c0_i32_0 = arith.constant 0 : i32
    %c0_i32_1 = arith.constant 0 : i32
    return %c0_i32, %c0_i32_0 : i32, i32
  }
  func.func @transform_14(%arg0: i32, %arg1: memref<2xi32, #tpu.memory_space<smem>>) -> (i32, i32) {
    %c0_i32 = arith.constant 0 : i32
    %c0_i32_0 = arith.constant 0 : i32
    %c0_i32_1 = arith.constant 0 : i32
    return %c0_i32, %c0_i32_0 : i32, i32
  }
  func.func @transform_15(%arg0: i32, %arg1: memref<2xi32, #tpu.memory_space<smem>>) -> (i32, i32) {
    %c0_i32 = arith.constant 0 : i32
    %c0_i32_0 = arith.constant 0 : i32
    %c0_i32_1 = arith.constant 0 : i32
    return %c0_i32, %c0_i32_0 : i32, i32
  }
  func.func @transform_16(%arg0: i32, %arg1: memref<2xi32, #tpu.memory_space<smem>>) -> (i32, i32) {
    %c0_i32 = arith.constant 0 : i32
    %c0_i32_0 = arith.constant 0 : i32
    %c0_i32_1 = arith.constant 0 : i32
    return %c0_i32, %c0_i32_0 : i32, i32
  }
  func.func @transform_17(%arg0: i32, %arg1: memref<2xi32, #tpu.memory_space<smem>>) -> (i32, i32) {
    %c0_i32 = arith.constant 0 : i32
    %c0_i32_0 = arith.constant 0 : i32
    %c0_i32_1 = arith.constant 0 : i32
    return %c0_i32, %c0_i32_0 : i32, i32
  }
  func.func @transform_18(%arg0: i32, %arg1: memref<2xi32, #tpu.memory_space<smem>>) -> (i32, i32) {
    %c0_i32 = arith.constant 0 : i32
    %c0_i32_0 = arith.constant 0 : i32
    %c0_i32_1 = arith.constant 0 : i32
    return %c0_i32, %c0_i32_0 : i32, i32
  }
  func.func @transform_19(%arg0: i32, %arg1: memref<2xi32, #tpu.memory_space<smem>>) -> (i32, i32) {
    %c0_i32 = arith.constant 0 : i32
    %c0_i32_0 = arith.constant 0 : i32
    %c0_i32_1 = arith.constant 0 : i32
    return %c0_i32, %c0_i32_0 : i32, i32
  }
  func.func @transform_20(%arg0: i32, %arg1: memref<2xi32, #tpu.memory_space<smem>>) -> (i32, i32, i32) {
    %c0_i32 = arith.constant 0 : i32
    %c0_i32_0 = arith.constant 0 : i32
    %c0_i32_1 = arith.constant 0 : i32
    return %arg0, %c0_i32, %c0_i32_0 : i32, i32, i32
  }
  func.func @transform_21(%arg0: i32, %arg1: memref<2xi32, #tpu.memory_space<smem>>) -> (i32, i32, i32) {
    %c0_i32 = arith.constant 0 : i32
    %c0_i32_0 = arith.constant 0 : i32
    %c0_i32_1 = arith.constant 0 : i32
    return %arg0, %c0_i32, %c0_i32_0 : i32, i32, i32
  }
}

</mosaic_0001>

<llo_original>
// kernel: tpu_custom_call.1
$region0: #{tpu_custom_call.1}
  #allocation0 [shape = 'u32[]', space=smem, size = 0x4, offset = 0x4, fixed_abs, tag = 'smem constant byte address 0x4 - core index']
  #allocation1 [shape = 'u32[144,128]{1,0:T(1,128)}', space=vmem, size = 0x12000, scoped, tag = 'internal scratch']
  #allocation2 [shape = 's32[1]{0}', space=sflag, size = 0x4, scoped, tag = 'scoped memory for tpu_custom_call.1']
  #allocation3 [shape = 'u8[512]{0}', space=smem, size = 0x200, scoped, tag = 'prefetched SMEM operand 0']
  %s0 = inlined_call_operand.vmem [shape: s32[2], index: 0, kind: input, shape index: {}]
  %s1 = inlined_call_operand.vmem [shape: f32[2,14,32], index: 1, kind: input, shape index: {}]
  %s2 = inlined_call_operand.vmem [shape: f32[2,16,32], index: 2, kind: input, shape index: {}]
  %s3 = inlined_call_operand.vmem [shape: f32[2,8,32], index: 3, kind: input, shape index: {}]
  %s4 = inlined_call_operand.vmem [shape: bf16[32,96], index: 4, kind: input, shape index: {}]
  %s5 = inlined_call_operand.hbm [shape: f32[1,96], index: 5, kind: input, shape index: {}]
  %s6 = inlined_call_operand.vmem [shape: bf16[32,32], index: 6, kind: input, shape index: {}]
  %s7 = inlined_call_operand.hbm [shape: f32[1,32], index: 7, kind: input, shape index: {}]
  %s8 = inlined_call_operand.vmem [shape: bf16[32,96], index: 8, kind: input, shape index: {}]
  %s9 = inlined_call_operand.hbm [shape: f32[1,96], index: 9, kind: input, shape index: {}]
  %s10 = inlined_call_operand.vmem [shape: bf16[32,32], index: 10, kind: input, shape index: {}]
  %s11 = inlined_call_operand.hbm [shape: f32[1,32], index: 11, kind: input, shape index: {}]
  %s12 = inlined_call_operand.vmem [shape: bf16[32,96], index: 12, kind: input, shape index: {}]
  %s13 = inlined_call_operand.vmem [shape: f32[1,96], index: 13, kind: input, shape index: {}]
  %s14 = inlined_call_operand.vmem [shape: bf16[32,32], index: 14, kind: input, shape index: {}]
  %s15 = inlined_call_operand.vmem [shape: f32[1,32], index: 15, kind: input, shape index: {}]
  %s16 = inlined_call_operand.vmem [shape: bf16[32,128], index: 16, kind: input, shape index: {}]
  %s17 = inlined_call_operand.vmem [shape: f32[1,128], index: 17, kind: input, shape index: {}]
  %s18 = inlined_call_operand.vmem [shape: bf16[128,32], index: 18, kind: input, shape index: {}]
  %s19 = inlined_call_operand.vmem [shape: f32[1,32], index: 19, kind: input, shape index: {}]
  %s20 = inlined_call_operand.vmem [shape: f32[8,32], index: 20, kind: input, shape index: {}]
  %s21 = inlined_call_operand.vmem [shape: f32[2,14,32], index: 21, kind: output, shape index: {0}]
  %s22 = inlined_call_operand.vmem [shape: f32[2,14,128], index: 22, kind: output, shape index: {1}]
  %23 = xla_tuple %s21, %s22
  %s24 = sld [smem:[#allocation0]]
  $region137: #{tpu_custom_call.1} parent=0
    _
  %s26 = ssub.s32 1, %s24
  %s27 = scalar_select 0, %s26, %s24
  %s28 = sshll.u32 %s0, 4
  %s29 = int_to_ptr.vmem [resolvable:$true] %s28
  %31 = dma.vmem_to_smem %s29, 16, [#allocation3], [#allocation2]
  %32 = dma.done [#allocation2], 16
  %33 = sfence
  $region1: #{tpu_custom_call.1} parent=0
    #allocation4 [shape = 'u8[512]{0}', space=vmem, size = 0x400, scoped, tag = 'input window, operand 5, single buffered']
    #allocation5 [shape = 's32[2]{0}', space=sflag, size = 0x8, scoped, tag = 'scoped memory for tpu_custom_call.1']
    #allocation6 [shape = 'u8[512]{0}', space=vmem, size = 0x400, scoped, tag = 'input window, operand 7, single buffered']
    #allocation7 [shape = 's32[1]{0}', space=sflag, size = 0x4, scoped, tag = 'scoped memory for tpu_custom_call.1']
    #allocation8 [shape = 'u8[512]{0}', space=vmem, size = 0x400, scoped, tag = 'input window, operand 9, single buffered']
    #allocation9 [shape = 'u8[512]{0}', space=vmem, size = 0x400, scoped, tag = 'input window, operand 11, single buffered']
    #allocation10 [shape = 's32[1]{0}', space=sflag, size = 0x4, scoped, tag = 'scoped memory for tpu_custom_call.1']
    %34 = vsyncpa [#allocation5], 0
    %35 = vsyncpa [#allocation7], 0
    %36 = vsyncpa [#allocation10], 0
    loop: start=0, step=1, limit=4
    $region2: #{tpu_custom_call.1} parent=1 // loop_pre_header
      _
    $region3: #{tpu_custom_call.1} parent=1 // loop_header
      %s38 = sphi 0, %s42
      %p39 = scmp.ge.s32.totalorder %s38, 4
      %s48 = sphi 0, %s50
      %s51 = sphi 0, %s48
      %s52 = sphi 0, %s51
      %s68 = sphi 0, %s52
      %s74 = sphi 0, %s76
      %s77 = sphi 0, %s74
      %s78 = sphi 0, %s77
      %s94 = sphi 0, %s78
      %s100 = sphi 0, %s102
      %s103 = sphi 0, %s100
      %s104 = sphi 0, %s103
      %s120 = sphi 0, %s104
      %s124 = sphi 0, %s124
      %s126 = sphi 0, %s124
      %s127 = sphi 0, %s126
      %s141 = sphi 0, %s127
      %s145 = sphi 0, %s145
      %s147 = sphi 0, %s145
      %s148 = sphi 0, %s147
      %s162 = sphi 0, %s148
      %s166 = sphi 0, %s166
      %s168 = sphi 0, %s166
      %s169 = sphi 0, %s168
      %s183 = sphi 0, %s169
      %s187 = sphi 0, %s187
      %s189 = sphi 0, %s187
      %s190 = sphi 0, %s189
      %s204 = sphi 0, %s190
      %s208 = sphi 0, %s208
      %s210 = sphi 0, %s208
      %s211 = sphi 0, %s210
      %s225 = sphi 0, %s211
      %s229 = sphi 0, %s229
      %s231 = sphi 0, %s229
      %s232 = sphi 0, %s231
      %s246 = sphi 0, %s232
      %s250 = sphi 0, %s250
      %s252 = sphi 0, %s250
      %s253 = sphi 0, %s252
      %s267 = sphi 0, %s253
      %s271 = sphi 0, %s271
      %s273 = sphi 0, %s271
      %s274 = sphi 0, %s273
      %s288 = sphi 0, %s274
      %s292 = sphi 0, %s292
      %s294 = sphi 0, %s292
      %s295 = sphi 0, %s294
      %s309 = sphi 0, %s295
      %s313 = sphi 0, %s313
      %s315 = sphi 0, %s313
      %s316 = sphi 0, %s315
      %s330 = sphi 0, %s316
      %s334 = sphi 0, %s334
      %s336 = sphi 0, %s334
      %s337 = sphi 0, %s336
      %s351 = sphi 0, %s337
      %s355 = sphi 0, %s355
      %s357 = sphi 0, %s355
      %s358 = sphi 0, %s357
      %s372 = sphi 0, %s358
      %s376 = sphi 0, %s376
      %s378 = sphi 0, %s376
      %s379 = sphi 0, %s378
      %s393 = sphi 0, %s379
      %s397 = sphi 0, %s397
      %s399 = sphi 0, %s397
      %s400 = sphi 0, %s399
      %s414 = sphi 0, %s400
      %s418 = sphi 0, %s418
      %s420 = sphi 0, %s418
      %s421 = sphi 0, %s420
      %s435 = sphi 0, %s421
      %s439 = sphi 0, %s439
      %s441 = sphi 0, %s439
      %s442 = sphi 0, %s441
      %s456 = sphi 0, %s442
      %s460 = sphi 0, %s460
      %s462 = sphi 0, %s460
      %s463 = sphi 0, %s462
      %s477 = sphi 0, %s463
      %s483 = sphi 0, %s485
      %s486 = sphi 0, %s483
      %s487 = sphi 0, %s486
      %s503 = sphi 0, %s487
      %s509 = sphi 0, %s511
      %s512 = sphi 0, %s509
      %s513 = sphi 0, %s512
      %s529 = sphi 0, %s513
    $region4: #{tpu_custom_call.1} parent=1 // loop_header_branch
      %41 = sbr.rel (%p39) target = $region8
    $region5: #{tpu_custom_call.1} parent=1 // loop_body
      %s43 = ssub.s32 %s38, 1
      %s44 = ssub.s32 %s38, 2
      %s45 = sadd.s32 %s38, 1
      %s46 = ssub.s32 %s38, %s45
      %p47 = scmp.eq.s32.totalorder %s46, 0
      %s49 = sadd.s32 %s48, 1
      %s50 = scalar_select %p47, %s48, %s49
      %p53 = pneg %p47
      %p54 = scmp.eq.s32.totalorder %s38, 1
      %p55 = por %p53, %p54
      %p56 = scmp.ne.s32.totalorder %s48, %s51
      %p57 = scmp.eq.s32.totalorder %s38, 0
      %p58 = por %p56, %p57
      %p59 = scmp.ne.s32.totalorder %s48, %s51
      %p60 = scmp.eq.s32.totalorder %s43, 1
      %p61 = por %p59, %p60
      %p62 = scmp.ne.s32.totalorder %s51, %s52
      %p63 = scmp.eq.s32.totalorder %s43, 0
      %p64 = por %p62, %p63
      %p65 = scmp.ne.s32.totalorder %s51, %s52
      %p66 = scmp.eq.s32.totalorder %s44, 1
      %p67 = por %p65, %p66
      %p69 = scmp.ne.s32.totalorder %s52, %s68
      %p70 = scmp.eq.s32.totalorder %s44, 0
      %p71 = por %p69, %p70
      %s72 = ssub.s32 %s38, %s45
      %p73 = scmp.eq.s32.totalorder %s72, 0
      %s75 = sadd.s32 %s74, 1
      %s76 = scalar_select %p73, %s74, %s75
      %p79 = pneg %p73
      %p80 = scmp.eq.s32.totalorder %s38, 1
      %p81 = por %p79, %p80
      %p82 = scmp.ne.s32.totalorder %s74, %s77
      %p83 = scmp.eq.s32.totalorder %s38, 0
      %p84 = por %p82, %p83
      %p85 = scmp.ne.s32.totalorder %s74, %s77
      %p86 = scmp.eq.s32.totalorder %s43, 1
      %p87 = por %p85, %p86
      %p88 = scmp.ne.s32.totalorder %s77, %s78
      %p89 = scmp.eq.s32.totalorder %s43, 0
      %p90 = por %p88, %p89
      %p91 = scmp.ne.s32.totalorder %s77, %s78
      %p92 = scmp.eq.s32.totalorder %s44, 1
      %p93 = por %p91, %p92
      %p95 = scmp.ne.s32.totalorder %s78, %s94
      %p96 = scmp.eq.s32.totalorder %s44, 0
      %p97 = por %p95, %p96
      %s98 = ssub.s32 %s38, %s45
      %p99 = scmp.eq.s32.totalorder %s98, 0
      %s101 = sadd.s32 %s100, 1
      %s102 = scalar_select %p99, %s100, %s101
      %p105 = pneg %p99
      %p106 = scmp.eq.s32.totalorder %s38, 1
      %p107 = por %p105, %p106
      %p108 = scmp.ne.s32.totalorder %s100, %s103
      %p109 = scmp.eq.s32.totalorder %s38, 0
      %p110 = por %p108, %p109
      %p111 = scmp.ne.s32.totalorder %s100, %s103
      %p112 = scmp.eq.s32.totalorder %s43, 1
      %p113 = por %p111, %p112
      %p114 = scmp.ne.s32.totalorder %s103, %s104
      %p115 = scmp.eq.s32.totalorder %s43, 0
      %p116 = por %p114, %p115
      %p117 = scmp.ne.s32.totalorder %s103, %s104
      %p118 = scmp.eq.s32.totalorder %s44, 1
      %p119 = por %p117, %p118
      %p121 = scmp.ne.s32.totalorder %s104, %s120
      %p122 = scmp.eq.s32.totalorder %s44, 0
      %p123 = por %p121, %p122
      %s125 = sadd.s32 %s124, 1
      %p128 = scmp.eq.s32.totalorder %s38, 1
      %p129 = scmp.ne.s32.totalorder %s124, %s126
      %p130 = scmp.eq.s32.totalorder %s38, 0
      %p131 = por %p129, %p130
      %p132 = scmp.ne.s32.totalorder %s124, %s126
      %p133 = scmp.eq.s32.totalorder %s43, 1
      %p134 = por %p132, %p133
      %p135 = scmp.ne.s32.totalorder %s126, %s127
      %p136 = scmp.eq.s32.totalorder %s43, 0
      %p137 = por %p135, %p136
      %p138 = scmp.ne.s32.totalorder %s126, %s127
      %p139 = scmp.eq.s32.totalorder %s44, 1
      %p140 = por %p138, %p139
      %p142 = scmp.ne.s32.totalorder %s127, %s141
      %p143 = scmp.eq.s32.totalorder %s44, 0
      %p144 = por %p142, %p143
      %s146 = sadd.s32 %s145, 1
      %p149 = scmp.eq.s32.totalorder %s38, 1
      %p150 = scmp.ne.s32.totalorder %s145, %s147
      %p151 = scmp.eq.s32.totalorder %s38, 0
      %p152 = por %p150, %p151
      %p153 = scmp.ne.s32.totalorder %s145, %s147
      %p154 = scmp.eq.s32.totalorder %s43, 1
      %p155 = por %p153, %p154
      %p156 = scmp.ne.s32.totalorder %s147, %s148
      %p157 = scmp.eq.s32.totalorder %s43, 0
      %p158 = por %p156, %p157
      %p159 = scmp.ne.s32.totalorder %s147, %s148
      %p160 = scmp.eq.s32.totalorder %s44, 1
      %p161 = por %p159, %p160
      %p163 = scmp.ne.s32.totalorder %s148, %s162
      %p164 = scmp.eq.s32.totalorder %s44, 0
      %p165 = por %p163, %p164
      %s167 = sadd.s32 %s166, 1
      %p170 = scmp.eq.s32.totalorder %s38, 1
      %p171 = scmp.ne.s32.totalorder %s166, %s168
      %p172 = scmp.eq.s32.totalorder %s38, 0
      %p173 = por %p171, %p172
      %p174 = scmp.ne.s32.totalorder %s166, %s168
      %p175 = scmp.eq.s32.totalorder %s43, 1
      %p176 = por %p174, %p175
      %p177 = scmp.ne.s32.totalorder %s168, %s169
      %p178 = scmp.eq.s32.totalorder %s43, 0
      %p179 = por %p177, %p178
      %p180 = scmp.ne.s32.totalorder %s168, %s169
      %p181 = scmp.eq.s32.totalorder %s44, 1
      %p182 = por %p180, %p181
      %p184 = scmp.ne.s32.totalorder %s169, %s183
      %p185 = scmp.eq.s32.totalorder %s44, 0
      %p186 = por %p184, %p185
      %s188 = sadd.s32 %s187, 1
      %p191 = scmp.eq.s32.totalorder %s38, 1
      %p192 = scmp.ne.s32.totalorder %s187, %s189
      %p193 = scmp.eq.s32.totalorder %s38, 0
      %p194 = por %p192, %p193
      %p195 = scmp.ne.s32.totalorder %s187, %s189
      %p196 = scmp.eq.s32.totalorder %s43, 1
      %p197 = por %p195, %p196
      %p198 = scmp.ne.s32.totalorder %s189, %s190
      %p199 = scmp.eq.s32.totalorder %s43, 0
      %p200 = por %p198, %p199
      %p201 = scmp.ne.s32.totalorder %s189, %s190
      %p202 = scmp.eq.s32.totalorder %s44, 1
      %p203 = por %p201, %p202
      %p205 = scmp.ne.s32.totalorder %s190, %s204
      %p206 = scmp.eq.s32.totalorder %s44, 0
      %p207 = por %p205, %p206
      %s209 = sadd.s32 %s208, 1
      %p212 = scmp.eq.s32.totalorder %s38, 1
      %p213 = scmp.ne.s32.totalorder %s208, %s210
      %p214 = scmp.eq.s32.totalorder %s38, 0
      %p215 = por %p213, %p214
      %p216 = scmp.ne.s32.totalorder %s208, %s210
      %p217 = scmp.eq.s32.totalorder %s43, 1
      %p218 = por %p216, %p217
      %p219 = scmp.ne.s32.totalorder %s210, %s211
      %p220 = scmp.eq.s32.totalorder %s43, 0
      %p221 = por %p219, %p220
      %p222 = scmp.ne.s32.totalorder %s210, %s211
      %p223 = scmp.eq.s32.totalorder %s44, 1
      %p224 = por %p222, %p223
      %p226 = scmp.ne.s32.totalorder %s211, %s225
      %p227 = scmp.eq.s32.totalorder %s44, 0
      %p228 = por %p226, %p227
      %s230 = sadd.s32 %s229, 1
      %p233 = scmp.eq.s32.totalorder %s38, 1
      %p234 = scmp.ne.s32.totalorder %s229, %s231
      %p235 = scmp.eq.s32.totalorder %s38, 0
      %p236 = por %p234, %p235
      %p237 = scmp.ne.s32.totalorder %s229, %s231
      %p238 = scmp.eq.s32.totalorder %s43, 1
      %p239 = por %p237, %p238
      %p240 = scmp.ne.s32.totalorder %s231, %s232
      %p241 = scmp.eq.s32.totalorder %s43, 0
      %p242 = por %p240, %p241
      %p243 = scmp.ne.s32.totalorder %s231, %s232
      %p244 = scmp.eq.s32.totalorder %s44, 1
      %p245 = por %p243, %p244
      %p247 = scmp.ne.s32.totalorder %s232, %s246
      %p248 = scmp.eq.s32.totalorder %s44, 0
      %p249 = por %p247, %p248
      %s251 = sadd.s32 %s250, 1
      %p254 = scmp.eq.s32.totalorder %s38, 1
      %p255 = scmp.ne.s32.totalorder %s250, %s252
      %p256 = scmp.eq.s32.totalorder %s38, 0
      %p257 = por %p255, %p256
      %p258 = scmp.ne.s32.totalorder %s250, %s252
      %p259 = scmp.eq.s32.totalorder %s43, 1
      %p260 = por %p258, %p259
      %p261 = scmp.ne.s32.totalorder %s252, %s253
      %p262 = scmp.eq.s32.totalorder %s43, 0
      %p263 = por %p261, %p262
      %p264 = scmp.ne.s32.totalorder %s252, %s253
      %p265 = scmp.eq.s32.totalorder %s44, 1
      %p266 = por %p264, %p265
      %p268 = scmp.ne.s32.totalorder %s253, %s267
      %p269 = scmp.eq.s32.totalorder %s44, 0
      %p270 = por %p268, %p269
      %s272 = sadd.s32 %s271, 1
      %p275 = scmp.eq.s32.totalorder %s38, 1
      %p276 = scmp.ne.s32.totalorder %s271, %s273
      %p277 = scmp.eq.s32.totalorder %s38, 0
      %p278 = por %p276, %p277
      %p279 = scmp.ne.s32.totalorder %s271, %s273
      %p280 = scmp.eq.s32.totalorder %s43, 1
      %p281 = por %p279, %p280
      %p282 = scmp.ne.s32.totalorder %s273, %s274
      %p283 = scmp.eq.s32.totalorder %s43, 0
      %p284 = por %p282, %p283
      %p285 = scmp.ne.s32.totalorder %s273, %s274
      %p286 = scmp.eq.s32.totalorder %s44, 1
      %p287 = por %p285, %p286
      %p289 = scmp.ne.s32.totalorder %s274, %s288
      %p290 = scmp.eq.s32.totalorder %s44, 0
      %p291 = por %p289, %p290
      %s293 = sadd.s32 %s292, 1
      %p296 = scmp.eq.s32.totalorder %s38, 1
      %p297 = scmp.ne.s32.totalorder %s292, %s294
      %p298 = scmp.eq.s32.totalorder %s38, 0
      %p299 = por %p297, %p298
      %p300 = scmp.ne.s32.totalorder %s292, %s294
      %p301 = scmp.eq.s32.totalorder %s43, 1
      %p302 = por %p300, %p301
      %p303 = scmp.ne.s32.totalorder %s294, %s295
      %p304 = scmp.eq.s32.totalorder %s43, 0
      %p305 = por %p303, %p304
      %p306 = scmp.ne.s32.totalorder %s294, %s295
      %p307 = scmp.eq.s32.totalorder %s44, 1
      %p308 = por %p306, %p307
      %p310 = scmp.ne.s32.totalorder %s295, %s309
      %p311 = scmp.eq.s32.totalorder %s44, 0
      %p312 = por %p310, %p311
      %s314 = sadd.s32 %s313, 1
      %p317 = scmp.eq.s32.totalorder %s38, 1
      %p318 = scmp.ne.s32.totalorder %s313, %s315
      %p319 = scmp.eq.s32.totalorder %s38, 0
      %p320 = por %p318, %p319
      %p321 = scmp.ne.s32.totalorder %s313, %s315
      %p322 = scmp.eq.s32.totalorder %s43, 1
      %p323 = por %p321, %p322
      %p324 = scmp.ne.s32.totalorder %s315, %s316
      %p325 = scmp.eq.s32.totalorder %s43, 0
      %p326 = por %p324, %p325
      %p327 = scmp.ne.s32.totalorder %s315, %s316
      %p328 = scmp.eq.s32.totalorder %s44, 1
      %p329 = por %p327, %p328
      %p331 = scmp.ne.s32.totalorder %s316, %s330
      %p332 = scmp.eq.s32.totalorder %s44, 0
      %p333 = por %p331, %p332
      %s335 = sadd.s32 %s334, 1
      %p338 = scmp.eq.s32.totalorder %s38, 1
      %p339 = scmp.ne.s32.totalorder %s334, %s336
      %p340 = scmp.eq.s32.totalorder %s38, 0
      %p341 = por %p339, %p340
      %p342 = scmp.ne.s32.totalorder %s334, %s336
      %p343 = scmp.eq.s32.totalorder %s43, 1
      %p344 = por %p342, %p343
      %p345 = scmp.ne.s32.totalorder %s336, %s337
      %p346 = scmp.eq.s32.totalorder %s43, 0
      %p347 = por %p345, %p346
      %p348 = scmp.ne.s32.totalorder %s336, %s337
      %p349 = scmp.eq.s32.totalorder %s44, 1
      %p350 = por %p348, %p349
      %p352 = scmp.ne.s32.totalorder %s337, %s351
      %p353 = scmp.eq.s32.totalorder %s44, 0
      %p354 = por %p352, %p353
      %s356 = sadd.s32 %s355, 1
      %p359 = scmp.eq.s32.totalorder %s38, 1
      %p360 = scmp.ne.s32.totalorder %s355, %s357
      %p361 = scmp.eq.s32.totalorder %s38, 0
      %p362 = por %p360, %p361
      %p363 = scmp.ne.s32.totalorder %s355, %s357
      %p364 = scmp.eq.s32.totalorder %s43, 1
      %p365 = por %p363, %p364
      %p366 = scmp.ne.s32.totalorder %s357, %s358
      %p367 = scmp.eq.s32.totalorder %s43, 0
      %p368 = por %p366, %p367
      %p369 = scmp.ne.s32.totalorder %s357, %s358
      %p370 = scmp.eq.s32.totalorder %s44, 1
      %p371 = por %p369, %p370
      %p373 = scmp.ne.s32.totalorder %s358, %s372
      %p374 = scmp.eq.s32.totalorder %s44, 0
      %p375 = por %p373, %p374
      %s377 = sadd.s32 %s376, 1
      %p380 = scmp.eq.s32.totalorder %s38, 1
      %p381 = scmp.ne.s32.totalorder %s376, %s378
      %p382 = scmp.eq.s32.totalorder %s38, 0
      %p383 = por %p381, %p382
      %p384 = scmp.ne.s32.totalorder %s376, %s378
      %p385 = scmp.eq.s32.totalorder %s43, 1
      %p386 = por %p384, %p385
      %p387 = scmp.ne.s32.totalorder %s378, %s379
      %p388 = scmp.eq.s32.totalorder %s43, 0
      %p389 = por %p387, %p388
      %p390 = scmp.ne.s32.totalorder %s378, %s379
      %p391 = scmp.eq.s32.totalorder %s44, 1
      %p392 = por %p390, %p391
      %p394 = scmp.ne.s32.totalorder %s379, %s393
      %p395 = scmp.eq.s32.totalorder %s44, 0
      %p396 = por %p394, %p395
      %s398 = sadd.s32 %s397, 1
      %p401 = scmp.eq.s32.totalorder %s38, 1
      %p402 = scmp.ne.s32.totalorder %s397, %s399
      %p403 = scmp.eq.s32.totalorder %s38, 0
      %p404 = por %p402, %p403
      %p405 = scmp.ne.s32.totalorder %s397, %s399
      %p406 = scmp.eq.s32.totalorder %s43, 1
      %p407 = por %p405, %p406
      %p408 = scmp.ne.s32.totalorder %s399, %s400
      %p409 = scmp.eq.s32.totalorder %s43, 0
      %p410 = por %p408, %p409
      %p411 = scmp.ne.s32.totalorder %s399, %s400
      %p412 = scmp.eq.s32.totalorder %s44, 1
      %p413 = por %p411, %p412
      %p415 = scmp.ne.s32.totalorder %s400, %s414
      %p416 = scmp.eq.s32.totalorder %s44, 0
      %p417 = por %p415, %p416
      %s419 = sadd.s32 %s418, 1
      %p422 = scmp.eq.s32.totalorder %s38, 1
      %p423 = scmp.ne.s32.totalorder %s418, %s420
      %p424 = scmp.eq.s32.totalorder %s38, 0
      %p425 = por %p423, %p424
      %p426 = scmp.ne.s32.totalorder %s418, %s420
      %p427 = scmp.eq.s32.totalorder %s43, 1
      %p428 = por %p426, %p427
      %p429 = scmp.ne.s32.totalorder %s420, %s421
      %p430 = scmp.eq.s32.totalorder %s43, 0
      %p431 = por %p429, %p430
      %p432 = scmp.ne.s32.totalorder %s420, %s421
      %p433 = scmp.eq.s32.totalorder %s44, 1
      %p434 = por %p432, %p433
      %p436 = scmp.ne.s32.totalorder %s421, %s435
      %p437 = scmp.eq.s32.totalorder %s44, 0
      %p438 = por %p436, %p437
      %s440 = sadd.s32 %s439, 1
      %p443 = scmp.eq.s32.totalorder %s38, 1
      %p444 = scmp.ne.s32.totalorder %s439, %s441
      %p445 = scmp.eq.s32.totalorder %s38, 0
      %p446 = por %p444, %p445
      %p447 = scmp.ne.s32.totalorder %s439, %s441
      %p448 = scmp.eq.s32.totalorder %s43, 1
      %p449 = por %p447, %p448
      %p450 = scmp.ne.s32.totalorder %s441, %s442
      %p451 = scmp.eq.s32.totalorder %s43, 0
      %p452 = por %p450, %p451
      %p453 = scmp.ne.s32.totalorder %s441, %s442
      %p454 = scmp.eq.s32.totalorder %s44, 1
      %p455 = por %p453, %p454
      %p457 = scmp.ne.s32.totalorder %s442, %s456
      %p458 = scmp.eq.s32.totalorder %s44, 0
      %p459 = por %p457, %p458
      %s461 = sadd.s32 %s460, 1
      %p464 = scmp.eq.s32.totalorder %s38, 1
      %p465 = scmp.ne.s32.totalorder %s460, %s462
      %p466 = scmp.eq.s32.totalorder %s38, 0
      %p467 = por %p465, %p466
      %p468 = scmp.ne.s32.totalorder %s460, %s462
      %p469 = scmp.eq.s32.totalorder %s43, 1
      %p470 = por %p468, %p469
      %p471 = scmp.ne.s32.totalorder %s462, %s463
      %p472 = scmp.eq.s32.totalorder %s43, 0
      %p473 = por %p471, %p472
      %p474 = scmp.ne.s32.totalorder %s462, %s463
      %p475 = scmp.eq.s32.totalorder %s44, 1
      %p476 = por %p474, %p475
      %p478 = scmp.ne.s32.totalorder %s463, %s477
      %p479 = scmp.eq.s32.totalorder %s44, 0
      %p480 = por %p478, %p479
      %s481 = ssub.s32 %s38, %s45
      %p482 = scmp.eq.s32.totalorder %s481, 0
      %s484 = sadd.s32 %s483, 1
      %s485 = scalar_select %p482, %s483, %s484
      %p488 = pneg %p482
      %p489 = scmp.eq.s32.totalorder %s38, 1
      %p490 = por %p488, %p489
      %p491 = scmp.ne.s32.totalorder %s483, %s486
      %p492 = scmp.eq.s32.totalorder %s38, 0
      %p493 = por %p491, %p492
      %p494 = scmp.ne.s32.totalorder %s483, %s486
      %p495 = scmp.eq.s32.totalorder %s43, 1
      %p496 = por %p494, %p495
      %p497 = scmp.ne.s32.totalorder %s486, %s487
      %p498 = scmp.eq.s32.totalorder %s43, 0
      %p499 = por %p497, %p498
      %p500 = scmp.ne.s32.totalorder %s486, %s487
      %p501 = scmp.eq.s32.totalorder %s44, 1
      %p502 = por %p500, %p501
      %p504 = scmp.ne.s32.totalorder %s487, %s503
      %p505 = scmp.eq.s32.totalorder %s44, 0
      %p506 = por %p504, %p505
      %s507 = ssub.s32 %s38, %s45
      %p508 = scmp.eq.s32.totalorder %s507, 0
      %s510 = sadd.s32 %s509, 1
      %s511 = scalar_select %p508, %s509, %s510
      %p514 = pneg %p508
      %p515 = scmp.eq.s32.totalorder %s38, 1
      %p516 = por %p514, %p515
      %p517 = scmp.ne.s32.totalorder %s509, %s512
      %p518 = scmp.eq.s32.totalorder %s38, 0
      %p519 = por %p517, %p518
      %p520 = scmp.ne.s32.totalorder %s509, %s512
      %p521 = scmp.eq.s32.totalorder %s43, 1
      %p522 = por %p520, %p521
      %p523 = scmp.ne.s32.totalorder %s512, %s513
      %p524 = scmp.eq.s32.totalorder %s43, 0
      %p525 = por %p523, %p524
      %p526 = scmp.ne.s32.totalorder %s512, %s513
      %p527 = scmp.eq.s32.totalorder %s44, 1
      %p528 = por %p526, %p527
      %p530 = scmp.ne.s32.totalorder %s513, %s529
      %p531 = scmp.eq.s32.totalorder %s44, 0
      %p532 = por %p530, %p531
      %p533 = scmp.le.s32.totalorder 1, %s38
      %p534 = scmp.lt.s32.totalorder %s38, 3
      %p535 = pnand %p533, %p534
      %p536 = pneg %p535
      // Predicated region
      $region9: #{tpu_custom_call.1} parent=5 // pred_check
        _
      $region10: #{tpu_custom_call.1} parent=5 // pred_check_branch
        %538 = sbr.rel (%p535) target = $region12
      $region11: #{tpu_custom_call.1} parent=5 // pred_region
        %s539 = ssub.s32 %s38, 1
        // Predicated region
        $region13: #{tpu_custom_call.1} parent=11 // pred_check
          %p540 = pneg %p137
        $region14: #{tpu_custom_call.1} parent=11 // pred_check_branch
          %542 = sbr.rel (%p540) target = $region16
        $region15: #{tpu_custom_call.1} parent=11 // pred_region
          _
        $region16: #{tpu_custom_call.1} parent=11 // pred_fallthru
          _
        // Predicated region
        $region17: #{tpu_custom_call.1} parent=11 // pred_check
          %p543 = pneg %p158
        $region18: #{tpu_custom_call.1} parent=11 // pred_check_branch
          %545 = sbr.rel (%p543) target = $region20
        $region19: #{tpu_custom_call.1} parent=11 // pred_region
          %s547 = ssub.s32 16, 16
          %548 = vsyncadd [#allocation5], %s547
          %s550 = sshll.u32 [#allocation4], 4
          %s551 = int_to_ptr.vmem [resolvable:$true] %s550
          %553 = dma.hbm_to_vmem [thread:$0]  %s5, 16, %s551, [#allocation5]
        $region20: #{tpu_custom_call.1} parent=11 // pred_fallthru
          _
        // Predicated region
        $region21: #{tpu_custom_call.1} parent=11 // pred_check
          %p554 = pneg %p179
        $region22: #{tpu_custom_call.1} parent=11 // pred_check_branch
          %556 = sbr.rel (%p554) target = $region24
        $region23: #{tpu_custom_call.1} parent=11 // pred_region
          _
        $region24: #{tpu_custom_call.1} parent=11 // pred_fallthru
          _
        // Predicated region
        $region25: #{tpu_custom_call.1} parent=11 // pred_check
          %p557 = pneg %p200
        $region26: #{tpu_custom_call.1} parent=11 // pred_check_branch
          %559 = sbr.rel (%p557) target = $region28
        $region27: #{tpu_custom_call.1} parent=11 // pred_region
          %s561 = ssub.s32 16, 16
          %562 = vsyncadd [#allocation7], %s561
          %s564 = sshll.u32 [#allocation6], 4
          %s565 = int_to_ptr.vmem [resolvable:$true] %s564
          %567 = dma.hbm_to_vmem [thread:$0]  %s7, 16, %s565, [#allocation7]
        $region28: #{tpu_custom_call.1} parent=11 // pred_fallthru
          _
        // Predicated region
        $region29: #{tpu_custom_call.1} parent=11 // pred_check
          %p568 = pneg %p221
        $region30: #{tpu_custom_call.1} parent=11 // pred_check_branch
          %570 = sbr.rel (%p568) target = $region32
        $region31: #{tpu_custom_call.1} parent=11 // pred_region
          _
        $region32: #{tpu_custom_call.1} parent=11 // pred_fallthru
          _
        // Predicated region
        $region33: #{tpu_custom_call.1} parent=11 // pred_check
          %p571 = pneg %p242
        $region34: #{tpu_custom_call.1} parent=11 // pred_check_branch
          %573 = sbr.rel (%p571) target = $region36
        $region35: #{tpu_custom_call.1} parent=11 // pred_region
          %s575 = ssub.s32 16, 16
          %576 = vsyncadd [#allocation7], %s575
          %s578 = sshll.u32 [#allocation8], 4
          %s579 = int_to_ptr.vmem [resolvable:$true] %s578
          %581 = dma.hbm_to_vmem [thread:$0]  %s9, 16, %s579, [#allocation7]
        $region36: #{tpu_custom_call.1} parent=11 // pred_fallthru
          _
        // Predicated region
        $region37: #{tpu_custom_call.1} parent=11 // pred_check
          %p582 = pneg %p263
        $region38: #{tpu_custom_call.1} parent=11 // pred_check_branch
          %584 = sbr.rel (%p582) target = $region40
        $region39: #{tpu_custom_call.1} parent=11 // pred_region
          _
        $region40: #{tpu_custom_call.1} parent=11 // pred_fallthru
          _
        // Predicated region
        $region41: #{tpu_custom_call.1} parent=11 // pred_check
          %p585 = pneg %p284
        $region42: #{tpu_custom_call.1} parent=11 // pred_check_branch
          %587 = sbr.rel (%p585) target = $region44
        $region43: #{tpu_custom_call.1} parent=11 // pred_region
          %s589 = ssub.s32 16, 16
          %590 = vsyncadd [#allocation10], %s589
          %s592 = sshll.u32 [#allocation9], 4
          %s593 = int_to_ptr.vmem [resolvable:$true] %s592
          %595 = dma.hbm_to_vmem [thread:$0]  %s11, 16, %s593, [#allocation10]
        $region44: #{tpu_custom_call.1} parent=11 // pred_fallthru
          _
        // Predicated region
        $region45: #{tpu_custom_call.1} parent=11 // pred_check
          %p596 = pneg %p305
        $region46: #{tpu_custom_call.1} parent=11 // pred_check_branch
          %598 = sbr.rel (%p596) target = $region48
        $region47: #{tpu_custom_call.1} parent=11 // pred_region
          _
        $region48: #{tpu_custom_call.1} parent=11 // pred_fallthru
          _
        // Predicated region
        $region49: #{tpu_custom_call.1} parent=11 // pred_check
          %p599 = pneg %p326
        $region50: #{tpu_custom_call.1} parent=11 // pred_check_branch
          %601 = sbr.rel (%p599) target = $region52
        $region51: #{tpu_custom_call.1} parent=11 // pred_region
          _
        $region52: #{tpu_custom_call.1} parent=11 // pred_fallthru
          _
        // Predicated region
        $region53: #{tpu_custom_call.1} parent=11 // pred_check
          %p602 = pneg %p347
        $region54: #{tpu_custom_call.1} parent=11 // pred_check_branch
          %604 = sbr.rel (%p602) target = $region56
        $region55: #{tpu_custom_call.1} parent=11 // pred_region
          _
        $region56: #{tpu_custom_call.1} parent=11 // pred_fallthru
          _
        // Predicated region
        $region57: #{tpu_custom_call.1} parent=11 // pred_check
          %p605 = pneg %p368
        $region58: #{tpu_custom_call.1} parent=11 // pred_check_branch
          %607 = sbr.rel (%p605) target = $region60
        $region59: #{tpu_custom_call.1} parent=11 // pred_region
          _
        $region60: #{tpu_custom_call.1} parent=11 // pred_fallthru
          _
        // Predicated region
        $region61: #{tpu_custom_call.1} parent=11 // pred_check
          %p608 = pneg %p389
        $region62: #{tpu_custom_call.1} parent=11 // pred_check_branch
          %610 = sbr.rel (%p608) target = $region64
        $region63: #{tpu_custom_call.1} parent=11 // pred_region
          _
        $region64: #{tpu_custom_call.1} parent=11 // pred_fallthru
          _
        // Predicated region
        $region65: #{tpu_custom_call.1} parent=11 // pred_check
          %p611 = pneg %p410
        $region66: #{tpu_custom_call.1} parent=11 // pred_check_branch
          %613 = sbr.rel (%p611) target = $region68
        $region67: #{tpu_custom_call.1} parent=11 // pred_region
          _
        $region68: #{tpu_custom_call.1} parent=11 // pred_fallthru
          _
        // Predicated region
        $region69: #{tpu_custom_call.1} parent=11 // pred_check
          %p614 = pneg %p431
        $region70: #{tpu_custom_call.1} parent=11 // pred_check_branch
          %616 = sbr.rel (%p614) target = $region72
        $region71: #{tpu_custom_call.1} parent=11 // pred_region
          _
        $region72: #{tpu_custom_call.1} parent=11 // pred_fallthru
          _
        // Predicated region
        $region73: #{tpu_custom_call.1} parent=11 // pred_check
          %p617 = pneg %p452
        $region74: #{tpu_custom_call.1} parent=11 // pred_check_branch
          %619 = sbr.rel (%p617) target = $region76
        $region75: #{tpu_custom_call.1} parent=11 // pred_region
          _
        $region76: #{tpu_custom_call.1} parent=11 // pred_fallthru
          _
        // Predicated region
        $region77: #{tpu_custom_call.1} parent=11 // pred_check
          %p620 = pneg %p473
        $region78: #{tpu_custom_call.1} parent=11 // pred_check_branch
          %622 = sbr.rel (%p620) target = $region80
        $region79: #{tpu_custom_call.1} parent=11 // pred_region
          _
        $region80: #{tpu_custom_call.1} parent=11 // pred_fallthru
          _
      $region12: #{tpu_custom_call.1} parent=5 // pred_fallthru
        _
      %p623 = scmp.lt.s32.totalorder %s38, 2
      // Predicated region
      $region81: #{tpu_custom_call.1} parent=5 // pred_check
        %p624 = pneg %p623
      $region82: #{tpu_custom_call.1} parent=5 // pred_check_branch
        %626 = sbr.rel (%p624) target = $region84
      $region83: #{tpu_custom_call.1} parent=5 // pred_region
        // Predicated region
        $region85: #{tpu_custom_call.1} parent=83 // pred_check
          %p627 = pneg %p58
        $region86: #{tpu_custom_call.1} parent=83 // pred_check_branch
          %629 = sbr.rel (%p627) target = $region88
        $region87: #{tpu_custom_call.1} parent=83 // pred_region
          %p630 = scmp.lt.s32.totalorder %s38, 1
          %s631 = scalar_select %p630, %s38, 1
          %s632 = smul.addr %s631, 2
          %s633 = smul.addr %s632, 8
          %s634 = scalar_lea.vmem %s1, %s633
        $region88: #{tpu_custom_call.1} parent=83 // pred_fallthru
          _
        // Predicated region
        $region89: #{tpu_custom_call.1} parent=83 // pred_check
          %p635 = pneg %p84
        $region90: #{tpu_custom_call.1} parent=83 // pred_check_branch
          %637 = sbr.rel (%p635) target = $region92
        $region91: #{tpu_custom_call.1} parent=83 // pred_region
          %p638 = scmp.lt.s32.totalorder %s38, 1
          %s639 = scalar_select %p638, %s38, 1
          %s640 = smul.addr %s639, 2
          %s641 = smul.addr %s640, 8
          %s642 = scalar_lea.vmem %s2, %s641
        $region92: #{tpu_custom_call.1} parent=83 // pred_fallthru
          _
        // Predicated region
        $region93: #{tpu_custom_call.1} parent=83 // pred_check
          %p643 = pneg %p110
        $region94: #{tpu_custom_call.1} parent=83 // pred_check_branch
          %645 = sbr.rel (%p643) target = $region96
        $region95: #{tpu_custom_call.1} parent=83 // pred_region
          %p646 = scmp.lt.s32.totalorder %s38, 1
          %s647 = scalar_select %p646, %s38, 1
          %s648 = smul.addr %s647, 8
          %s649 = scalar_lea.vmem %s3, %s648
        $region96: #{tpu_custom_call.1} parent=83 // pred_fallthru
          _
      $region84: #{tpu_custom_call.1} parent=5 // pred_fallthru
        _
      %p650 = scmp.le.s32.totalorder 1, %s38
      %p651 = scmp.lt.s32.totalorder %s38, 3
      %p652 = pnand %p650, %p651
      %p653 = pneg %p652
      // Predicated region
      $region97: #{tpu_custom_call.1} parent=5 // pred_check
        _
      $region98: #{tpu_custom_call.1} parent=5 // pred_check_branch
        %655 = sbr.rel (%p652) target = $region100
      $region99: #{tpu_custom_call.1} parent=5 // pred_region
        %s656 = ssub.s32 %s38, 1
        // Predicated region
        $region101: #{tpu_custom_call.1} parent=99 // pred_check
          %p657 = pneg %p158
        $region102: #{tpu_custom_call.1} parent=99 // pred_check_branch
          %659 = sbr.rel (%p657) target = $region104
        $region103: #{tpu_custom_call.1} parent=99 // pred_region
          %660 = dma.done [#allocation5], 16
        $region104: #{tpu_custom_call.1} parent=99 // pred_fallthru
          _
        // Predicated region
        $region105: #{tpu_custom_call.1} parent=99 // pred_check
          %p661 = pneg %p200
        $region106: #{tpu_custom_call.1} parent=99 // pred_check_branch
          %663 = sbr.rel (%p661) target = $region108
        $region107: #{tpu_custom_call.1} parent=99 // pred_region
          %664 = dma.done [#allocation7], 16
        $region108: #{tpu_custom_call.1} parent=99 // pred_fallthru
          _
        // Predicated region
        $region109: #{tpu_custom_call.1} parent=99 // pred_check
          %p665 = pneg %p242
        $region110: #{tpu_custom_call.1} parent=99 // pred_check_branch
          %667 = sbr.rel (%p665) target = $region112
        $region111: #{tpu_custom_call.1} parent=99 // pred_region
          %668 = dma.done [#allocation7], 16
        $region112: #{tpu_custom_call.1} parent=99 // pred_fallthru
          _
        // Predicated region
        $region113: #{tpu_custom_call.1} parent=99 // pred_check
          %p669 = pneg %p284
        $region114: #{tpu_custom_call.1} parent=99 // pred_check_branch
          %671 = sbr.rel (%p669) target = $region116
        $region115: #{tpu_custom_call.1} parent=99 // pred_region
          %672 = dma.done [#allocation10], 16
        $region116: #{tpu_custom_call.1} parent=99 // pred_fallthru
          _
        %p673 = scmp.lt.s32.totalorder %s43, 1
        %s674 = scalar_select %p673, %s43, 1
        %s675 = smul.addr %s674, 2
        %s676 = smul.addr %s675, 8
        %s677 = scalar_lea.vmem %s1, %s676
        %p678 = pneg %p64
        %p679 = pneg %p61
        %p680 = scmp.lt.s32.totalorder %s43, 1
        %s681 = scalar_select %p680, %s43, 1
        %s682 = smul.addr %s681, 2
        %s683 = smul.addr %s682, 8
        %s684 = scalar_lea.vmem %s2, %s683
        %p685 = pneg %p90
        %p686 = pneg %p87
        %p687 = scmp.lt.s32.totalorder %s43, 1
        %s688 = scalar_select %p687, %s43, 1
        %s689 = smul.addr %s688, 8
        %s690 = scalar_lea.vmem %s3, %s689
        %p691 = pneg %p116
        %p692 = pneg %p113
        %p693 = pneg %p137
        %p694 = pneg %p134
        %p695 = pneg %p158
        %p696 = pneg %p155
        %p697 = pneg %p179
        %p698 = pneg %p176
        %p699 = pneg %p200
        %p700 = pneg %p197
        %p701 = pneg %p221
        %p702 = pneg %p218
        %p703 = pneg %p242
        %p704 = pneg %p239
        %p705 = pneg %p263
        %p706 = pneg %p260
        %p707 = pneg %p284
        %p708 = pneg %p281
        %p709 = pneg %p305
        %p710 = pneg %p302
        %p711 = pneg %p326
        %p712 = pneg %p323
        %p713 = pneg %p347
        %p714 = pneg %p344
        %p715 = pneg %p368
        %p716 = pneg %p365
        %p717 = pneg %p389
        %p718 = pneg %p386
        %p719 = pneg %p410
        %p720 = pneg %p407
        %p721 = pneg %p431
        %p722 = pneg %p428
        %p723 = pneg %p452
        %p724 = pneg %p449
        %p725 = pneg %p473
        %p726 = pneg %p470
        %p727 = pneg %p499
        %p728 = pneg %p496
        %p729 = scmp.lt.s32.totalorder %s43, 1
        %s730 = scalar_select %p729, %s43, 1
        %s731 = smul.addr %s730, 2
        %s732 = smul.addr %s731, 8
        %s733 = scalar_lea.vmem %s21, %s732
        %p734 = pneg %p525
        %p735 = pneg %p522
        %p736 = scmp.lt.s32.totalorder %s43, 1
        %s737 = scalar_select %p736, %s43, 1
        %s738 = smul.addr %s737, 2
        %s739 = smul.addr %s738, 8
        %s740 = scalar_lea.vmem %s22, %s739
        %p741 = scmp.lt.s32.totalorder %s43, 1
        %s742 = scalar_select %p741, %s43, 1
        %s743 = smul.addr %s742, 2
        %s744 = smul.addr %s743, 8
        %s745 = scalar_lea.vmem %s1, %s744
        %p746 = scmp.lt.s32.totalorder %s43, 1
        %s747 = scalar_select %p746, %s43, 1
        %s748 = smul.addr %s747, 2
        %s749 = smul.addr %s748, 8
        %s750 = scalar_lea.vmem %s2, %s749
        %p751 = scmp.lt.s32.totalorder %s43, 1
        %s752 = scalar_select %p751, %s43, 1
        %s753 = smul.addr %s752, 8
        %s754 = scalar_lea.vmem %s3, %s753
        %p755 = scmp.lt.s32.totalorder %s43, 1
        %s756 = scalar_select %p755, %s43, 1
        %s757 = smul.addr %s756, 2
        %s758 = smul.addr %s757, 8
        %s759 = scalar_lea.vmem %s21, %s758
        %p760 = scmp.lt.s32.totalorder %s43, 1
        %s761 = scalar_select %p760, %s43, 1
        %s762 = smul.addr %s761, 2
        %s763 = smul.addr %s762, 8
        %s764 = scalar_lea.vmem %s22, %s763
        %v766 = vld [vmem:[%s20] sm:$0xff]
        %v767 = vld [vmem:[%s750] sm:$0xff]
        %v768 = vld [vmem:[%s750 + $0x8] sm:$0xff]
        %v769 = vld [vmem:[%s745] sm:$0xff]
        %v770 = vld [vmem:[%s745 + $0x8] sm:$0x3f]
        %v771 = vld [vmem:[%s754] sm:$0xff]
        %s772 = sld [smem:[#allocation3 + %s43]]
        %s773 = scvt.s32.f32 %s772
        %v774 = vstv %s773
        %v775 = vmul.f32 %v771, %v774
        %v776 = vld [vmem:[%s4] sm:$0xf]
        %v777 = vld [vmem:[%s4 + $0x4] sm:$0xf]
        %v778 = vld [vmem:[%s4 + $0x8] sm:$0xf]
        %v779 = vld [vmem:[%s4 + $0xc] sm:$0xf]
        %v780 = vld [vmem:[#allocation4] sm:$0x1]
        %v781 = vpack.c.bf16 %v768, %v767
        %v783 = vlaneseq
        %v784 = vshrl.u32 %v783, 7
        %v785 = vsub.s32 0, %v784
        %v786 = vrot.slane %v780, %v785
        %v792 = vunpack.c.l.b16 %v776
        %v793 = vunpack.c.l.b16 %v777
        %v794 = vunpack.c.l.b16 %v778
        %v795 = vunpack.c.l.b16 %v779
        %v796 = vpack.c.b16 %v793, %v792
        %v797 = vpack.c.b16 %v795, %v794
        %vm800 = vcmask 261120
        %v802 = vsel %vm800, %v781, 0
        %804 = vmatprep.subr.bf16.mxu0 0
        %805 = vmatpush1.bf16.msra.mxu0 %v796
        %806 = vmatprep.subr.bf16.mxu0 0
        %807 = vmatpush1.bf16.msra.mxu0 %v797
        %808 = vmatprep.subr.bf16.mxu0 0
        %809 = vmatpush1.bf16.msra.mxu0 0
        %810 = vmatprep.subr.bf16.mxu0 0
        %811 = vmatpush1.bf16.msra.mxu0 0
        %812 = vmatprep.subr.bf16.mxu0 0
        %813 = vmatpush1.bf16.msra.mxu0 0
        %814 = vmatprep.subr.bf16.mxu0 0
        %815 = vmatpush1.bf16.msra.mxu0 0
        %816 = vmatprep.subr.bf16.mxu0 0
        %817 = vmatpush1.bf16.msra.mxu0 0
        %818 = vmatprep.subr.bf16.mxu0 0
        %819 = vmatpush1.bf16.msra.mxu0 0
        %820 = vmatprep.subr.bf16.mxu0 0
        %821 = vmatpush1.bf16.msra.mxu0 0
        %822 = vmatprep.subr.bf16.mxu0 0
        %823 = vmatpush1.bf16.msra.mxu0 0
        %824 = vmatprep.subr.bf16.mxu0 0
        %825 = vmatpush1.bf16.msra.mxu0 0
        %826 = vmatprep.subr.bf16.mxu0 0
        %827 = vmatpush1.bf16.msra.mxu0 0
        %828 = vmatprep.subr.bf16.mxu0 0
        %829 = vmatpush1.bf16.msra.mxu0 0
        %830 = vmatprep.subr.bf16.mxu0 0
        %831 = vmatpush1.bf16.msra.mxu0 0
        %832 = vmatprep.subr.bf16.mxu0 0
        %833 = vmatpush1.bf16.msra.mxu0 0
        %834 = vmatprep.subr.bf16.mxu0 0
        %835 = vmatpush1.bf16.msra.mxu0 0
        %836 = vmatprep.mubr.bf16.mxu0 0
        %837 = vmatmul.mubr.bf16.gmra.mrb[0].mxu0 %v802
        %v838 = vpop.f32.mrb[0].mxu0
        %v839 = vadd.f32 %v786, %v838
        %v840 = vpop.f32.mrb[0].mxu0
        %v841 = vpop.f32.mrb[0].mxu0
        %v842 = vadd.f32 %v786, %v841
        %v843 = vpop.f32.mrb[0].mxu0
        %844 = vdwg.mxu0
        %v845 = vpack.c.bf16 %v775, %v775
        %846 = vrot.lane.b32.xlu0 %v796, 96
        %v847 = vpop.permute.xlu0 %846
        %848 = vrot.lane.b32.xlu0 %v797, 96
        %v849 = vpop.permute.xlu0 %848
        %852 = vrot.lane.b32.xlu0 %v786, 96
        %v853 = vpop.permute.xlu0 %852
        %v856 = vsel %vm800, %v845, 0
        %858 = vmatprep.subr.bf16.mxu0 0
        %859 = vmatpush1.bf16.msra.mxu0 %v847
        %860 = vmatprep.subr.bf16.mxu0 0
        %861 = vmatpush1.bf16.msra.mxu0 %v849
        %862 = vmatprep.subr.bf16.mxu0 0
        %863 = vmatpush1.bf16.msra.mxu0 0
        %864 = vmatprep.subr.bf16.mxu0 0
        %865 = vmatpush1.bf16.msra.mxu0 0
        %866 = vmatprep.subr.bf16.mxu0 0
        %867 = vmatpush1.bf16.msra.mxu0 0
        %868 = vmatprep.subr.bf16.mxu0 0
        %869 = vmatpush1.bf16.msra.mxu0 0
        %870 = vmatprep.subr.bf16.mxu0 0
        %871 = vmatpush1.bf16.msra.mxu0 0
        %872 = vmatprep.subr.bf16.mxu0 0
        %873 = vmatpush1.bf16.msra.mxu0 0
        %874 = vmatprep.subr.bf16.mxu0 0
        %875 = vmatpush1.bf16.msra.mxu0 0
        %876 = vmatprep.subr.bf16.mxu0 0
        %877 = vmatpush1.bf16.msra.mxu0 0
        %878 = vmatprep.subr.bf16.mxu0 0
        %879 = vmatpush1.bf16.msra.mxu0 0
        %880 = vmatprep.subr.bf16.mxu0 0
        %881 = vmatpush1.bf16.msra.mxu0 0
        %882 = vmatprep.subr.bf16.mxu0 0
        %883 = vmatpush1.bf16.msra.mxu0 0
        %884 = vmatprep.subr.bf16.mxu0 0
        %885 = vmatpush1.bf16.msra.mxu0 0
        %886 = vmatprep.subr.bf16.mxu0 0
        %887 = vmatpush1.bf16.msra.mxu0 0
        %888 = vmatprep.subr.bf16.mxu0 0
        %889 = vmatpush1.bf16.msra.mxu0 0
        %890 = vmatprep.mubr.bf16.mxu0 0
        %891 = vmatmul.mubr.bf16.gmra.mrb[0].mxu0 %v856
        %v892 = vpop.f32.mrb[0].mxu0
        %v893 = vadd.f32 %v853, %v892
        %v894 = vpop.f32.mrb[0].mxu0
        %v895 = vpop.f32.mrb[0].mxu0
        %v896 = vpop.f32.mrb[0].mxu0
        %897 = vdwg.mxu0
        %900 = vrot.lane.b32.xlu0 %v839, 120
        %v901 = vpop.permute.xlu0 %900
        %902 = vrot.lane.b32.xlu0 %v842, 120
        %v903 = vpop.permute.xlu0 %902
        %906 = vrot.lane.b32.xlu0 %v839, 112
        %v907 = vpop.permute.xlu0 %906
        %908 = vrot.lane.b32.xlu0 %v842, 112
        %v909 = vpop.permute.xlu0 %908
        %912 = vrot.lane.b32.xlu0 %v839, 104
        %v913 = vpop.permute.xlu0 %912
        %914 = vrot.lane.b32.xlu0 %v842, 104
        %v915 = vpop.permute.xlu0 %914
        %919 = vrot.lane.b32.xlu0 %v893, 120
        %v920 = vpop.permute.xlu0 %919
        %922 = vrot.lane.b32.xlu0 %v893, 112
        %v923 = vpop.permute.xlu0 %922
        %925 = vrot.lane.b32.xlu0 %v893, 104
        %v926 = vpop.permute.xlu0 %925
        %v928 = vpack.c.bf16 %v842, %v839
        %v929 = vpack.c.bf16 %v903, %v901
        %v930 = vpack.c.bf16 %v909, %v907
        %v931 = vpack.c.bf16 %v915, %v913
        %v932 = vpack.c.bf16 %v893, %v893
        %v933 = vpack.c.bf16 %v920, %v920
        %v934 = vpack.c.bf16 %v923, %v923
        %v935 = vpack.c.bf16 %v926, %v926
        %vm936 = vcmask 64512
        %v938 = vsel %vm936, %v928, 0
        %v941 = vsel %vm936, %v932, 0
        %943 = vmatprep.subr.bf16.mxu0 0
        %944 = vmatpush1.bf16.xpose.msra.mxu0 %v941
        %945 = vmatprep.subr.bf16.mxu0 0
        %946 = vmatpush1.bf16.xpose.msra.mxu0 0
        %947 = vmatprep.subr.bf16.mxu0 0
        %948 = vmatpush1.bf16.xpose.msra.mxu0 0
        %949 = vmatprep.subr.bf16.mxu0 0
        %950 = vmatpush1.bf16.xpose.msra.mxu0 0
        %951 = vmatprep.subr.bf16.mxu0 0
        %952 = vmatpush1.bf16.xpose.msra.mxu0 0
        %953 = vmatprep.subr.bf16.mxu0 0
        %954 = vmatpush1.bf16.xpose.msra.mxu0 0
        %955 = vmatprep.subr.bf16.mxu0 0
        %956 = vmatpush1.bf16.xpose.msra.mxu0 0
        %957 = vmatprep.subr.bf16.mxu0 0
        %958 = vmatpush1.bf16.xpose.msra.mxu0 0
        %959 = vmatprep.subr.bf16.mxu0 0
        %960 = vmatpush1.bf16.xpose.msra.mxu0 0
        %961 = vmatprep.subr.bf16.mxu0 0
        %962 = vmatpush1.bf16.xpose.msra.mxu0 0
        %963 = vmatprep.subr.bf16.mxu0 0
        %964 = vmatpush1.bf16.xpose.msra.mxu0 0
        %965 = vmatprep.subr.bf16.mxu0 0
        %966 = vmatpush1.bf16.xpose.msra.mxu0 0
        %967 = vmatprep.subr.bf16.mxu0 0
        %968 = vmatpush1.bf16.xpose.msra.mxu0 0
        %969 = vmatprep.subr.bf16.mxu0 0
        %970 = vmatpush1.bf16.xpose.msra.mxu0 0
        %971 = vmatprep.subr.bf16.mxu0 0
        %972 = vmatpush1.bf16.xpose.msra.mxu0 0
        %973 = vmatprep.subr.bf16.mxu0 0
        %974 = vmatpush1.bf16.xpose.msra.mxu0 0
        %975 = vmatprep.mubr.bf16.mxu0 0
        %976 = vmatmul.mubr.bf16.gmra.mrb[0].mxu0 %v938
        %v977 = vpop.f32.mrb[0].mxu0
        %v978 = vadd.f32 0.0, %v977
        %v979 = vpop.f32.mrb[0].mxu0
        %v980 = vpop.f32.mrb[0].mxu0
        %v981 = vadd.f32 0.0, %v980
        %v982 = vpop.f32.mrb[0].mxu0
        %983 = vdwg.mxu0
        %v985 = vsel %vm936, %v929, 0
        %v988 = vsel %vm936, %v933, 0
        %990 = vmatprep.subr.bf16.mxu0 0
        %991 = vmatpush1.bf16.xpose.msra.mxu0 %v988
        %992 = vmatprep.subr.bf16.mxu0 0
        %993 = vmatpush1.bf16.xpose.msra.mxu0 0
        %994 = vmatprep.subr.bf16.mxu0 0
        %995 = vmatpush1.bf16.xpose.msra.mxu0 0
        %996 = vmatprep.subr.bf16.mxu0 0
        %997 = vmatpush1.bf16.xpose.msra.mxu0 0
        %998 = vmatprep.subr.bf16.mxu0 0
        %999 = vmatpush1.bf16.xpose.msra.mxu0 0
        %1000 = vmatprep.subr.bf16.mxu0 0
        %1001 = vmatpush1.bf16.xpose.msra.mxu0 0
        %1002 = vmatprep.subr.bf16.mxu0 0
        %1003 = vmatpush1.bf16.xpose.msra.mxu0 0
        %1004 = vmatprep.subr.bf16.mxu0 0
        %1005 = vmatpush1.bf16.xpose.msra.mxu0 0
        %1006 = vmatprep.subr.bf16.mxu0 0
        %1007 = vmatpush1.bf16.xpose.msra.mxu0 0
        %1008 = vmatprep.subr.bf16.mxu0 0
        %1009 = vmatpush1.bf16.xpose.msra.mxu0 0
        %1010 = vmatprep.subr.bf16.mxu0 0
        %1011 = vmatpush1.bf16.xpose.msra.mxu0 0
        %1012 = vmatprep.subr.bf16.mxu0 0
        %1013 = vmatpush1.bf16.xpose.msra.mxu0 0
        %1014 = vmatprep.subr.bf16.mxu0 0
        %1015 = vmatpush1.bf16.xpose.msra.mxu0 0
        %1016 = vmatprep.subr.bf16.mxu0 0
        %1017 = vmatpush1.bf16.xpose.msra.mxu0 0
        %1018 = vmatprep.subr.bf16.mxu0 0
        %1019 = vmatpush1.bf16.xpose.msra.mxu0 0
        %1020 = vmatprep.subr.bf16.mxu0 0
        %1021 = vmatpush1.bf16.xpose.msra.mxu0 0
        %1022 = vmatprep.mubr.bf16.mxu0 0
        %1023 = vmatmul.mubr.bf16.gmra.mrb[0].mxu0 %v985
        %v1024 = vpop.f32.mrb[0].mxu0
        %v1025 = vadd.f32 0.0, %v1024
        %v1026 = vpop.f32.mrb[0].mxu0
        %v1027 = vpop.f32.mrb[0].mxu0
        %v1028 = vadd.f32 0.0, %v1027
        %v1029 = vpop.f32.mrb[0].mxu0
        %1030 = vdwg.mxu0
        %v1032 = vsel %vm936, %v930, 0
        %v1035 = vsel %vm936, %v934, 0
        %1037 = vmatprep.subr.bf16.mxu0 0
        %1038 = vmatpush1.bf16.xpose.msra.mxu0 %v1035
        %1039 = vmatprep.subr.bf16.mxu0 0
        %1040 = vmatpush1.bf16.xpose.msra.mxu0 0
        %1041 = vmatprep.subr.bf16.mxu0 0
        %1042 = vmatpush1.bf16.xpose.msra.mxu0 0
        %1043 = vmatprep.subr.bf16.mxu0 0
        %1044 = vmatpush1.bf16.xpose.msra.mxu0 0
        %1045 = vmatprep.subr.bf16.mxu0 0
        %1046 = vmatpush1.bf16.xpose.msra.mxu0 0
        %1047 = vmatprep.subr.bf16.mxu0 0
        %1048 = vmatpush1.bf16.xpose.msra.mxu0 0
        %1049 = vmatprep.subr.bf16.mxu0 0
        %1050 = vmatpush1.bf16.xpose.msra.mxu0 0
        %1051 = vmatprep.subr.bf16.mxu0 0
        %1052 = vmatpush1.bf16.xpose.msra.mxu0 0
        %1053 = vmatprep.subr.bf16.mxu0 0
        %1054 = vmatpush1.bf16.xpose.msra.mxu0 0
        %1055 = vmatprep.subr.bf16.mxu0 0
        %1056 = vmatpush1.bf16.xpose.msra.mxu0 0
        %1057 = vmatprep.subr.bf16.mxu0 0
        %1058 = vmatpush1.bf16.xpose.msra.mxu0 0
        %1059 = vmatprep.subr.bf16.mxu0 0
        %1060 = vmatpush1.bf16.xpose.msra.mxu0 0
        %1061 = vmatprep.subr.bf16.mxu0 0
        %1062 = vmatpush1.bf16.xpose.msra.mxu0 0
        %1063 = vmatprep.subr.bf16.mxu0 0
        %1064 = vmatpush1.bf16.xpose.msra.mxu0 0
        %1065 = vmatprep.subr.bf16.mxu0 0
        %1066 = vmatpush1.bf16.xpose.msra.mxu0 0
        %1067 = vmatprep.subr.bf16.mxu0 0
        %1068 = vmatpush1.bf16.xpose.msra.mxu0 0
        %1069 = vmatprep.mubr.bf16.mxu0 0
        %1070 = vmatmul.mubr.bf16.gmra.mrb[0].mxu0 %v1032
        %v1071 = vpop.f32.mrb[0].mxu0
        %v1072 = vadd.f32 0.0, %v1071
        %v1073 = vpop.f32.mrb[0].mxu0
        %v1074 = vpop.f32.mrb[0].mxu0
        %v1075 = vadd.f32 0.0, %v1074
        %v1076 = vpop.f32.mrb[0].mxu0
        %1077 = vdwg.mxu0
        %v1079 = vsel %vm936, %v931, 0
        %v1082 = vsel %vm936, %v935, 0
        %1084 = vmatprep.subr.bf16.mxu0 0
        %1085 = vmatpush1.bf16.xpose.msra.mxu0 %v1082
        %1086 = vmatprep.subr.bf16.mxu0 0
        %1087 = vmatpush1.bf16.xpose.msra.mxu0 0
        %1088 = vmatprep.subr.bf16.mxu0 0
        %1089 = vmatpush1.bf16.xpose.msra.mxu0 0
        %1090 = vmatprep.subr.bf16.mxu0 0
        %1091 = vmatpush1.bf16.xpose.msra.mxu0 0
        %1092 = vmatprep.subr.bf16.mxu0 0
        %1093 = vmatpush1.bf16.xpose.msra.mxu0 0
        %1094 = vmatprep.subr.bf16.mxu0 0
        %1095 = vmatpush1.bf16.xpose.msra.mxu0 0
        %1096 = vmatprep.subr.bf16.mxu0 0
        %1097 = vmatpush1.bf16.xpose.msra.mxu0 0
        %1098 = vmatprep.subr.bf16.mxu0 0
        %1099 = vmatpush1.bf16.xpose.msra.mxu0 0
        %1100 = vmatprep.subr.bf16.mxu0 0
        %1101 = vmatpush1.bf16.xpose.msra.mxu0 0
        %1102 = vmatprep.subr.bf16.mxu0 0
        %1103 = vmatpush1.bf16.xpose.msra.mxu0 0
        %1104 = vmatprep.subr.bf16.mxu0 0
        %1105 = vmatpush1.bf16.xpose.msra.mxu0 0
        %1106 = vmatprep.subr.bf16.mxu0 0
        %1107 = vmatpush1.bf16.xpose.msra.mxu0 0
        %1108 = vmatprep.subr.bf16.mxu0 0
        %1109 = vmatpush1.bf16.xpose.msra.mxu0 0
        %1110 = vmatprep.subr.bf16.mxu0 0
        %1111 = vmatpush1.bf16.xpose.msra.mxu0 0
        %1112 = vmatprep.subr.bf16.mxu0 0
        %1113 = vmatpush1.bf16.xpose.msra.mxu0 0
        %1114 = vmatprep.subr.bf16.mxu0 0
        %1115 = vmatpush1.bf16.xpose.msra.mxu0 0
        %1116 = vmatprep.mubr.bf16.mxu0 0
        %1117 = vmatmul.mubr.bf16.gmra.mrb[0].mxu0 %v1079
        %v1118 = vpop.f32.mrb[0].mxu0
        %v1119 = vadd.f32 0.0, %v1118
        %v1120 = vpop.f32.mrb[0].mxu0
        %v1121 = vpop.f32.mrb[0].mxu0
        %v1122 = vadd.f32 0.0, %v1121
        %v1123 = vpop.f32.mrb[0].mxu0
        %1124 = vdwg.mxu0
        %v1125 = vmul.f32 %v978, 0.35355338
        %v1126 = vmul.f32 %v981, 0.35355338
        %v1127 = vmul.f32 %v1025, 0.35355338
        %v1128 = vmul.f32 %v1028, 0.35355338
        %v1129 = vmul.f32 %v1072, 0.35355338
        %v1130 = vmul.f32 %v1075, 0.35355338
        %v1131 = vmul.f32 %v1119, 0.35355338
        %v1132 = vmul.f32 %v1122, 0.35355338
        %v1133 = vsel %vm936, %v1125, -inf
        %1134 = vmax.xlane.f32.xlu0 %v1133
        %v1135 = vpop.xlane.xlu0 %1134
        %v1136 = vsel %vm936, %v1126, -inf
        %1137 = vmax.xlane.f32.xlu0 %v1136
        %v1138 = vpop.xlane.xlu0 %1137
        %v1139 = vsel %vm936, %v1127, -inf
        %1140 = vmax.xlane.f32.xlu0 %v1139
        %v1141 = vpop.xlane.xlu0 %1140
        %v1142 = vsel %vm936, %v1128, -inf
        %1143 = vmax.xlane.f32.xlu0 %v1142
        %v1144 = vpop.xlane.xlu0 %1143
        %v1145 = vsel %vm936, %v1129, -inf
        %1146 = vmax.xlane.f32.xlu0 %v1145
        %v1147 = vpop.xlane.xlu0 %1146
        %v1148 = vsel %vm936, %v1130, -inf
        %1149 = vmax.xlane.f32.xlu0 %v1148
        %v1150 = vpop.xlane.xlu0 %1149
        %v1151 = vsel %vm936, %v1131, -inf
        %1152 = vmax.xlane.f32.xlu0 %v1151
        %v1153 = vpop.xlane.xlu0 %1152
        %v1154 = vsel %vm936, %v1132, -inf
        %1155 = vmax.xlane.f32.xlu0 %v1154
        %v1156 = vpop.xlane.xlu0 %1155
        %v1157 = vsub.f32 %v1125, %v1135
        %v1158 = vsub.f32 %v1126, %v1138
        %v1159 = vsub.f32 %v1127, %v1141
        %v1160 = vsub.f32 %v1128, %v1144
        %v1161 = vsub.f32 %v1129, %v1147
        %v1162 = vsub.f32 %v1130, %v1150
        %v1163 = vsub.f32 %v1131, %v1153
        %v1164 = vsub.f32 %v1132, %v1156
        %v1165 = vmul.f32 %v1157, 1.442695
        %v1166 = vpow.pop %v1165
        %v1167 = vmul.f32 %v1158, 1.442695
        %v1168 = vpow.pop %v1167
        %v1169 = vmul.f32 %v1159, 1.442695
        %v1170 = vpow.pop %v1169
        %v1171 = vmul.f32 %v1160, 1.442695
        %v1172 = vpow.pop %v1171
        %v1173 = vmul.f32 %v1161, 1.442695
        %v1174 = vpow.pop %v1173
        %v1175 = vmul.f32 %v1162, 1.442695
        %v1176 = vpow.pop %v1175
        %v1177 = vmul.f32 %v1163, 1.442695
        %v1178 = vpow.pop %v1177
        %v1179 = vmul.f32 %v1164, 1.442695
        %v1180 = vpow.pop %v1179
        %v1181 = vsel %vm936, %v1166, 0.0
        %1182 = vadd.xlane.f32.xlu0 %v1181
        %v1183 = vpop.xlane.xlu0 %1182
        %v1184 = vsel %vm936, %v1168, 0.0
        %1185 = vadd.xlane.f32.xlu0 %v1184
        %v1186 = vpop.xlane.xlu0 %1185
        %v1187 = vsel %vm936, %v1170, 0.0
        %1188 = vadd.xlane.f32.xlu0 %v1187
        %v1189 = vpop.xlane.xlu0 %1188
        %v1190 = vsel %vm936, %v1172, 0.0
        %1191 = vadd.xlane.f32.xlu0 %v1190
        %v1192 = vpop.xlane.xlu0 %1191
        %v1193 = vsel %vm936, %v1174, 0.0
        %1194 = vadd.xlane.f32.xlu0 %v1193
        %v1195 = vpop.xlane.xlu0 %1194
        %v1196 = vsel %vm936, %v1176, 0.0
        %1197 = vadd.xlane.f32.xlu0 %v1196
        %v1198 = vpop.xlane.xlu0 %1197
        %v1199 = vsel %vm936, %v1178, 0.0
        %1200 = vadd.xlane.f32.xlu0 %v1199
        %v1201 = vpop.xlane.xlu0 %1200
        %v1202 = vsel %vm936, %v1180, 0.0
        %1203 = vadd.xlane.f32.xlu0 %v1202
        %v1204 = vpop.xlane.xlu0 %1203
        %v1205 = vrcp.pop %v1183
        %v1206 = vrcp.pop %v1186
        %v1207 = vrcp.pop %v1189
        %v1208 = vrcp.pop %v1192
        %v1209 = vrcp.pop %v1195
        %v1210 = vrcp.pop %v1198
        %v1211 = vrcp.pop %v1201
        %v1212 = vrcp.pop %v1204
        %v1213 = vmul.f32 %v1166, %v1205
        %v1214 = vmul.f32 %v1168, %v1206
        %v1215 = vmul.f32 %v1170, %v1207
        %v1216 = vmul.f32 %v1172, %v1208
        %v1217 = vmul.f32 %v1174, %v1209
        %v1218 = vmul.f32 %v1176, %v1210
        %v1219 = vmul.f32 %v1178, %v1211
        %v1220 = vmul.f32 %v1180, %v1212
        %v1221 = vpack.c.bf16 %v1214, %v1213
        %v1222 = vpack.c.bf16 %v1216, %v1215
        %v1223 = vpack.c.bf16 %v1218, %v1217
        %v1224 = vpack.c.bf16 %v1220, %v1219
        %1226 = vrot.lane.b32.xlu0 %v932, 96
        %v1227 = vpop.permute.xlu0 %1226
        %v1229 = vsel %vm936, %v1221, 0
        %vm1231 = vcmask 1043456
        %v1233 = vsel %vm1231, %v1227, 0
        %1235 = vmatprep.subr.bf16.mxu0 0
        %1236 = vmatpush1.bf16.msra.mxu0 %v1233
        %1237 = vmatprep.subr.bf16.mxu0 0
        %1238 = vmatpush1.bf16.msra.mxu0 0
        %1239 = vmatprep.subr.bf16.mxu0 0
        %1240 = vmatpush1.bf16.msra.mxu0 0
        %1241 = vmatprep.subr.bf16.mxu0 0
        %1242 = vmatpush1.bf16.msra.mxu0 0
        %1243 = vmatprep.subr.bf16.mxu0 0
        %1244 = vmatpush1.bf16.msra.mxu0 0
        %1245 = vmatprep.subr.bf16.mxu0 0
        %1246 = vmatpush1.bf16.msra.mxu0 0
        %1247 = vmatprep.subr.bf16.mxu0 0
        %1248 = vmatpush1.bf16.msra.mxu0 0
        %1249 = vmatprep.subr.bf16.mxu0 0
        %1250 = vmatpush1.bf16.msra.mxu0 0
        %1251 = vmatprep.subr.bf16.mxu0 0
        %1252 = vmatpush1.bf16.msra.mxu0 0
        %1253 = vmatprep.subr.bf16.mxu0 0
        %1254 = vmatpush1.bf16.msra.mxu0 0
        %1255 = vmatprep.subr.bf16.mxu0 0
        %1256 = vmatpush1.bf16.msra.mxu0 0
        %1257 = vmatprep.subr.bf16.mxu0 0
        %1258 = vmatpush1.bf16.msra.mxu0 0
        %1259 = vmatprep.subr.bf16.mxu0 0
        %1260 = vmatpush1.bf16.msra.mxu0 0
        %1261 = vmatprep.subr.bf16.mxu0 0
        %1262 = vmatpush1.bf16.msra.mxu0 0
        %1263 = vmatprep.subr.bf16.mxu0 0
        %1264 = vmatpush1.bf16.msra.mxu0 0
        %1265 = vmatprep.subr.bf16.mxu0 0
        %1266 = vmatpush1.bf16.msra.mxu0 0
        %1267 = vmatprep.mubr.bf16.mxu0 0
        %1268 = vmatmul.mubr.bf16.gmra.mrb[0].mxu0 %v1229
        %v1269 = vpop.f32.mrb[0].mxu0
        %v1270 = vadd.f32 0.0, %v1269
        %v1271 = vpop.f32.mrb[0].mxu0
        %v1272 = vpop.f32.mrb[0].mxu0
        %v1273 = vadd.f32 0.0, %v1272
        %v1274 = vpop.f32.mrb[0].mxu0
        %1275 = vdwg.mxu0
        %1277 = vrot.lane.b32.xlu0 %v933, 96
        %v1278 = vpop.permute.xlu0 %1277
        %v1280 = vsel %vm936, %v1222, 0
        %v1283 = vsel %vm1231, %v1278, 0
        %1285 = vmatprep.subr.bf16.mxu0 0
        %1286 = vmatpush1.bf16.msra.mxu0 %v1283
        %1287 = vmatprep.subr.bf16.mxu0 0
        %1288 = vmatpush1.bf16.msra.mxu0 0
        %1289 = vmatprep.subr.bf16.mxu0 0
        %1290 = vmatpush1.bf16.msra.mxu0 0
        %1291 = vmatprep.subr.bf16.mxu0 0
        %1292 = vmatpush1.bf16.msra.mxu0 0
        %1293 = vmatprep.subr.bf16.mxu0 0
        %1294 = vmatpush1.bf16.msra.mxu0 0
        %1295 = vmatprep.subr.bf16.mxu0 0
        %1296 = vmatpush1.bf16.msra.mxu0 0
        %1297 = vmatprep.subr.bf16.mxu0 0
        %1298 = vmatpush1.bf16.msra.mxu0 0
        %1299 = vmatprep.subr.bf16.mxu0 0
        %1300 = vmatpush1.bf16.msra.mxu0 0
        %1301 = vmatprep.subr.bf16.mxu0 0
        %1302 = vmatpush1.bf16.msra.mxu0 0
        %1303 = vmatprep.subr.bf16.mxu0 0
        %1304 = vmatpush1.bf16.msra.mxu0 0
        %1305 = vmatprep.subr.bf16.mxu0 0
        %1306 = vmatpush1.bf16.msra.mxu0 0
        %1307 = vmatprep.subr.bf16.mxu0 0
        %1308 = vmatpush1.bf16.msra.mxu0 0
        %1309 = vmatprep.subr.bf16.mxu0 0
        %1310 = vmatpush1.bf16.msra.mxu0 0
        %1311 = vmatprep.subr.bf16.mxu0 0
        %1312 = vmatpush1.bf16.msra.mxu0 0
        %1313 = vmatprep.subr.bf16.mxu0 0
        %1314 = vmatpush1.bf16.msra.mxu0 0
        %1315 = vmatprep.subr.bf16.mxu0 0
        %1316 = vmatpush1.bf16.msra.mxu0 0
        %1317 = vmatprep.mubr.bf16.mxu0 0
        %1318 = vmatmul.mubr.bf16.gmra.mrb[0].mxu0 %v1280
        %v1319 = vpop.f32.mrb[0].mxu0
        %v1320 = vadd.f32 0.0, %v1319
        %v1321 = vpop.f32.mrb[0].mxu0
        %v1322 = vpop.f32.mrb[0].mxu0
        %v1323 = vadd.f32 0.0, %v1322
        %v1324 = vpop.f32.mrb[0].mxu0
        %1325 = vdwg.mxu0
        %1327 = vrot.lane.b32.xlu0 %v934, 96
        %v1328 = vpop.permute.xlu0 %1327
        %v1330 = vsel %vm936, %v1223, 0
        %v1333 = vsel %vm1231, %v1328, 0
        %1335 = vmatprep.subr.bf16.mxu0 0
        %1336 = vmatpush1.bf16.msra.mxu0 %v1333
        %1337 = vmatprep.subr.bf16.mxu0 0
        %1338 = vmatpush1.bf16.msra.mxu0 0
        %1339 = vmatprep.subr.bf16.mxu0 0
        %1340 = vmatpush1.bf16.msra.mxu0 0
        %1341 = vmatprep.subr.bf16.mxu0 0
        %1342 = vmatpush1.bf16.msra.mxu0 0
        %1343 = vmatprep.subr.bf16.mxu0 0
        %1344 = vmatpush1.bf16.msra.mxu0 0
        %1345 = vmatprep.subr.bf16.mxu0 0
        %1346 = vmatpush1.bf16.msra.mxu0 0
        %1347 = vmatprep.subr.bf16.mxu0 0
        %1348 = vmatpush1.bf16.msra.mxu0 0
        %1349 = vmatprep.subr.bf16.mxu0 0
        %1350 = vmatpush1.bf16.msra.mxu0 0
        %1351 = vmatprep.subr.bf16.mxu0 0
        %1352 = vmatpush1.bf16.msra.mxu0 0
        %1353 = vmatprep.subr.bf16.mxu0 0
        %1354 = vmatpush1.bf16.msra.mxu0 0
        %1355 = vmatprep.subr.bf16.mxu0 0
        %1356 = vmatpush1.bf16.msra.mxu0 0
        %1357 = vmatprep.subr.bf16.mxu0 0
        %1358 = vmatpush1.bf16.msra.mxu0 0
        %1359 = vmatprep.subr.bf16.mxu0 0
        %1360 = vmatpush1.bf16.msra.mxu0 0
        %1361 = vmatprep.subr.bf16.mxu0 0
        %1362 = vmatpush1.bf16.msra.mxu0 0
        %1363 = vmatprep.subr.bf16.mxu0 0
        %1364 = vmatpush1.bf16.msra.mxu0 0
        %1365 = vmatprep.subr.bf16.mxu0 0
        %1366 = vmatpush1.bf16.msra.mxu0 0
        %1367 = vmatprep.mubr.bf16.mxu0 0
        %1368 = vmatmul.mubr.bf16.gmra.mrb[0].mxu0 %v1330
        %v1369 = vpop.f32.mrb[0].mxu0
        %v1370 = vadd.f32 0.0, %v1369
        %v1371 = vpop.f32.mrb[0].mxu0
        %v1372 = vpop.f32.mrb[0].mxu0
        %v1373 = vadd.f32 0.0, %v1372
        %v1374 = vpop.f32.mrb[0].mxu0
        %1375 = vdwg.mxu0
        %1377 = vrot.lane.b32.xlu0 %v935, 96
        %v1378 = vpop.permute.xlu0 %1377
        %v1380 = vsel %vm936, %v1224, 0
        %v1383 = vsel %vm1231, %v1378, 0
        %1385 = vmatprep.subr.bf16.mxu0 0
        %1386 = vmatpush1.bf16.msra.mxu0 %v1383
        %1387 = vmatprep.subr.bf16.mxu0 0
        %1388 = vmatpush1.bf16.msra.mxu0 0
        %1389 = vmatprep.subr.bf16.mxu0 0
        %1390 = vmatpush1.bf16.msra.mxu0 0
        %1391 = vmatprep.subr.bf16.mxu0 0
        %1392 = vmatpush1.bf16.msra.mxu0 0
        %1393 = vmatprep.subr.bf16.mxu0 0
        %1394 = vmatpush1.bf16.msra.mxu0 0
        %1395 = vmatprep.subr.bf16.mxu0 0
        %1396 = vmatpush1.bf16.msra.mxu0 0
        %1397 = vmatprep.subr.bf16.mxu0 0
        %1398 = vmatpush1.bf16.msra.mxu0 0
        %1399 = vmatprep.subr.bf16.mxu0 0
        %1400 = vmatpush1.bf16.msra.mxu0 0
        %1401 = vmatprep.subr.bf16.mxu0 0
        %1402 = vmatpush1.bf16.msra.mxu0 0
        %1403 = vmatprep.subr.bf16.mxu0 0
        %1404 = vmatpush1.bf16.msra.mxu0 0
        %1405 = vmatprep.subr.bf16.mxu0 0
        %1406 = vmatpush1.bf16.msra.mxu0 0
        %1407 = vmatprep.subr.bf16.mxu0 0
        %1408 = vmatpush1.bf16.msra.mxu0 0
        %1409 = vmatprep.subr.bf16.mxu0 0
        %1410 = vmatpush1.bf16.msra.mxu0 0
        %1411 = vmatprep.subr.bf16.mxu0 0
        %1412 = vmatpush1.bf16.msra.mxu0 0
        %1413 = vmatprep.subr.bf16.mxu0 0
        %1414 = vmatpush1.bf16.msra.mxu0 0
        %1415 = vmatprep.subr.bf16.mxu0 0
        %1416 = vmatpush1.bf16.msra.mxu0 0
        %1417 = vmatprep.mubr.bf16.mxu0 0
        %1418 = vmatmul.mubr.bf16.gmra.mrb[0].mxu0 %v1380
        %v1419 = vpop.f32.mrb[0].mxu0
        %v1420 = vadd.f32 0.0, %v1419
        %v1421 = vpop.f32.mrb[0].mxu0
        %v1422 = vpop.f32.mrb[0].mxu0
        %v1423 = vadd.f32 0.0, %v1422
        %v1424 = vpop.f32.mrb[0].mxu0
        %1425 = vdwg.mxu0
        %1428 = vrot.lane.b32.xlu0 %v1320, 8
        %v1429 = vpop.permute.xlu0 %1428
        %1430 = vrot.lane.b32.xlu0 %v1323, 8
        %v1431 = vpop.permute.xlu0 %1430
        %1436 = vrot.lane.b32.xlu0 %v1370, 16
        %v1437 = vpop.permute.xlu0 %1436
        %1438 = vrot.lane.b32.xlu0 %v1373, 16
        %v1439 = vpop.permute.xlu0 %1438
        %1444 = vrot.lane.b32.xlu0 %v1420, 24
        %v1445 = vpop.permute.xlu0 %1444
        %1446 = vrot.lane.b32.xlu0 %v1423, 24
        %v1447 = vpop.permute.xlu0 %1446
        %v1450 = vsel %vm936, %v1270, %v1429
        %v1451 = vsel %vm936, %v1273, %v1431
        %vm1452 = vcmask 130048
        %v1453 = vsel %vm1452, %v1450, %v1437
        %v1454 = vsel %vm1452, %v1451, %v1439
        %vm1455 = vcmask 195584
        %v1456 = vsel %vm1455, %v1453, %v1445
        %v1457 = vsel %vm1455, %v1454, %v1447
        %v1458 = vld [vmem:[%s6] sm:$0xf]
        %v1459 = vld [vmem:[%s6 + $0x4] sm:$0xf]
        %v1460 = vld [vmem:[%s6 + $0x8] sm:$0xf]
        %v1461 = vld [vmem:[%s6 + $0xc] sm:$0xf]
        %v1462 = vpack.c.bf16 %v1457, %v1456
        %v1463 = vld [vmem:[#allocation6] sm:$0x1]
        %v1465 = vlaneseq
        %v1466 = vshrl.u32 %v1465, 7
        %v1467 = vsub.s32 0, %v1466
        %v1468 = vrot.slane %v1463, %v1467
        %v1474 = vunpack.c.l.b16 %v1458
        %v1475 = vunpack.c.l.b16 %v1459
        %v1476 = vunpack.c.l.b16 %v1460
        %v1477 = vunpack.c.l.b16 %v1461
        %v1478 = vpack.c.b16 %v1475, %v1474
        %v1479 = vpack.c.b16 %v1477, %v1476
        %v1483 = vsel %vm800, %v1462, 0
        %1485 = vmatprep.subr.bf16.mxu0 0
        %1486 = vmatpush1.bf16.msra.mxu0 %v1478
        %1487 = vmatprep.subr.bf16.mxu0 0
        %1488 = vmatpush1.bf16.msra.mxu0 %v1479
        %1489 = vmatprep.subr.bf16.mxu0 0
        %1490 = vmatpush1.bf16.msra.mxu0 0
        %1491 = vmatprep.subr.bf16.mxu0 0
        %1492 = vmatpush1.bf16.msra.mxu0 0
        %1493 = vmatprep.subr.bf16.mxu0 0
        %1494 = vmatpush1.bf16.msra.mxu0 0
        %1495 = vmatprep.subr.bf16.mxu0 0
        %1496 = vmatpush1.bf16.msra.mxu0 0
        %1497 = vmatprep.subr.bf16.mxu0 0
        %1498 = vmatpush1.bf16.msra.mxu0 0
        %1499 = vmatprep.subr.bf16.mxu0 0
        %1500 = vmatpush1.bf16.msra.mxu0 0
        %1501 = vmatprep.subr.bf16.mxu0 0
        %1502 = vmatpush1.bf16.msra.mxu0 0
        %1503 = vmatprep.subr.bf16.mxu0 0
        %1504 = vmatpush1.bf16.msra.mxu0 0
        %1505 = vmatprep.subr.bf16.mxu0 0
        %1506 = vmatpush1.bf16.msra.mxu0 0
        %1507 = vmatprep.subr.bf16.mxu0 0
        %1508 = vmatpush1.bf16.msra.mxu0 0
        %1509 = vmatprep.subr.bf16.mxu0 0
        %1510 = vmatpush1.bf16.msra.mxu0 0
        %1511 = vmatprep.subr.bf16.mxu0 0
        %1512 = vmatpush1.bf16.msra.mxu0 0
        %1513 = vmatprep.subr.bf16.mxu0 0
        %1514 = vmatpush1.bf16.msra.mxu0 0
        %1515 = vmatprep.subr.bf16.mxu0 0
        %1516 = vmatpush1.bf16.msra.mxu0 0
        %1517 = vmatprep.mubr.bf16.mxu0 0
        %1518 = vmatmul.mubr.bf16.gmra.mrb[0].mxu0 %v1483
        %v1519 = vpop.f32.mrb[0].mxu0
        %v1520 = vadd.f32 %v1468, %v1519
        %v1521 = vpop.f32.mrb[0].mxu0
        %v1522 = vpop.f32.mrb[0].mxu0
        %v1523 = vadd.f32 %v1468, %v1522
        %v1524 = vpop.f32.mrb[0].mxu0
        %1525 = vdwg.mxu0
        %v1526 = vadd.f32 %v1520, %v767
        %v1527 = vadd.f32 %v1523, %v768
        %v1528 = vsel %vm800, %v1526, 0.0
        %1529 = vadd.xlane.f32.xlu0 %v1528
        %v1530 = vpop.xlane.xlu0 %1529
        %v1531 = vsel %vm800, %v1527, 0.0
        %1532 = vadd.xlane.f32.xlu0 %v1531
        %v1533 = vpop.xlane.xlu0 %1532
        %v1534 = vrcp.pop 32.0
        %v1535 = vmul.f32 %v1530, %v1534
        %v1536 = vmul.f32 %v1533, %v1534
        %v1537 = vsub.f32 %v1526, %v1535
        %v1538 = vsub.f32 %v1527, %v1536
        %v1539 = vmul.f32 %v1537, %v1537
        %v1540 = vmul.f32 %v1538, %v1538
        %v1541 = vsel %vm800, %v1539, 0.0
        %1542 = vadd.xlane.f32.xlu0 %v1541
        %v1543 = vpop.xlane.xlu0 %1542
        %v1544 = vsel %vm800, %v1540, 0.0
        %1545 = vadd.xlane.f32.xlu0 %v1544
        %v1546 = vpop.xlane.xlu0 %1545
        %v1547 = vmul.f32 %v1543, %v1534
        %v1548 = vmul.f32 %v1546, %v1534
        %v1549 = vadd.f32 %v1547, 1e-05
        %v1550 = vadd.f32 %v1548, 1e-05
        %v1551 = vrsqrt.pop %v1549
        %v1552 = vrsqrt.pop %v1550
        %v1553 = vmul.f32 %v1537, %v1551
        %v1554 = vmul.f32 %v1538, %v1552
        %v1555 = vlaneseq
        %v1556 = vshrl.u32 %v1555, 7
        %v1557 = vsub.s32 0, %v1556
        %v1558 = vrot.slane %v766, %v1557
        %v1559 = vmul.f32 %v1553, %v1558
        %v1560 = vmul.f32 %v1554, %v1558
        %v1561 = vlaneseq
        %v1562 = vshrl.u32 %v1561, 7
        %v1563 = vsub.s32 1, %v1562
        %v1564 = vrot.slane %v766, %v1563
        %v1565 = vadd.f32 %v1559, %v1564
        %v1566 = vadd.f32 %v1560, %v1564
        %v1567 = vld [vmem:[%s8] sm:$0xf]
        %v1568 = vld [vmem:[%s8 + $0x4] sm:$0xf]
        %v1569 = vld [vmem:[%s8 + $0x8] sm:$0xf]
        %v1570 = vld [vmem:[%s8 + $0xc] sm:$0xf]
        %v1571 = vld [vmem:[#allocation8] sm:$0x1]
        %v1572 = vpack.c.bf16 %v770, %v769
        %v1574 = vlaneseq
        %v1575 = vshrl.u32 %v1574, 7
        %v1576 = vsub.s32 0, %v1575
        %v1577 = vrot.slane %v1571, %v1576
        %v1583 = vunpack.c.l.b16 %v1567
        %v1584 = vunpack.c.l.b16 %v1568
        %v1585 = vunpack.c.l.b16 %v1569
        %v1586 = vunpack.c.l.b16 %v1570
        %v1587 = vpack.c.b16 %v1584, %v1583
        %v1588 = vpack.c.b16 %v1586, %v1585
        %v1592 = vsel %vm800, %v1572, 0
        %1594 = vmatprep.subr.bf16.mxu0 0
        %1595 = vmatpush1.bf16.msra.mxu0 %v1587
        %1596 = vmatprep.subr.bf16.mxu0 0
        %1597 = vmatpush1.bf16.msra.mxu0 %v1588
        %1598 = vmatprep.subr.bf16.mxu0 0
        %1599 = vmatpush1.bf16.msra.mxu0 0
        %1600 = vmatprep.subr.bf16.mxu0 0
        %1601 = vmatpush1.bf16.msra.mxu0 0
        %1602 = vmatprep.subr.bf16.mxu0 0
        %1603 = vmatpush1.bf16.msra.mxu0 0
        %1604 = vmatprep.subr.bf16.mxu0 0
        %1605 = vmatpush1.bf16.msra.mxu0 0
        %1606 = vmatprep.subr.bf16.mxu0 0
        %1607 = vmatpush1.bf16.msra.mxu0 0
        %1608 = vmatprep.subr.bf16.mxu0 0
        %1609 = vmatpush1.bf16.msra.mxu0 0
        %1610 = vmatprep.subr.bf16.mxu0 0
        %1611 = vmatpush1.bf16.msra.mxu0 0
        %1612 = vmatprep.subr.bf16.mxu0 0
        %1613 = vmatpush1.bf16.msra.mxu0 0
        %1614 = vmatprep.subr.bf16.mxu0 0
        %1615 = vmatpush1.bf16.msra.mxu0 0
        %1616 = vmatprep.subr.bf16.mxu0 0
        %1617 = vmatpush1.bf16.msra.mxu0 0
        %1618 = vmatprep.subr.bf16.mxu0 0
        %1619 = vmatpush1.bf16.msra.mxu0 0
        %1620 = vmatprep.subr.bf16.mxu0 0
        %1621 = vmatpush1.bf16.msra.mxu0 0
        %1622 = vmatprep.subr.bf16.mxu0 0
        %1623 = vmatpush1.bf16.msra.mxu0 0
        %1624 = vmatprep.subr.bf16.mxu0 0
        %1625 = vmatpush1.bf16.msra.mxu0 0
        %1626 = vmatprep.mubr.bf16.mxu0 0
        %1627 = vmatmul.mubr.bf16.gmra.mrb[0].mxu0 %v1592
        %v1628 = vpop.f32.mrb[0].mxu0
        %v1629 = vadd.f32 %v1577, %v1628
        %v1630 = vpop.f32.mrb[0].mxu0
        %v1631 = vpop.f32.mrb[0].mxu0
        %v1632 = vadd.f32 %v1577, %v1631
        %v1633 = vpop.f32.mrb[0].mxu0
        %1634 = vdwg.mxu0
        %v1635 = vpack.c.bf16 %v1566, %v1565
        %1636 = vrot.lane.b32.xlu0 %v1587, 96
        %v1637 = vpop.permute.xlu0 %1636
        %1638 = vrot.lane.b32.xlu0 %v1588, 96
        %v1639 = vpop.permute.xlu0 %1638
        %1642 = vrot.lane.b32.xlu0 %v1577, 96
        %v1643 = vpop.permute.xlu0 %1642
        %v1646 = vsel %vm800, %v1635, 0
        %1648 = vmatprep.subr.bf16.mxu0 0
        %1649 = vmatpush1.bf16.msra.mxu0 %v1637
        %1650 = vmatprep.subr.bf16.mxu0 0
        %1651 = vmatpush1.bf16.msra.mxu0 %v1639
        %1652 = vmatprep.subr.bf16.mxu0 0
        %1653 = vmatpush1.bf16.msra.mxu0 0
        %1654 = vmatprep.subr.bf16.mxu0 0
        %1655 = vmatpush1.bf16.msra.mxu0 0
        %1656 = vmatprep.subr.bf16.mxu0 0
        %1657 = vmatpush1.bf16.msra.mxu0 0
        %1658 = vmatprep.subr.bf16.mxu0 0
        %1659 = vmatpush1.bf16.msra.mxu0 0
        %1660 = vmatprep.subr.bf16.mxu0 0
        %1661 = vmatpush1.bf16.msra.mxu0 0
        %1662 = vmatprep.subr.bf16.mxu0 0
        %1663 = vmatpush1.bf16.msra.mxu0 0
        %1664 = vmatprep.subr.bf16.mxu0 0
        %1665 = vmatpush1.bf16.msra.mxu0 0
        %1666 = vmatprep.subr.bf16.mxu0 0
        %1667 = vmatpush1.bf16.msra.mxu0 0
        %1668 = vmatprep.subr.bf16.mxu0 0
        %1669 = vmatpush1.bf16.msra.mxu0 0
        %1670 = vmatprep.subr.bf16.mxu0 0
        %1671 = vmatpush1.bf16.msra.mxu0 0
        %1672 = vmatprep.subr.bf16.mxu0 0
        %1673 = vmatpush1.bf16.msra.mxu0 0
        %1674 = vmatprep.subr.bf16.mxu0 0
        %1675 = vmatpush1.bf16.msra.mxu0 0
        %1676 = vmatprep.subr.bf16.mxu0 0
        %1677 = vmatpush1.bf16.msra.mxu0 0
        %1678 = vmatprep.subr.bf16.mxu0 0
        %1679 = vmatpush1.bf16.msra.mxu0 0
        %1680 = vmatprep.mubr.bf16.mxu0 0
        %1681 = vmatmul.mubr.bf16.gmra.mrb[0].mxu0 %v1646
        %v1682 = vpop.f32.mrb[0].mxu0
        %v1683 = vadd.f32 %v1643, %v1682
        %v1684 = vpop.f32.mrb[0].mxu0
        %v1685 = vpop.f32.mrb[0].mxu0
        %v1686 = vadd.f32 %v1643, %v1685
        %v1687 = vpop.f32.mrb[0].mxu0
        %1688 = vdwg.mxu0
        %1691 = vrot.lane.b32.xlu0 %v1629, 120
        %v1692 = vpop.permute.xlu0 %1691
        %1693 = vrot.lane.b32.xlu0 %v1632, 120
        %v1694 = vpop.permute.xlu0 %1693
        %1697 = vrot.lane.b32.xlu0 %v1629, 112
        %v1698 = vpop.permute.xlu0 %1697
        %1699 = vrot.lane.b32.xlu0 %v1632, 112
        %v1700 = vpop.permute.xlu0 %1699
        %1703 = vrot.lane.b32.xlu0 %v1629, 104
        %v1704 = vpop.permute.xlu0 %1703
        %1705 = vrot.lane.b32.xlu0 %v1632, 104
        %v1706 = vpop.permute.xlu0 %1705
        %1711 = vrot.lane.b32.xlu0 %v1683, 120
        %v1712 = vpop.permute.xlu0 %1711
        %1713 = vrot.lane.b32.xlu0 %v1686, 120
        %v1714 = vpop.permute.xlu0 %1713
        %1717 = vrot.lane.b32.xlu0 %v1683, 112
        %v1718 = vpop.permute.xlu0 %1717
        %1719 = vrot.lane.b32.xlu0 %v1686, 112
        %v1720 = vpop.permute.xlu0 %1719
        %1723 = vrot.lane.b32.xlu0 %v1683, 104
        %v1724 = vpop.permute.xlu0 %1723
        %1725 = vrot.lane.b32.xlu0 %v1686, 104
        %v1726 = vpop.permute.xlu0 %1725
        %v1729 = vpack.c.bf16 %v1632, %v1629
        %v1730 = vpack.c.bf16 %v1694, %v1692
        %v1731 = vpack.c.bf16 %v1700, %v1698
        %v1732 = vpack.c.bf16 %v1706, %v1704
        %v1733 = vpack.c.bf16 %v1686, %v1683
        %v1734 = vpack.c.bf16 %v1714, %v1712
        %v1735 = vpack.c.bf16 %v1720, %v1718
        %v1736 = vpack.c.bf16 %v1726, %v1724
        %v1738 = vsel %vm936, %v1729, 0
        %v1741 = vsel %vm936, %v1733, 0
        %1743 = vmatprep.subr.bf16.mxu0 0
        %1744 = vmatpush1.bf16.xpose.msra.mxu0 %v1741
        %1745 = vmatprep.subr.bf16.mxu0 0
        %1746 = vmatpush1.bf16.xpose.msra.mxu0 0
        %1747 = vmatprep.subr.bf16.mxu0 0
        %1748 = vmatpush1.bf16.xpose.msra.mxu0 0
        %1749 = vmatprep.subr.bf16.mxu0 0
        %1750 = vmatpush1.bf16.xpose.msra.mxu0 0
        %1751 = vmatprep.subr.bf16.mxu0 0
        %1752 = vmatpush1.bf16.xpose.msra.mxu0 0
        %1753 = vmatprep.subr.bf16.mxu0 0
        %1754 = vmatpush1.bf16.xpose.msra.mxu0 0
        %1755 = vmatprep.subr.bf16.mxu0 0
        %1756 = vmatpush1.bf16.xpose.msra.mxu0 0
        %1757 = vmatprep.subr.bf16.mxu0 0
        %1758 = vmatpush1.bf16.xpose.msra.mxu0 0
        %1759 = vmatprep.subr.bf16.mxu0 0
        %1760 = vmatpush1.bf16.xpose.msra.mxu0 0
        %1761 = vmatprep.subr.bf16.mxu0 0
        %1762 = vmatpush1.bf16.xpose.msra.mxu0 0
        %1763 = vmatprep.subr.bf16.mxu0 0
        %1764 = vmatpush1.bf16.xpose.msra.mxu0 0
        %1765 = vmatprep.subr.bf16.mxu0 0
        %1766 = vmatpush1.bf16.xpose.msra.mxu0 0
        %1767 = vmatprep.subr.bf16.mxu0 0
        %1768 = vmatpush1.bf16.xpose.msra.mxu0 0
        %1769 = vmatprep.subr.bf16.mxu0 0
        %1770 = vmatpush1.bf16.xpose.msra.mxu0 0
        %1771 = vmatprep.subr.bf16.mxu0 0
        %1772 = vmatpush1.bf16.xpose.msra.mxu0 0
        %1773 = vmatprep.subr.bf16.mxu0 0
        %1774 = vmatpush1.bf16.xpose.msra.mxu0 0
        %1775 = vmatprep.mubr.bf16.mxu0 0
        %1776 = vmatmul.mubr.bf16.gmra.mrb[0].mxu0 %v1738
        %v1777 = vpop.f32.mrb[0].mxu0
        %v1778 = vadd.f32 0.0, %v1777
        %v1779 = vpop.f32.mrb[0].mxu0
        %v1780 = vpop.f32.mrb[0].mxu0
        %v1781 = vadd.f32 0.0, %v1780
        %v1782 = vpop.f32.mrb[0].mxu0
        %1783 = vdwg.mxu0
        %v1785 = vsel %vm936, %v1730, 0
        %v1788 = vsel %vm936, %v1734, 0
        %1790 = vmatprep.subr.bf16.mxu0 0
        %1791 = vmatpush1.bf16.xpose.msra.mxu0 %v1788
        %1792 = vmatprep.subr.bf16.mxu0 0
        %1793 = vmatpush1.bf16.xpose.msra.mxu0 0
        %1794 = vmatprep.subr.bf16.mxu0 0
        %1795 = vmatpush1.bf16.xpose.msra.mxu0 0
        %1796 = vmatprep.subr.bf16.mxu0 0
        %1797 = vmatpush1.bf16.xpose.msra.mxu0 0
        %1798 = vmatprep.subr.bf16.mxu0 0
        %1799 = vmatpush1.bf16.xpose.msra.mxu0 0
        %1800 = vmatprep.subr.bf16.mxu0 0
        %1801 = vmatpush1.bf16.xpose.msra.mxu0 0
        %1802 = vmatprep.subr.bf16.mxu0 0
        %1803 = vmatpush1.bf16.xpose.msra.mxu0 0
        %1804 = vmatprep.subr.bf16.mxu0 0
        %1805 = vmatpush1.bf16.xpose.msra.mxu0 0
        %1806 = vmatprep.subr.bf16.mxu0 0
        %1807 = vmatpush1.bf16.xpose.msra.mxu0 0
        %1808 = vmatprep.subr.bf16.mxu0 0
        %1809 = vmatpush1.bf16.xpose.msra.mxu0 0
        %1810 = vmatprep.subr.bf16.mxu0 0
        %1811 = vmatpush1.bf16.xpose.msra.mxu0 0
        %1812 = vmatprep.subr.bf16.mxu0 0
        %1813 = vmatpush1.bf16.xpose.msra.mxu0 0
        %1814 = vmatprep.subr.bf16.mxu0 0
        %1815 = vmatpush1.bf16.xpose.msra.mxu0 0
        %1816 = vmatprep.subr.bf16.mxu0 0
        %1817 = vmatpush1.bf16.xpose.msra.mxu0 0
        %1818 = vmatprep.subr.bf16.mxu0 0
        %1819 = vmatpush1.bf16.xpose.msra.mxu0 0
        %1820 = vmatprep.subr.bf16.mxu0 0
        %1821 = vmatpush1.bf16.xpose.msra.mxu0 0
        %1822 = vmatprep.mubr.bf16.mxu0 0
        %1823 = vmatmul.mubr.bf16.gmra.mrb[0].mxu0 %v1785
        %v1824 = vpop.f32.mrb[0].mxu0
        %v1825 = vadd.f32 0.0, %v1824
        %v1826 = vpop.f32.mrb[0].mxu0
        %v1827 = vpop.f32.mrb[0].mxu0
        %v1828 = vadd.f32 0.0, %v1827
        %v1829 = vpop.f32.mrb[0].mxu0
        %1830 = vdwg.mxu0
        %v1832 = vsel %vm936, %v1731, 0
        %v1835 = vsel %vm936, %v1735, 0
        %1837 = vmatprep.subr.bf16.mxu0 0
        %1838 = vmatpush1.bf16.xpose.msra.mxu0 %v1835
        %1839 = vmatprep.subr.bf16.mxu0 0
        %1840 = vmatpush1.bf16.xpose.msra.mxu0 0
        %1841 = vmatprep.subr.bf16.mxu0 0
        %1842 = vmatpush1.bf16.xpose.msra.mxu0 0
        %1843 = vmatprep.subr.bf16.mxu0 0
        %1844 = vmatpush1.bf16.xpose.msra.mxu0 0
        %1845 = vmatprep.subr.bf16.mxu0 0
        %1846 = vmatpush1.bf16.xpose.msra.mxu0 0
        %1847 = vmatprep.subr.bf16.mxu0 0
        %1848 = vmatpush1.bf16.xpose.msra.mxu0 0
        %1849 = vmatprep.subr.bf16.mxu0 0
        %1850 = vmatpush1.bf16.xpose.msra.mxu0 0
        %1851 = vmatprep.subr.bf16.mxu0 0
        %1852 = vmatpush1.bf16.xpose.msra.mxu0 0
        %1853 = vmatprep.subr.bf16.mxu0 0
        %1854 = vmatpush1.bf16.xpose.msra.mxu0 0
        %1855 = vmatprep.subr.bf16.mxu0 0
        %1856 = vmatpush1.bf16.xpose.msra.mxu0 0
        %1857 = vmatprep.subr.bf16.mxu0 0
        %1858 = vmatpush1.bf16.xpose.msra.mxu0 0
        %1859 = vmatprep.subr.bf16.mxu0 0
        %1860 = vmatpush1.bf16.xpose.msra.mxu0 0
        %1861 = vmatprep.subr.bf16.mxu0 0
        %1862 = vmatpush1.bf16.xpose.msra.mxu0 0
        %1863 = vmatprep.subr.bf16.mxu0 0
        %1864 = vmatpush1.bf16.xpose.msra.mxu0 0
        %1865 = vmatprep.subr.bf16.mxu0 0
        %1866 = vmatpush1.bf16.xpose.msra.mxu0 0
        %1867 = vmatprep.subr.bf16.mxu0 0
        %1868 = vmatpush1.bf16.xpose.msra.mxu0 0
        %1869 = vmatprep.mubr.bf16.mxu0 0
        %1870 = vmatmul.mubr.bf16.gmra.mrb[0].mxu0 %v1832
        %v1871 = vpop.f32.mrb[0].mxu0
        %v1872 = vadd.f32 0.0, %v1871
        %v1873 = vpop.f32.mrb[0].mxu0
        %v1874 = vpop.f32.mrb[0].mxu0
        %v1875 = vadd.f32 0.0, %v1874
        %v1876 = vpop.f32.mrb[0].mxu0
        %1877 = vdwg.mxu0
        %v1879 = vsel %vm936, %v1732, 0
        %v1882 = vsel %vm936, %v1736, 0
        %1884 = vmatprep.subr.bf16.mxu0 0
        %1885 = vmatpush1.bf16.xpose.msra.mxu0 %v1882
        %1886 = vmatprep.subr.bf16.mxu0 0
        %1887 = vmatpush1.bf16.xpose.msra.mxu0 0
        %1888 = vmatprep.subr.bf16.mxu0 0
        %1889 = vmatpush1.bf16.xpose.msra.mxu0 0
        %1890 = vmatprep.subr.bf16.mxu0 0
        %1891 = vmatpush1.bf16.xpose.msra.mxu0 0
        %1892 = vmatprep.subr.bf16.mxu0 0
        %1893 = vmatpush1.bf16.xpose.msra.mxu0 0
        %1894 = vmatprep.subr.bf16.mxu0 0
        %1895 = vmatpush1.bf16.xpose.msra.mxu0 0
        %1896 = vmatprep.subr.bf16.mxu0 0
        %1897 = vmatpush1.bf16.xpose.msra.mxu0 0
        %1898 = vmatprep.subr.bf16.mxu0 0
        %1899 = vmatpush1.bf16.xpose.msra.mxu0 0
        %1900 = vmatprep.subr.bf16.mxu0 0
        %1901 = vmatpush1.bf16.xpose.msra.mxu0 0
        %1902 = vmatprep.subr.bf16.mxu0 0
        %1903 = vmatpush1.bf16.xpose.msra.mxu0 0
        %1904 = vmatprep.subr.bf16.mxu0 0
        %1905 = vmatpush1.bf16.xpose.msra.mxu0 0
        %1906 = vmatprep.subr.bf16.mxu0 0
        %1907 = vmatpush1.bf16.xpose.msra.mxu0 0
        %1908 = vmatprep.subr.bf16.mxu0 0
        %1909 = vmatpush1.bf16.xpose.msra.mxu0 0
        %1910 = vmatprep.subr.bf16.mxu0 0
        %1911 = vmatpush1.bf16.xpose.msra.mxu0 0
        %1912 = vmatprep.subr.bf16.mxu0 0
        %1913 = vmatpush1.bf16.xpose.msra.mxu0 0
        %1914 = vmatprep.subr.bf16.mxu0 0
        %1915 = vmatpush1.bf16.xpose.msra.mxu0 0
        %1916 = vmatprep.mubr.bf16.mxu0 0
        %1917 = vmatmul.mubr.bf16.gmra.mrb[0].mxu0 %v1879
        %v1918 = vpop.f32.mrb[0].mxu0
        %v1919 = vadd.f32 0.0, %v1918
        %v1920 = vpop.f32.mrb[0].mxu0
        %v1921 = vpop.f32.mrb[0].mxu0
        %v1922 = vadd.f32 0.0, %v1921
        %v1923 = vpop.f32.mrb[0].mxu0
        %1924 = vdwg.mxu0
        %v1925 = vmul.f32 %v1778, 0.35355338
        %v1926 = vmul.f32 %v1781, 0.35355338
        %v1927 = vmul.f32 %v1825, 0.35355338
        %v1928 = vmul.f32 %v1828, 0.35355338
        %v1929 = vmul.f32 %v1872, 0.35355338
        %v1930 = vmul.f32 %v1875, 0.35355338
        %v1931 = vmul.f32 %v1919, 0.35355338
        %v1932 = vmul.f32 %v1922, 0.35355338
        %v1933 = vsel %vm1452, %v1925, -inf
        %1934 = vmax.xlane.f32.xlu0 %v1933
        %v1935 = vpop.xlane.xlu0 %1934
        %vm1936 = vcmask 128000
        %v1937 = vsel %vm1936, %v1926, -inf
        %1938 = vmax.xlane.f32.xlu0 %v1937
        %v1939 = vpop.xlane.xlu0 %1938
        %v1940 = vsel %vm1452, %v1927, -inf
        %1941 = vmax.xlane.f32.xlu0 %v1940
        %v1942 = vpop.xlane.xlu0 %1941
        %v1943 = vsel %vm1936, %v1928, -inf
        %1944 = vmax.xlane.f32.xlu0 %v1943
        %v1945 = vpop.xlane.xlu0 %1944
        %v1946 = vsel %vm1452, %v1929, -inf
        %1947 = vmax.xlane.f32.xlu0 %v1946
        %v1948 = vpop.xlane.xlu0 %1947
        %v1949 = vsel %vm1936, %v1930, -inf
        %1950 = vmax.xlane.f32.xlu0 %v1949
        %v1951 = vpop.xlane.xlu0 %1950
        %v1952 = vsel %vm1452, %v1931, -inf
        %1953 = vmax.xlane.f32.xlu0 %v1952
        %v1954 = vpop.xlane.xlu0 %1953
        %v1955 = vsel %vm1936, %v1932, -inf
        %1956 = vmax.xlane.f32.xlu0 %v1955
        %v1957 = vpop.xlane.xlu0 %1956
        %v1958 = vsub.f32 %v1925, %v1935
        %v1959 = vsub.f32 %v1926, %v1939
        %v1960 = vsub.f32 %v1927, %v1942
        %v1961 = vsub.f32 %v1928, %v1945
        %v1962 = vsub.f32 %v1929, %v1948
        %v1963 = vsub.f32 %v1930, %v1951
        %v1964 = vsub.f32 %v1931, %v1954
        %v1965 = vsub.f32 %v1932, %v1957
        %v1966 = vmul.f32 %v1958, 1.442695
        %v1967 = vpow.pop %v1966
        %v1968 = vmul.f32 %v1959, 1.442695
        %v1969 = vpow.pop %v1968
        %v1970 = vmul.f32 %v1960, 1.442695
        %v1971 = vpow.pop %v1970
        %v1972 = vmul.f32 %v1961, 1.442695
        %v1973 = vpow.pop %v1972
        %v1974 = vmul.f32 %v1962, 1.442695
        %v1975 = vpow.pop %v1974
        %v1976 = vmul.f32 %v1963, 1.442695
        %v1977 = vpow.pop %v1976
        %v1978 = vmul.f32 %v1964, 1.442695
        %v1979 = vpow.pop %v1978
        %v1980 = vmul.f32 %v1965, 1.442695
        %v1981 = vpow.pop %v1980
        %v1982 = vsel %vm1452, %v1967, 0.0
        %1983 = vadd.xlane.f32.xlu0 %v1982
        %v1984 = vpop.xlane.xlu0 %1983
        %v1985 = vsel %vm1936, %v1969, 0.0
        %1986 = vadd.xlane.f32.xlu0 %v1985
        %v1987 = vpop.xlane.xlu0 %1986
        %v1988 = vsel %vm1452, %v1971, 0.0
        %1989 = vadd.xlane.f32.xlu0 %v1988
        %v1990 = vpop.xlane.xlu0 %1989
        %v1991 = vsel %vm1936, %v1973, 0.0
        %1992 = vadd.xlane.f32.xlu0 %v1991
        %v1993 = vpop.xlane.xlu0 %1992
        %v1994 = vsel %vm1452, %v1975, 0.0
        %1995 = vadd.xlane.f32.xlu0 %v1994
        %v1996 = vpop.xlane.xlu0 %1995
        %v1997 = vsel %vm1936, %v1977, 0.0
        %1998 = vadd.xlane.f32.xlu0 %v1997
        %v1999 = vpop.xlane.xlu0 %1998
        %v2000 = vsel %vm1452, %v1979, 0.0
        %2001 = vadd.xlane.f32.xlu0 %v2000
        %v2002 = vpop.xlane.xlu0 %2001
        %v2003 = vsel %vm1936, %v1981, 0.0
        %2004 = vadd.xlane.f32.xlu0 %v2003
        %v2005 = vpop.xlane.xlu0 %2004
        %v2006 = vrcp.pop %v1984
        %v2007 = vrcp.pop %v1987
        %v2008 = vrcp.pop %v1990
        %v2009 = vrcp.pop %v1993
        %v2010 = vrcp.pop %v1996
        %v2011 = vrcp.pop %v1999
        %v2012 = vrcp.pop %v2002
        %v2013 = vrcp.pop %v2005
        %v2014 = vmul.f32 %v1967, %v2006
        %v2015 = vmul.f32 %v1969, %v2007
        %v2016 = vmul.f32 %v1971, %v2008
        %v2017 = vmul.f32 %v1973, %v2009
        %v2018 = vmul.f32 %v1975, %v2010
        %v2019 = vmul.f32 %v1977, %v2011
        %v2020 = vmul.f32 %v1979, %v2012
        %v2021 = vmul.f32 %v1981, %v2013
        %v2022 = vpack.c.bf16 %v2015, %v2014
        %v2023 = vpack.c.bf16 %v2017, %v2016
        %v2024 = vpack.c.bf16 %v2019, %v2018
        %v2025 = vpack.c.bf16 %v2021, %v2020
        %2027 = vrot.lane.b32.xlu0 %v1733, 96
        %v2028 = vpop.permute.xlu0 %2027
        %v2031 = vsel %vm1452, %v2022, 0
        %2033 = vmatprep.subr.bf16.mxu0 0
        %2034 = vmatpush1.bf16.msra.mxu0 %v2028
        %2035 = vmatprep.subr.bf16.mxu0 0
        %2036 = vmatpush1.bf16.msra.mxu0 0
        %2037 = vmatprep.subr.bf16.mxu0 0
        %2038 = vmatpush1.bf16.msra.mxu0 0
        %2039 = vmatprep.subr.bf16.mxu0 0
        %2040 = vmatpush1.bf16.msra.mxu0 0
        %2041 = vmatprep.subr.bf16.mxu0 0
        %2042 = vmatpush1.bf16.msra.mxu0 0
        %2043 = vmatprep.subr.bf16.mxu0 0
        %2044 = vmatpush1.bf16.msra.mxu0 0
        %2045 = vmatprep.subr.bf16.mxu0 0
        %2046 = vmatpush1.bf16.msra.mxu0 0
        %2047 = vmatprep.subr.bf16.mxu0 0
        %2048 = vmatpush1.bf16.msra.mxu0 0
        %2049 = vmatprep.subr.bf16.mxu0 0
        %2050 = vmatpush1.bf16.msra.mxu0 0
        %2051 = vmatprep.subr.bf16.mxu0 0
        %2052 = vmatpush1.bf16.msra.mxu0 0
        %2053 = vmatprep.subr.bf16.mxu0 0
        %2054 = vmatpush1.bf16.msra.mxu0 0
        %2055 = vmatprep.subr.bf16.mxu0 0
        %2056 = vmatpush1.bf16.msra.mxu0 0
        %2057 = vmatprep.subr.bf16.mxu0 0
        %2058 = vmatpush1.bf16.msra.mxu0 0
        %2059 = vmatprep.subr.bf16.mxu0 0
        %2060 = vmatpush1.bf16.msra.mxu0 0
        %2061 = vmatprep.subr.bf16.mxu0 0
        %2062 = vmatpush1.bf16.msra.mxu0 0
        %2063 = vmatprep.subr.bf16.mxu0 0
        %2064 = vmatpush1.bf16.msra.mxu0 0
        %2065 = vmatprep.mubr.bf16.mxu0 0
        %2066 = vmatmul.mubr.bf16.gmra.mrb[0].mxu0 %v2031
        %v2067 = vpop.f32.mrb[0].mxu0
        %v2068 = vadd.f32 0.0, %v2067
        %v2069 = vpop.f32.mrb[0].mxu0
        %v2070 = vpop.f32.mrb[0].mxu0
        %v2071 = vadd.f32 0.0, %v2070
        %v2072 = vpop.f32.mrb[0].mxu0
        %2073 = vdwg.mxu0
        %2075 = vrot.lane.b32.xlu0 %v1734, 96
        %v2076 = vpop.permute.xlu0 %2075
        %v2079 = vsel %vm1452, %v2023, 0
        %2081 = vmatprep.subr.bf16.mxu0 0
        %2082 = vmatpush1.bf16.msra.mxu0 %v2076
        %2083 = vmatprep.subr.bf16.mxu0 0
        %2084 = vmatpush1.bf16.msra.mxu0 0
        %2085 = vmatprep.subr.bf16.mxu0 0
        %2086 = vmatpush1.bf16.msra.mxu0 0
        %2087 = vmatprep.subr.bf16.mxu0 0
        %2088 = vmatpush1.bf16.msra.mxu0 0
        %2089 = vmatprep.subr.bf16.mxu0 0
        %2090 = vmatpush1.bf16.msra.mxu0 0
        %2091 = vmatprep.subr.bf16.mxu0 0
        %2092 = vmatpush1.bf16.msra.mxu0 0
        %2093 = vmatprep.subr.bf16.mxu0 0
        %2094 = vmatpush1.bf16.msra.mxu0 0
        %2095 = vmatprep.subr.bf16.mxu0 0
        %2096 = vmatpush1.bf16.msra.mxu0 0
        %2097 = vmatprep.subr.bf16.mxu0 0
        %2098 = vmatpush1.bf16.msra.mxu0 0
        %2099 = vmatprep.subr.bf16.mxu0 0
        %2100 = vmatpush1.bf16.msra.mxu0 0
        %2101 = vmatprep.subr.bf16.mxu0 0
        %2102 = vmatpush1.bf16.msra.mxu0 0
        %2103 = vmatprep.subr.bf16.mxu0 0
        %2104 = vmatpush1.bf16.msra.mxu0 0
        %2105 = vmatprep.subr.bf16.mxu0 0
        %2106 = vmatpush1.bf16.msra.mxu0 0
        %2107 = vmatprep.subr.bf16.mxu0 0
        %2108 = vmatpush1.bf16.msra.mxu0 0
        %2109 = vmatprep.subr.bf16.mxu0 0
        %2110 = vmatpush1.bf16.msra.mxu0 0
        %2111 = vmatprep.subr.bf16.mxu0 0
        %2112 = vmatpush1.bf16.msra.mxu0 0
        %2113 = vmatprep.mubr.bf16.mxu0 0
        %2114 = vmatmul.mubr.bf16.gmra.mrb[0].mxu0 %v2079
        %v2115 = vpop.f32.mrb[0].mxu0
        %v2116 = vadd.f32 0.0, %v2115
        %v2117 = vpop.f32.mrb[0].mxu0
        %v2118 = vpop.f32.mrb[0].mxu0
        %v2119 = vadd.f32 0.0, %v2118
        %v2120 = vpop.f32.mrb[0].mxu0
        %2121 = vdwg.mxu0
        %2123 = vrot.lane.b32.xlu0 %v1735, 96
        %v2124 = vpop.permute.xlu0 %2123
        %v2127 = vsel %vm1452, %v2024, 0
        %2129 = vmatprep.subr.bf16.mxu0 0
        %2130 = vmatpush1.bf16.msra.mxu0 %v2124
        %2131 = vmatprep.subr.bf16.mxu0 0
        %2132 = vmatpush1.bf16.msra.mxu0 0
        %2133 = vmatprep.subr.bf16.mxu0 0
        %2134 = vmatpush1.bf16.msra.mxu0 0
        %2135 = vmatprep.subr.bf16.mxu0 0
        %2136 = vmatpush1.bf16.msra.mxu0 0
        %2137 = vmatprep.subr.bf16.mxu0 0
        %2138 = vmatpush1.bf16.msra.mxu0 0
        %2139 = vmatprep.subr.bf16.mxu0 0
        %2140 = vmatpush1.bf16.msra.mxu0 0
        %2141 = vmatprep.subr.bf16.mxu0 0
        %2142 = vmatpush1.bf16.msra.mxu0 0
        %2143 = vmatprep.subr.bf16.mxu0 0
        %2144 = vmatpush1.bf16.msra.mxu0 0
        %2145 = vmatprep.subr.bf16.mxu0 0
        %2146 = vmatpush1.bf16.msra.mxu0 0
        %2147 = vmatprep.subr.bf16.mxu0 0
        %2148 = vmatpush1.bf16.msra.mxu0 0
        %2149 = vmatprep.subr.bf16.mxu0 0
        %2150 = vmatpush1.bf16.msra.mxu0 0
        %2151 = vmatprep.subr.bf16.mxu0 0
        %2152 = vmatpush1.bf16.msra.mxu0 0
        %2153 = vmatprep.subr.bf16.mxu0 0
        %2154 = vmatpush1.bf16.msra.mxu0 0
        %2155 = vmatprep.subr.bf16.mxu0 0
        %2156 = vmatpush1.bf16.msra.mxu0 0
        %2157 = vmatprep.subr.bf16.mxu0 0
        %2158 = vmatpush1.bf16.msra.mxu0 0
        %2159 = vmatprep.subr.bf16.mxu0 0
        %2160 = vmatpush1.bf16.msra.mxu0 0
        %2161 = vmatprep.mubr.bf16.mxu0 0
        %2162 = vmatmul.mubr.bf16.gmra.mrb[0].mxu0 %v2127
        %v2163 = vpop.f32.mrb[0].mxu0
        %v2164 = vadd.f32 0.0, %v2163
        %v2165 = vpop.f32.mrb[0].mxu0
        %v2166 = vpop.f32.mrb[0].mxu0
        %v2167 = vadd.f32 0.0, %v2166
        %v2168 = vpop.f32.mrb[0].mxu0
        %2169 = vdwg.mxu0
        %2171 = vrot.lane.b32.xlu0 %v1736, 96
        %v2172 = vpop.permute.xlu0 %2171
        %v2175 = vsel %vm1452, %v2025, 0
        %2177 = vmatprep.subr.bf16.mxu0 0
        %2178 = vmatpush1.bf16.msra.mxu0 %v2172
        %2179 = vmatprep.subr.bf16.mxu0 0
        %2180 = vmatpush1.bf16.msra.mxu0 0
        %2181 = vmatprep.subr.bf16.mxu0 0
        %2182 = vmatpush1.bf16.msra.mxu0 0
        %2183 = vmatprep.subr.bf16.mxu0 0
        %2184 = vmatpush1.bf16.msra.mxu0 0
        %2185 = vmatprep.subr.bf16.mxu0 0
        %2186 = vmatpush1.bf16.msra.mxu0 0
        %2187 = vmatprep.subr.bf16.mxu0 0
        %2188 = vmatpush1.bf16.msra.mxu0 0
        %2189 = vmatprep.subr.bf16.mxu0 0
        %2190 = vmatpush1.bf16.msra.mxu0 0
        %2191 = vmatprep.subr.bf16.mxu0 0
        %2192 = vmatpush1.bf16.msra.mxu0 0
        %2193 = vmatprep.subr.bf16.mxu0 0
        %2194 = vmatpush1.bf16.msra.mxu0 0
        %2195 = vmatprep.subr.bf16.mxu0 0
        %2196 = vmatpush1.bf16.msra.mxu0 0
        %2197 = vmatprep.subr.bf16.mxu0 0
        %2198 = vmatpush1.bf16.msra.mxu0 0
        %2199 = vmatprep.subr.bf16.mxu0 0
        %2200 = vmatpush1.bf16.msra.mxu0 0
        %2201 = vmatprep.subr.bf16.mxu0 0
        %2202 = vmatpush1.bf16.msra.mxu0 0
        %2203 = vmatprep.subr.bf16.mxu0 0
        %2204 = vmatpush1.bf16.msra.mxu0 0
        %2205 = vmatprep.subr.bf16.mxu0 0
        %2206 = vmatpush1.bf16.msra.mxu0 0
        %2207 = vmatprep.subr.bf16.mxu0 0
        %2208 = vmatpush1.bf16.msra.mxu0 0
        %2209 = vmatprep.mubr.bf16.mxu0 0
        %2210 = vmatmul.mubr.bf16.gmra.mrb[0].mxu0 %v2175
        %v2211 = vpop.f32.mrb[0].mxu0
        %v2212 = vadd.f32 0.0, %v2211
        %v2213 = vpop.f32.mrb[0].mxu0
        %v2214 = vpop.f32.mrb[0].mxu0
        %v2215 = vadd.f32 0.0, %v2214
        %v2216 = vpop.f32.mrb[0].mxu0
        %2217 = vdwg.mxu0
        %2220 = vrot.lane.b32.xlu0 %v2116, 8
        %v2221 = vpop.permute.xlu0 %2220
        %2222 = vrot.lane.b32.xlu0 %v2119, 8
        %v2223 = vpop.permute.xlu0 %2222
        %2228 = vrot.lane.b32.xlu0 %v2164, 16
        %v2229 = vpop.permute.xlu0 %2228
        %2230 = vrot.lane.b32.xlu0 %v2167, 16
        %v2231 = vpop.permute.xlu0 %2230
        %2236 = vrot.lane.b32.xlu0 %v2212, 24
        %v2237 = vpop.permute.xlu0 %2236
        %2238 = vrot.lane.b32.xlu0 %v2215, 24
        %v2239 = vpop.permute.xlu0 %2238
        %v2242 = vsel %vm936, %v2068, %v2221
        %v2243 = vsel %vm936, %v2071, %v2223
        %v2244 = vsel %vm1452, %v2242, %v2229
        %v2245 = vsel %vm1452, %v2243, %v2231
        %v2246 = vsel %vm1455, %v2244, %v2237
        %v2247 = vsel %vm1455, %v2245, %v2239
        %v2248 = vld [vmem:[%s10] sm:$0xf]
        %v2249 = vld [vmem:[%s10 + $0x4] sm:$0xf]
        %v2250 = vld [vmem:[%s10 + $0x8] sm:$0xf]
        %v2251 = vld [vmem:[%s10 + $0xc] sm:$0xf]
        %v2252 = vpack.c.bf16 %v2247, %v2246
        %v2253 = vld [vmem:[#allocation9] sm:$0x1]
        %v2255 = vlaneseq
        %v2256 = vshrl.u32 %v2255, 7
        %v2257 = vsub.s32 0, %v2256
        %v2258 = vrot.slane %v2253, %v2257
        %v2264 = vunpack.c.l.b16 %v2248
        %v2265 = vunpack.c.l.b16 %v2249
        %v2266 = vunpack.c.l.b16 %v2250
        %v2267 = vunpack.c.l.b16 %v2251
        %v2268 = vpack.c.b16 %v2265, %v2264
        %v2269 = vpack.c.b16 %v2267, %v2266
        %v2273 = vsel %vm800, %v2252, 0
        %2275 = vmatprep.subr.bf16.mxu0 0
        %2276 = vmatpush1.bf16.msra.mxu0 %v2268
        %2277 = vmatprep.subr.bf16.mxu0 0
        %2278 = vmatpush1.bf16.msra.mxu0 %v2269
        %2279 = vmatprep.subr.bf16.mxu0 0
        %2280 = vmatpush1.bf16.msra.mxu0 0
        %2281 = vmatprep.subr.bf16.mxu0 0
        %2282 = vmatpush1.bf16.msra.mxu0 0
        %2283 = vmatprep.subr.bf16.mxu0 0
        %2284 = vmatpush1.bf16.msra.mxu0 0
        %2285 = vmatprep.subr.bf16.mxu0 0
        %2286 = vmatpush1.bf16.msra.mxu0 0
        %2287 = vmatprep.subr.bf16.mxu0 0
        %2288 = vmatpush1.bf16.msra.mxu0 0
        %2289 = vmatprep.subr.bf16.mxu0 0
        %2290 = vmatpush1.bf16.msra.mxu0 0
        %2291 = vmatprep.subr.bf16.mxu0 0
        %2292 = vmatpush1.bf16.msra.mxu0 0
        %2293 = vmatprep.subr.bf16.mxu0 0
        %2294 = vmatpush1.bf16.msra.mxu0 0
        %2295 = vmatprep.subr.bf16.mxu0 0
        %2296 = vmatpush1.bf16.msra.mxu0 0
        %2297 = vmatprep.subr.bf16.mxu0 0
        %2298 = vmatpush1.bf16.msra.mxu0 0
        %2299 = vmatprep.subr.bf16.mxu0 0
        %2300 = vmatpush1.bf16.msra.mxu0 0
        %2301 = vmatprep.subr.bf16.mxu0 0
        %2302 = vmatpush1.bf16.msra.mxu0 0
        %2303 = vmatprep.subr.bf16.mxu0 0
        %2304 = vmatpush1.bf16.msra.mxu0 0
        %2305 = vmatprep.subr.bf16.mxu0 0
        %2306 = vmatpush1.bf16.msra.mxu0 0
        %2307 = vmatprep.mubr.bf16.mxu0 0
        %2308 = vmatmul.mubr.bf16.gmra.mrb[0].mxu0 %v2273
        %v2309 = vpop.f32.mrb[0].mxu0
        %v2310 = vadd.f32 %v2258, %v2309
        %v2311 = vpop.f32.mrb[0].mxu0
        %v2312 = vpop.f32.mrb[0].mxu0
        %v2313 = vadd.f32 %v2258, %v2312
        %v2314 = vpop.f32.mrb[0].mxu0
        %2315 = vdwg.mxu0
        %v2316 = vadd.f32 %v2014, %v2016
        %v2317 = vadd.f32 %v2015, %v2017
        %v2318 = vadd.f32 %v2316, %v2018
        %v2319 = vadd.f32 %v2317, %v2019
        %v2320 = vadd.f32 %v2318, %v2020
        %v2321 = vadd.f32 %v2319, %v2021
        %v2322 = vmul.f32 %v2320, 0.25
        %v2323 = vmul.f32 %v2321, 0.25
        %v2324 = vadd.f32 %v2310, %v769
        %v2325 = vadd.f32 %v2313, %v770
        %v2326 = vsel %vm800, %v2324, 0.0
        %2327 = vadd.xlane.f32.xlu0 %v2326
        %v2328 = vpop.xlane.xlu0 %2327
        %vm2329 = vcmask 259072
        %v2330 = vsel %vm2329, %v2325, 0.0
        %2331 = vadd.xlane.f32.xlu0 %v2330
        %v2332 = vpop.xlane.xlu0 %2331
        %v2333 = vmul.f32 %v2328, %v1534
        %v2334 = vmul.f32 %v2332, %v1534
        %v2335 = vsub.f32 %v2324, %v2333
        %v2336 = vsub.f32 %v2325, %v2334
        %v2337 = vmul.f32 %v2335, %v2335
        %v2338 = vmul.f32 %v2336, %v2336
        %v2339 = vsel %vm800, %v2337, 0.0
        %2340 = vadd.xlane.f32.xlu0 %v2339
        %v2341 = vpop.xlane.xlu0 %2340
        %v2342 = vsel %vm2329, %v2338, 0.0
        %2343 = vadd.xlane.f32.xlu0 %v2342
        %v2344 = vpop.xlane.xlu0 %2343
        %v2345 = vmul.f32 %v2341, %v1534
        %v2346 = vmul.f32 %v2344, %v1534
        %v2347 = vadd.f32 %v2345, 1e-05
        %v2348 = vadd.f32 %v2346, 1e-05
        %v2349 = vrsqrt.pop %v2347
        %v2350 = vrsqrt.pop %v2348
        %v2351 = vmul.f32 %v2335, %v2349
        %v2352 = vmul.f32 %v2336, %v2350
        %v2353 = vlaneseq
        %v2354 = vshrl.u32 %v2353, 7
        %v2355 = vsub.s32 2, %v2354
        %v2356 = vrot.slane %v766, %v2355
        %v2357 = vmul.f32 %v2351, %v2356
        %v2358 = vmul.f32 %v2352, %v2356
        %v2359 = vlaneseq
        %v2360 = vshrl.u32 %v2359, 7
        %v2361 = vsub.s32 3, %v2360
        %v2362 = vrot.slane %v766, %v2361
        %v2363 = vadd.f32 %v2357, %v2362
        %v2364 = vadd.f32 %v2358, %v2362
        %v2365 = vld [vmem:[%s16] sm:$0xf]
        %v2366 = vld [vmem:[%s16 + $0x4] sm:$0xf]
        %v2367 = vld [vmem:[%s16 + $0x8] sm:$0xf]
        %v2368 = vld [vmem:[%s16 + $0xc] sm:$0xf]
        %v2369 = vpack.c.bf16 %v2364, %v2363
        %v2370 = vld [vmem:[%s17] sm:$0x1]
        %v2372 = vlaneseq
        %v2373 = vshrl.u32 %v2372, 7
        %v2374 = vsub.s32 0, %v2373
        %v2375 = vrot.slane %v2370, %v2374
        %v2381 = vunpack.c.l.b16 %v2365
        %v2382 = vunpack.c.l.b16 %v2366
        %v2383 = vunpack.c.l.b16 %v2367
        %v2384 = vunpack.c.l.b16 %v2368
        %v2385 = vpack.c.b16 %v2382, %v2381
        %v2386 = vpack.c.b16 %v2384, %v2383
        %v2390 = vsel %vm800, %v2369, 0
        %2392 = vmatprep.subr.bf16.mxu0 0
        %2393 = vmatpush1.bf16.msra.mxu0 %v2385
        %2394 = vmatprep.subr.bf16.mxu0 0
        %2395 = vmatpush1.bf16.msra.mxu0 %v2386
        %2396 = vmatprep.subr.bf16.mxu0 0
        %2397 = vmatpush1.bf16.msra.mxu0 0
        %2398 = vmatprep.subr.bf16.mxu0 0
        %2399 = vmatpush1.bf16.msra.mxu0 0
        %2400 = vmatprep.subr.bf16.mxu0 0
        %2401 = vmatpush1.bf16.msra.mxu0 0
        %2402 = vmatprep.subr.bf16.mxu0 0
        %2403 = vmatpush1.bf16.msra.mxu0 0
        %2404 = vmatprep.subr.bf16.mxu0 0
        %2405 = vmatpush1.bf16.msra.mxu0 0
        %2406 = vmatprep.subr.bf16.mxu0 0
        %2407 = vmatpush1.bf16.msra.mxu0 0
        %2408 = vmatprep.subr.bf16.mxu0 0
        %2409 = vmatpush1.bf16.msra.mxu0 0
        %2410 = vmatprep.subr.bf16.mxu0 0
        %2411 = vmatpush1.bf16.msra.mxu0 0
        %2412 = vmatprep.subr.bf16.mxu0 0
        %2413 = vmatpush1.bf16.msra.mxu0 0
        %2414 = vmatprep.subr.bf16.mxu0 0
        %2415 = vmatpush1.bf16.msra.mxu0 0
        %2416 = vmatprep.subr.bf16.mxu0 0
        %2417 = vmatpush1.bf16.msra.mxu0 0
        %2418 = vmatprep.subr.bf16.mxu0 0
        %2419 = vmatpush1.bf16.msra.mxu0 0
        %2420 = vmatprep.subr.bf16.mxu0 0
        %2421 = vmatpush1.bf16.msra.mxu0 0
        %2422 = vmatprep.subr.bf16.mxu0 0
        %2423 = vmatpush1.bf16.msra.mxu0 0
        %2424 = vmatprep.mubr.bf16.mxu0 0
        %2425 = vmatmul.mubr.bf16.gmra.mrb[0].mxu0 %v2390
        %v2426 = vpop.f32.mrb[0].mxu0
        %v2427 = vadd.f32 %v2375, %v2426
        %v2428 = vpop.f32.mrb[0].mxu0
        %v2429 = vpop.f32.mrb[0].mxu0
        %v2430 = vadd.f32 %v2375, %v2429
        %v2431 = vpop.f32.mrb[0].mxu0
        %2432 = vdwg.mxu0
        %v2433 = vmax.f32 %v2427, 0.0
        %v2434 = vmax.f32 %v2430, 0.0
        %v2435 = vld [vmem:[%s18] sm:$0xf]
        %v2436 = vld [vmem:[%s18 + $0x4] sm:$0xf]
        %v2437 = vld [vmem:[%s18 + $0x8] sm:$0xf]
        %v2438 = vld [vmem:[%s18 + $0xc] sm:$0xf]
        %v2439 = vld [vmem:[%s18 + $0x10] sm:$0xf]
        %v2440 = vld [vmem:[%s18 + $0x14] sm:$0xf]
        %v2441 = vld [vmem:[%s18 + $0x18] sm:$0xf]
        %v2442 = vld [vmem:[%s18 + $0x1c] sm:$0xf]
        %v2443 = vld [vmem:[%s18 + $0x20] sm:$0xf]
        %v2444 = vld [vmem:[%s18 + $0x24] sm:$0xf]
        %v2445 = vld [vmem:[%s18 + $0x28] sm:$0xf]
        %v2446 = vld [vmem:[%s18 + $0x2c] sm:$0xf]
        %v2447 = vld [vmem:[%s18 + $0x30] sm:$0xf]
        %v2448 = vld [vmem:[%s18 + $0x34] sm:$0xf]
        %v2449 = vld [vmem:[%s18 + $0x38] sm:$0xf]
        %v2450 = vld [vmem:[%s18 + $0x3c] sm:$0xf]
        %v2451 = vpack.c.bf16 %v2434, %v2433
        %v2452 = vld [vmem:[%s19] sm:$0x1]
        %v2454 = vlaneseq
        %v2455 = vshrl.u32 %v2454, 7
        %v2456 = vsub.s32 0, %v2455
        %v2457 = vrot.slane %v2452, %v2456
        %v2475 = vunpack.c.l.b16 %v2435
        %v2476 = vunpack.c.l.b16 %v2436
        %v2477 = vunpack.c.l.b16 %v2437
        %v2478 = vunpack.c.l.b16 %v2438
        %v2479 = vunpack.c.l.b16 %v2439
        %v2480 = vunpack.c.l.b16 %v2440
        %v2481 = vunpack.c.l.b16 %v2441
        %v2482 = vunpack.c.l.b16 %v2442
        %v2483 = vunpack.c.l.b16 %v2443
        %v2484 = vunpack.c.l.b16 %v2444
        %v2485 = vunpack.c.l.b16 %v2445
        %v2486 = vunpack.c.l.b16 %v2446
        %v2487 = vunpack.c.l.b16 %v2447
        %v2488 = vunpack.c.l.b16 %v2448
        %v2489 = vunpack.c.l.b16 %v2449
        %v2490 = vunpack.c.l.b16 %v2450
        %v2491 = vpack.c.b16 %v2476, %v2475
        %v2492 = vpack.c.b16 %v2478, %v2477
        %v2493 = vpack.c.b16 %v2480, %v2479
        %v2494 = vpack.c.b16 %v2482, %v2481
        %v2495 = vpack.c.b16 %v2484, %v2483
        %v2496 = vpack.c.b16 %v2486, %v2485
        %v2497 = vpack.c.b16 %v2488, %v2487
        %v2498 = vpack.c.b16 %v2490, %v2489
        %2507 = vmatprep.subr.bf16.mxu0 0
        %2508 = vmatpush1.bf16.msra.mxu0 %v2491
        %2509 = vmatprep.subr.bf16.mxu0 0
        %2510 = vmatpush1.bf16.msra.mxu0 %v2492
        %2511 = vmatprep.subr.bf16.mxu0 0
        %2512 = vmatpush1.bf16.msra.mxu0 %v2493
        %2513 = vmatprep.subr.bf16.mxu0 0
        %2514 = vmatpush1.bf16.msra.mxu0 %v2494
        %2515 = vmatprep.subr.bf16.mxu0 0
        %2516 = vmatpush1.bf16.msra.mxu0 %v2495
        %2517 = vmatprep.subr.bf16.mxu0 0
        %2518 = vmatpush1.bf16.msra.mxu0 %v2496
        %2519 = vmatprep.subr.bf16.mxu0 0
        %2520 = vmatpush1.bf16.msra.mxu0 %v2497
        %2521 = vmatprep.subr.bf16.mxu0 0
        %2522 = vmatpush1.bf16.msra.mxu0 %v2498
        %2523 = vmatprep.subr.bf16.mxu0 0
        %2524 = vmatpush1.bf16.msra.mxu0 0
        %2525 = vmatprep.subr.bf16.mxu0 0
        %2526 = vmatpush1.bf16.msra.mxu0 0
        %2527 = vmatprep.subr.bf16.mxu0 0
        %2528 = vmatpush1.bf16.msra.mxu0 0
        %2529 = vmatprep.subr.bf16.mxu0 0
        %2530 = vmatpush1.bf16.msra.mxu0 0
        %2531 = vmatprep.subr.bf16.mxu0 0
        %2532 = vmatpush1.bf16.msra.mxu0 0
        %2533 = vmatprep.subr.bf16.mxu0 0
        %2534 = vmatpush1.bf16.msra.mxu0 0
        %2535 = vmatprep.subr.bf16.mxu0 0
        %2536 = vmatpush1.bf16.msra.mxu0 0
        %2537 = vmatprep.subr.bf16.mxu0 0
        %2538 = vmatpush1.bf16.msra.mxu0 0
        %2539 = vmatprep.mubr.bf16.mxu0 0
        %2540 = vmatmul.mubr.bf16.gmra.mrb[0].mxu0 %v2451
        %v2541 = vpop.f32.mrb[0].mxu0
        %v2542 = vadd.f32 %v2457, %v2541
        %v2543 = vpop.f32.mrb[0].mxu0
        %v2544 = vpop.f32.mrb[0].mxu0
        %v2545 = vadd.f32 %v2457, %v2544
        %v2546 = vpop.f32.mrb[0].mxu0
        %2547 = vdwg.mxu0
        %v2548 = vadd.f32 %v2542, %v2363
        %v2549 = vadd.f32 %v2545, %v2364
        %v2550 = vsel %vm800, %v2548, 0.0
        %2551 = vadd.xlane.f32.xlu0 %v2550
        %v2552 = vpop.xlane.xlu0 %2551
        %v2553 = vsel %vm2329, %v2549, 0.0
        %2554 = vadd.xlane.f32.xlu0 %v2553
        %v2555 = vpop.xlane.xlu0 %2554
        %v2556 = vmul.f32 %v2552, %v1534
        %v2557 = vmul.f32 %v2555, %v1534
        %v2558 = vsub.f32 %v2548, %v2556
        %v2559 = vsub.f32 %v2549, %v2557
        %v2560 = vmul.f32 %v2558, %v2558
        %v2561 = vmul.f32 %v2559, %v2559
        %v2562 = vsel %vm800, %v2560, 0.0
        %2563 = vadd.xlane.f32.xlu0 %v2562
        %v2564 = vpop.xlane.xlu0 %2563
        %v2565 = vsel %vm2329, %v2561, 0.0
        %2566 = vadd.xlane.f32.xlu0 %v2565
        %v2567 = vpop.xlane.xlu0 %2566
        %v2568 = vmul.f32 %v2564, %v1534
        %v2569 = vmul.f32 %v2567, %v1534
        %v2570 = vadd.f32 %v2568, 1e-05
        %v2571 = vadd.f32 %v2569, 1e-05
        %v2572 = vrsqrt.pop %v2570
        %v2573 = vrsqrt.pop %v2571
        %v2574 = vmul.f32 %v2558, %v2572
        %v2575 = vmul.f32 %v2559, %v2573
        %v2576 = vlaneseq
        %v2577 = vshrl.u32 %v2576, 7
        %v2578 = vsub.s32 4, %v2577
        %v2579 = vrot.slane %v766, %v2578
        %v2580 = vmul.f32 %v2574, %v2579
        %v2581 = vmul.f32 %v2575, %v2579
        %v2582 = vlaneseq
        %v2583 = vshrl.u32 %v2582, 7
        %v2584 = vsub.s32 5, %v2583
        %v2585 = vrot.slane %v766, %v2584
        %v2586 = vadd.f32 %v2580, %v2585
        %v2587 = vadd.f32 %v2581, %v2585
        %v2588 = vld [vmem:[%s12] sm:$0xf]
        %v2589 = vld [vmem:[%s12 + $0x4] sm:$0xf]
        %v2590 = vld [vmem:[%s12 + $0x8] sm:$0xf]
        %v2591 = vld [vmem:[%s12 + $0xc] sm:$0xf]
        %v2592 = vld [vmem:[%s13] sm:$0x1]
        %v2593 = vpack.c.bf16 %v2587, %v2586
        %v2595 = vlaneseq
        %v2596 = vshrl.u32 %v2595, 7
        %v2597 = vsub.s32 0, %v2596
        %v2598 = vrot.slane %v2592, %v2597
        %v2604 = vunpack.c.l.b16 %v2588
        %v2605 = vunpack.c.l.b16 %v2589
        %v2606 = vunpack.c.l.b16 %v2590
        %v2607 = vunpack.c.l.b16 %v2591
        %v2608 = vpack.c.b16 %v2605, %v2604
        %v2609 = vpack.c.b16 %v2607, %v2606
        %v2613 = vsel %vm800, %v2593, 0
        %2615 = vmatprep.subr.bf16.mxu0 0
        %2616 = vmatpush1.bf16.msra.mxu0 %v2608
        %2617 = vmatprep.subr.bf16.mxu0 0
        %2618 = vmatpush1.bf16.msra.mxu0 %v2609
        %2619 = vmatprep.subr.bf16.mxu0 0
        %2620 = vmatpush1.bf16.msra.mxu0 0
        %2621 = vmatprep.subr.bf16.mxu0 0
        %2622 = vmatpush1.bf16.msra.mxu0 0
        %2623 = vmatprep.subr.bf16.mxu0 0
        %2624 = vmatpush1.bf16.msra.mxu0 0
        %2625 = vmatprep.subr.bf16.mxu0 0
        %2626 = vmatpush1.bf16.msra.mxu0 0
        %2627 = vmatprep.subr.bf16.mxu0 0
        %2628 = vmatpush1.bf16.msra.mxu0 0
        %2629 = vmatprep.subr.bf16.mxu0 0
        %2630 = vmatpush1.bf16.msra.mxu0 0
        %2631 = vmatprep.subr.bf16.mxu0 0
        %2632 = vmatpush1.bf16.msra.mxu0 0
        %2633 = vmatprep.subr.bf16.mxu0 0
        %2634 = vmatpush1.bf16.msra.mxu0 0
        %2635 = vmatprep.subr.bf16.mxu0 0
        %2636 = vmatpush1.bf16.msra.mxu0 0
        %2637 = vmatprep.subr.bf16.mxu0 0
        %2638 = vmatpush1.bf16.msra.mxu0 0
        %2639 = vmatprep.subr.bf16.mxu0 0
        %2640 = vmatpush1.bf16.msra.mxu0 0
        %2641 = vmatprep.subr.bf16.mxu0 0
        %2642 = vmatpush1.bf16.msra.mxu0 0
        %2643 = vmatprep.subr.bf16.mxu0 0
        %2644 = vmatpush1.bf16.msra.mxu0 0
        %2645 = vmatprep.subr.bf16.mxu0 0
        %2646 = vmatpush1.bf16.msra.mxu0 0
        %2647 = vmatprep.mubr.bf16.mxu0 0
        %2648 = vmatmul.mubr.bf16.gmra.mrb[0].mxu0 %v2613
        %v2649 = vpop.f32.mrb[0].mxu0
        %v2650 = vadd.f32 %v2598, %v2649
        %v2651 = vpop.f32.mrb[0].mxu0
        %v2652 = vpop.f32.mrb[0].mxu0
        %v2653 = vadd.f32 %v2598, %v2652
        %v2654 = vpop.f32.mrb[0].mxu0
        %2655 = vdwg.mxu0
        %2658 = vrot.lane.b32.xlu0 %v2650, 120
        %v2659 = vpop.permute.xlu0 %2658
        %2660 = vrot.lane.b32.xlu0 %v2653, 120
        %v2661 = vpop.permute.xlu0 %2660
        %2664 = vrot.lane.b32.xlu0 %v2650, 112
        %v2665 = vpop.permute.xlu0 %2664
        %2666 = vrot.lane.b32.xlu0 %v2653, 112
        %v2667 = vpop.permute.xlu0 %2666
        %2670 = vrot.lane.b32.xlu0 %v2650, 104
        %v2671 = vpop.permute.xlu0 %2670
        %2672 = vrot.lane.b32.xlu0 %v2653, 104
        %v2673 = vpop.permute.xlu0 %2672
        %v2676 = vpack.c.bf16 %v2653, %v2650
        %v2677 = vpack.c.bf16 %v2661, %v2659
        %v2678 = vpack.c.bf16 %v2667, %v2665
        %v2679 = vpack.c.bf16 %v2673, %v2671
        %2681 = vrot.lane.b32.xlu0 %v2676, 96
        %v2682 = vpop.permute.xlu0 %2681
        %v2684 = vsel %vm936, %v2676, 0
        %v2687 = vsel %vm936, %v2682, 0
        %2689 = vmatprep.subr.bf16.mxu0 0
        %2690 = vmatpush1.bf16.xpose.msra.mxu0 %v2687
        %2691 = vmatprep.subr.bf16.mxu0 0
        %2692 = vmatpush1.bf16.xpose.msra.mxu0 0
        %2693 = vmatprep.subr.bf16.mxu0 0
        %2694 = vmatpush1.bf16.xpose.msra.mxu0 0
        %2695 = vmatprep.subr.bf16.mxu0 0
        %2696 = vmatpush1.bf16.xpose.msra.mxu0 0
        %2697 = vmatprep.subr.bf16.mxu0 0
        %2698 = vmatpush1.bf16.xpose.msra.mxu0 0
        %2699 = vmatprep.subr.bf16.mxu0 0
        %2700 = vmatpush1.bf16.xpose.msra.mxu0 0
        %2701 = vmatprep.subr.bf16.mxu0 0
        %2702 = vmatpush1.bf16.xpose.msra.mxu0 0
        %2703 = vmatprep.subr.bf16.mxu0 0
        %2704 = vmatpush1.bf16.xpose.msra.mxu0 0
        %2705 = vmatprep.subr.bf16.mxu0 0
        %2706 = vmatpush1.bf16.xpose.msra.mxu0 0
        %2707 = vmatprep.subr.bf16.mxu0 0
        %2708 = vmatpush1.bf16.xpose.msra.mxu0 0
        %2709 = vmatprep.subr.bf16.mxu0 0
        %2710 = vmatpush1.bf16.xpose.msra.mxu0 0
        %2711 = vmatprep.subr.bf16.mxu0 0
        %2712 = vmatpush1.bf16.xpose.msra.mxu0 0
        %2713 = vmatprep.subr.bf16.mxu0 0
        %2714 = vmatpush1.bf16.xpose.msra.mxu0 0
        %2715 = vmatprep.subr.bf16.mxu0 0
        %2716 = vmatpush1.bf16.xpose.msra.mxu0 0
        %2717 = vmatprep.subr.bf16.mxu0 0
        %2718 = vmatpush1.bf16.xpose.msra.mxu0 0
        %2719 = vmatprep.subr.bf16.mxu0 0
        %2720 = vmatpush1.bf16.xpose.msra.mxu0 0
        %2721 = vmatprep.mubr.bf16.mxu0 0
        %2722 = vmatmul.mubr.bf16.gmra.mrb[0].mxu0 %v2684
        %v2723 = vpop.f32.mrb[0].mxu0
        %v2724 = vadd.f32 0.0, %v2723
        %v2725 = vpop.f32.mrb[0].mxu0
        %v2726 = vpop.f32.mrb[0].mxu0
        %v2727 = vadd.f32 0.0, %v2726
        %v2728 = vpop.f32.mrb[0].mxu0
        %2729 = vdwg.mxu0
        %2731 = vrot.lane.b32.xlu0 %v2677, 96
        %v2732 = vpop.permute.xlu0 %2731
        %v2734 = vsel %vm936, %v2677, 0
        %v2737 = vsel %vm936, %v2732, 0
        %2739 = vmatprep.subr.bf16.mxu0 0
        %2740 = vmatpush1.bf16.xpose.msra.mxu0 %v2737
        %2741 = vmatprep.subr.bf16.mxu0 0
        %2742 = vmatpush1.bf16.xpose.msra.mxu0 0
        %2743 = vmatprep.subr.bf16.mxu0 0
        %2744 = vmatpush1.bf16.xpose.msra.mxu0 0
        %2745 = vmatprep.subr.bf16.mxu0 0
        %2746 = vmatpush1.bf16.xpose.msra.mxu0 0
        %2747 = vmatprep.subr.bf16.mxu0 0
        %2748 = vmatpush1.bf16.xpose.msra.mxu0 0
        %2749 = vmatprep.subr.bf16.mxu0 0
        %2750 = vmatpush1.bf16.xpose.msra.mxu0 0
        %2751 = vmatprep.subr.bf16.mxu0 0
        %2752 = vmatpush1.bf16.xpose.msra.mxu0 0
        %2753 = vmatprep.subr.bf16.mxu0 0
        %2754 = vmatpush1.bf16.xpose.msra.mxu0 0
        %2755 = vmatprep.subr.bf16.mxu0 0
        %2756 = vmatpush1.bf16.xpose.msra.mxu0 0
        %2757 = vmatprep.subr.bf16.mxu0 0
        %2758 = vmatpush1.bf16.xpose.msra.mxu0 0
        %2759 = vmatprep.subr.bf16.mxu0 0
        %2760 = vmatpush1.bf16.xpose.msra.mxu0 0
        %2761 = vmatprep.subr.bf16.mxu0 0
        %2762 = vmatpush1.bf16.xpose.msra.mxu0 0
        %2763 = vmatprep.subr.bf16.mxu0 0
        %2764 = vmatpush1.bf16.xpose.msra.mxu0 0
        %2765 = vmatprep.subr.bf16.mxu0 0
        %2766 = vmatpush1.bf16.xpose.msra.mxu0 0
        %2767 = vmatprep.subr.bf16.mxu0 0
        %2768 = vmatpush1.bf16.xpose.msra.mxu0 0
        %2769 = vmatprep.subr.bf16.mxu0 0
        %2770 = vmatpush1.bf16.xpose.msra.mxu0 0
        %2771 = vmatprep.mubr.bf16.mxu0 0
        %2772 = vmatmul.mubr.bf16.gmra.mrb[0].mxu0 %v2734
        %v2773 = vpop.f32.mrb[0].mxu0
        %v2774 = vadd.f32 0.0, %v2773
        %v2775 = vpop.f32.mrb[0].mxu0
        %v2776 = vpop.f32.mrb[0].mxu0
        %v2777 = vadd.f32 0.0, %v2776
        %v2778 = vpop.f32.mrb[0].mxu0
        %2779 = vdwg.mxu0
        %2781 = vrot.lane.b32.xlu0 %v2678, 96
        %v2782 = vpop.permute.xlu0 %2781
        %v2784 = vsel %vm936, %v2678, 0
        %v2787 = vsel %vm936, %v2782, 0
        %2789 = vmatprep.subr.bf16.mxu0 0
        %2790 = vmatpush1.bf16.xpose.msra.mxu0 %v2787
        %2791 = vmatprep.subr.bf16.mxu0 0
        %2792 = vmatpush1.bf16.xpose.msra.mxu0 0
        %2793 = vmatprep.subr.bf16.mxu0 0
        %2794 = vmatpush1.bf16.xpose.msra.mxu0 0
        %2795 = vmatprep.subr.bf16.mxu0 0
        %2796 = vmatpush1.bf16.xpose.msra.mxu0 0
        %2797 = vmatprep.subr.bf16.mxu0 0
        %2798 = vmatpush1.bf16.xpose.msra.mxu0 0
        %2799 = vmatprep.subr.bf16.mxu0 0
        %2800 = vmatpush1.bf16.xpose.msra.mxu0 0
        %2801 = vmatprep.subr.bf16.mxu0 0
        %2802 = vmatpush1.bf16.xpose.msra.mxu0 0
        %2803 = vmatprep.subr.bf16.mxu0 0
        %2804 = vmatpush1.bf16.xpose.msra.mxu0 0
        %2805 = vmatprep.subr.bf16.mxu0 0
        %2806 = vmatpush1.bf16.xpose.msra.mxu0 0
        %2807 = vmatprep.subr.bf16.mxu0 0
        %2808 = vmatpush1.bf16.xpose.msra.mxu0 0
        %2809 = vmatprep.subr.bf16.mxu0 0
        %2810 = vmatpush1.bf16.xpose.msra.mxu0 0
        %2811 = vmatprep.subr.bf16.mxu0 0
        %2812 = vmatpush1.bf16.xpose.msra.mxu0 0
        %2813 = vmatprep.subr.bf16.mxu0 0
        %2814 = vmatpush1.bf16.xpose.msra.mxu0 0
        %2815 = vmatprep.subr.bf16.mxu0 0
        %2816 = vmatpush1.bf16.xpose.msra.mxu0 0
        %2817 = vmatprep.subr.bf16.mxu0 0
        %2818 = vmatpush1.bf16.xpose.msra.mxu0 0
        %2819 = vmatprep.subr.bf16.mxu0 0
        %2820 = vmatpush1.bf16.xpose.msra.mxu0 0
        %2821 = vmatprep.mubr.bf16.mxu0 0
        %2822 = vmatmul.mubr.bf16.gmra.mrb[0].mxu0 %v2784
        %v2823 = vpop.f32.mrb[0].mxu0
        %v2824 = vadd.f32 0.0, %v2823
        %v2825 = vpop.f32.mrb[0].mxu0
        %v2826 = vpop.f32.mrb[0].mxu0
        %v2827 = vadd.f32 0.0, %v2826
        %v2828 = vpop.f32.mrb[0].mxu0
        %2829 = vdwg.mxu0
        %2831 = vrot.lane.b32.xlu0 %v2679, 96
        %v2832 = vpop.permute.xlu0 %2831
        %v2834 = vsel %vm936, %v2679, 0
        %v2837 = vsel %vm936, %v2832, 0
        %2839 = vmatprep.subr.bf16.mxu0 0
        %2840 = vmatpush1.bf16.xpose.msra.mxu0 %v2837
        %2841 = vmatprep.subr.bf16.mxu0 0
        %2842 = vmatpush1.bf16.xpose.msra.mxu0 0
        %2843 = vmatprep.subr.bf16.mxu0 0
        %2844 = vmatpush1.bf16.xpose.msra.mxu0 0
        %2845 = vmatprep.subr.bf16.mxu0 0
        %2846 = vmatpush1.bf16.xpose.msra.mxu0 0
        %2847 = vmatprep.subr.bf16.mxu0 0
        %2848 = vmatpush1.bf16.xpose.msra.mxu0 0
        %2849 = vmatprep.subr.bf16.mxu0 0
        %2850 = vmatpush1.bf16.xpose.msra.mxu0 0
        %2851 = vmatprep.subr.bf16.mxu0 0
        %2852 = vmatpush1.bf16.xpose.msra.mxu0 0
        %2853 = vmatprep.subr.bf16.mxu0 0
        %2854 = vmatpush1.bf16.xpose.msra.mxu0 0
        %2855 = vmatprep.subr.bf16.mxu0 0
        %2856 = vmatpush1.bf16.xpose.msra.mxu0 0
        %2857 = vmatprep.subr.bf16.mxu0 0
        %2858 = vmatpush1.bf16.xpose.msra.mxu0 0
        %2859 = vmatprep.subr.bf16.mxu0 0
        %2860 = vmatpush1.bf16.xpose.msra.mxu0 0
        %2861 = vmatprep.subr.bf16.mxu0 0
        %2862 = vmatpush1.bf16.xpose.msra.mxu0 0
        %2863 = vmatprep.subr.bf16.mxu0 0
        %2864 = vmatpush1.bf16.xpose.msra.mxu0 0
        %2865 = vmatprep.subr.bf16.mxu0 0
        %2866 = vmatpush1.bf16.xpose.msra.mxu0 0
        %2867 = vmatprep.subr.bf16.mxu0 0
        %2868 = vmatpush1.bf16.xpose.msra.mxu0 0
        %2869 = vmatprep.subr.bf16.mxu0 0
        %2870 = vmatpush1.bf16.xpose.msra.mxu0 0
        %2871 = vmatprep.mubr.bf16.mxu0 0
        %2872 = vmatmul.mubr.bf16.gmra.mrb[0].mxu0 %v2834
        %v2873 = vpop.f32.mrb[0].mxu0
        %v2874 = vadd.f32 0.0, %v2873
        %v2875 = vpop.f32.mrb[0].mxu0
        %v2876 = vpop.f32.mrb[0].mxu0
        %v2877 = vadd.f32 0.0, %v2876
        %v2878 = vpop.f32.mrb[0].mxu0
        %2879 = vdwg.mxu0
        %v2880 = vmul.f32 %v2724, 0.35355338
        %v2881 = vmul.f32 %v2727, 0.35355338
        %v2882 = vmul.f32 %v2774, 0.35355338
        %v2883 = vmul.f32 %v2777, 0.35355338
        %v2884 = vmul.f32 %v2824, 0.35355338
        %v2885 = vmul.f32 %v2827, 0.35355338
        %v2886 = vmul.f32 %v2874, 0.35355338
        %v2887 = vmul.f32 %v2877, 0.35355338
        %vm2888 = vcmask 113664
        %v2889 = vsel %vm2888, %v2880, -inf
        %2890 = vmax.xlane.f32.xlu0 %v2889
        %v2891 = vpop.xlane.xlu0 %2890
        %vm2892 = vcmask 111616
        %v2893 = vsel %vm2892, %v2881, -inf
        %2894 = vmax.xlane.f32.xlu0 %v2893
        %v2895 = vpop.xlane.xlu0 %2894
        %v2896 = vsel %vm2888, %v2882, -inf
        %2897 = vmax.xlane.f32.xlu0 %v2896
        %v2898 = vpop.xlane.xlu0 %2897
        %v2899 = vsel %vm2892, %v2883, -inf
        %2900 = vmax.xlane.f32.xlu0 %v2899
        %v2901 = vpop.xlane.xlu0 %2900
        %v2902 = vsel %vm2888, %v2884, -inf
        %2903 = vmax.xlane.f32.xlu0 %v2902
        %v2904 = vpop.xlane.xlu0 %2903
        %v2905 = vsel %vm2892, %v2885, -inf
        %2906 = vmax.xlane.f32.xlu0 %v2905
        %v2907 = vpop.xlane.xlu0 %2906
        %v2908 = vsel %vm2888, %v2886, -inf
        %2909 = vmax.xlane.f32.xlu0 %v2908
        %v2910 = vpop.xlane.xlu0 %2909
        %v2911 = vsel %vm2892, %v2887, -inf
        %2912 = vmax.xlane.f32.xlu0 %v2911
        %v2913 = vpop.xlane.xlu0 %2912
        %v2914 = vsub.f32 %v2880, %v2891
        %v2915 = vsub.f32 %v2881, %v2895
        %v2916 = vsub.f32 %v2882, %v2898
        %v2917 = vsub.f32 %v2883, %v2901
        %v2918 = vsub.f32 %v2884, %v2904
        %v2919 = vsub.f32 %v2885, %v2907
        %v2920 = vsub.f32 %v2886, %v2910
        %v2921 = vsub.f32 %v2887, %v2913
        %v2922 = vmul.f32 %v2914, 1.442695
        %v2923 = vpow.pop %v2922
        %v2924 = vmul.f32 %v2915, 1.442695
        %v2925 = vpow.pop %v2924
        %v2926 = vmul.f32 %v2916, 1.442695
        %v2927 = vpow.pop %v2926
        %v2928 = vmul.f32 %v2917, 1.442695
        %v2929 = vpow.pop %v2928
        %v2930 = vmul.f32 %v2918, 1.442695
        %v2931 = vpow.pop %v2930
        %v2932 = vmul.f32 %v2919, 1.442695
        %v2933 = vpow.pop %v2932
        %v2934 = vmul.f32 %v2920, 1.442695
        %v2935 = vpow.pop %v2934
        %v2936 = vmul.f32 %v2921, 1.442695
        %v2937 = vpow.pop %v2936
        %v2938 = vsel %vm2888, %v2923, 0.0
        %2939 = vadd.xlane.f32.xlu0 %v2938
        %v2940 = vpop.xlane.xlu0 %2939
        %v2941 = vsel %vm2892, %v2925, 0.0
        %2942 = vadd.xlane.f32.xlu0 %v2941
        %v2943 = vpop.xlane.xlu0 %2942
        %v2944 = vsel %vm2888, %v2927, 0.0
        %2945 = vadd.xlane.f32.xlu0 %v2944
        %v2946 = vpop.xlane.xlu0 %2945
        %v2947 = vsel %vm2892, %v2929, 0.0
        %2948 = vadd.xlane.f32.xlu0 %v2947
        %v2949 = vpop.xlane.xlu0 %2948
        %v2950 = vsel %vm2888, %v2931, 0.0
        %2951 = vadd.xlane.f32.xlu0 %v2950
        %v2952 = vpop.xlane.xlu0 %2951
        %v2953 = vsel %vm2892, %v2933, 0.0
        %2954 = vadd.xlane.f32.xlu0 %v2953
        %v2955 = vpop.xlane.xlu0 %2954
        %v2956 = vsel %vm2888, %v2935, 0.0
        %2957 = vadd.xlane.f32.xlu0 %v2956
        %v2958 = vpop.xlane.xlu0 %2957
        %v2959 = vsel %vm2892, %v2937, 0.0
        %2960 = vadd.xlane.f32.xlu0 %v2959
        %v2961 = vpop.xlane.xlu0 %2960
        %v2962 = vrcp.pop %v2940
        %v2963 = vrcp.pop %v2943
        %v2964 = vrcp.pop %v2946
        %v2965 = vrcp.pop %v2949
        %v2966 = vrcp.pop %v2952
        %v2967 = vrcp.pop %v2955
        %v2968 = vrcp.pop %v2958
        %v2969 = vrcp.pop %v2961
        %v2970 = vmul.f32 %v2923, %v2962
        %v2971 = vmul.f32 %v2925, %v2963
        %v2972 = vmul.f32 %v2927, %v2964
        %v2973 = vmul.f32 %v2929, %v2965
        %v2974 = vmul.f32 %v2931, %v2966
        %v2975 = vmul.f32 %v2933, %v2967
        %v2976 = vmul.f32 %v2935, %v2968
        %v2977 = vmul.f32 %v2937, %v2969
        %v2978 = vpack.c.bf16 %v2971, %v2970
        %v2979 = vpack.c.bf16 %v2973, %v2972
        %v2980 = vpack.c.bf16 %v2975, %v2974
        %v2981 = vpack.c.bf16 %v2977, %v2976
        %2982 = vrot.lane.b32.xlu0 %v2676, 64
        %v2983 = vpop.permute.xlu0 %2982
        %v2985 = vsel %vm2888, %v2978, 0
        %vm2987 = vcmask 1046528
        %v2989 = vsel %vm2987, %v2983, 0
        %2991 = vmatprep.subr.bf16.mxu0 0
        %2992 = vmatpush1.bf16.msra.mxu0 %v2989
        %2993 = vmatprep.subr.bf16.mxu0 0
        %2994 = vmatpush1.bf16.msra.mxu0 0
        %2995 = vmatprep.subr.bf16.mxu0 0
        %2996 = vmatpush1.bf16.msra.mxu0 0
        %2997 = vmatprep.subr.bf16.mxu0 0
        %2998 = vmatpush1.bf16.msra.mxu0 0
        %2999 = vmatprep.subr.bf16.mxu0 0
        %3000 = vmatpush1.bf16.msra.mxu0 0
        %3001 = vmatprep.subr.bf16.mxu0 0
        %3002 = vmatpush1.bf16.msra.mxu0 0
        %3003 = vmatprep.subr.bf16.mxu0 0
        %3004 = vmatpush1.bf16.msra.mxu0 0
        %3005 = vmatprep.subr.bf16.mxu0 0
        %3006 = vmatpush1.bf16.msra.mxu0 0
        %3007 = vmatprep.subr.bf16.mxu0 0
        %3008 = vmatpush1.bf16.msra.mxu0 0
        %3009 = vmatprep.subr.bf16.mxu0 0
        %3010 = vmatpush1.bf16.msra.mxu0 0
        %3011 = vmatprep.subr.bf16.mxu0 0
        %3012 = vmatpush1.bf16.msra.mxu0 0
        %3013 = vmatprep.subr.bf16.mxu0 0
        %3014 = vmatpush1.bf16.msra.mxu0 0
        %3015 = vmatprep.subr.bf16.mxu0 0
        %3016 = vmatpush1.bf16.msra.mxu0 0
        %3017 = vmatprep.subr.bf16.mxu0 0
        %3018 = vmatpush1.bf16.msra.mxu0 0
        %3019 = vmatprep.subr.bf16.mxu0 0
        %3020 = vmatpush1.bf16.msra.mxu0 0
        %3021 = vmatprep.subr.bf16.mxu0 0
        %3022 = vmatpush1.bf16.msra.mxu0 0
        %3023 = vmatprep.mubr.bf16.mxu0 0
        %3024 = vmatmul.mubr.bf16.gmra.mrb[0].mxu0 %v2985
        %v3025 = vpop.f32.mrb[0].mxu0
        %v3026 = vadd.f32 0.0, %v3025
        %v3027 = vpop.f32.mrb[0].mxu0
        %v3028 = vpop.f32.mrb[0].mxu0
        %v3029 = vadd.f32 0.0, %v3028
        %v3030 = vpop.f32.mrb[0].mxu0
        %3031 = vdwg.mxu0
        %3032 = vrot.lane.b32.xlu0 %v2677, 64
        %v3033 = vpop.permute.xlu0 %3032
        %v3035 = vsel %vm2888, %v2979, 0
        %v3038 = vsel %vm2987, %v3033, 0
        %3040 = vmatprep.subr.bf16.mxu0 0
        %3041 = vmatpush1.bf16.msra.mxu0 %v3038
        %3042 = vmatprep.subr.bf16.mxu0 0
        %3043 = vmatpush1.bf16.msra.mxu0 0
        %3044 = vmatprep.subr.bf16.mxu0 0
        %3045 = vmatpush1.bf16.msra.mxu0 0
        %3046 = vmatprep.subr.bf16.mxu0 0
        %3047 = vmatpush1.bf16.msra.mxu0 0
        %3048 = vmatprep.subr.bf16.mxu0 0
        %3049 = vmatpush1.bf16.msra.mxu0 0
        %3050 = vmatprep.subr.bf16.mxu0 0
        %3051 = vmatpush1.bf16.msra.mxu0 0
        %3052 = vmatprep.subr.bf16.mxu0 0
        %3053 = vmatpush1.bf16.msra.mxu0 0
        %3054 = vmatprep.subr.bf16.mxu0 0
        %3055 = vmatpush1.bf16.msra.mxu0 0
        %3056 = vmatprep.subr.bf16.mxu0 0
        %3057 = vmatpush1.bf16.msra.mxu0 0
        %3058 = vmatprep.subr.bf16.mxu0 0
        %3059 = vmatpush1.bf16.msra.mxu0 0
        %3060 = vmatprep.subr.bf16.mxu0 0
        %3061 = vmatpush1.bf16.msra.mxu0 0
        %3062 = vmatprep.subr.bf16.mxu0 0
        %3063 = vmatpush1.bf16.msra.mxu0 0
        %3064 = vmatprep.subr.bf16.mxu0 0
        %3065 = vmatpush1.bf16.msra.mxu0 0
        %3066 = vmatprep.subr.bf16.mxu0 0
        %3067 = vmatpush1.bf16.msra.mxu0 0
        %3068 = vmatprep.subr.bf16.mxu0 0
        %3069 = vmatpush1.bf16.msra.mxu0 0
        %3070 = vmatprep.subr.bf16.mxu0 0
        %3071 = vmatpush1.bf16.msra.mxu0 0
        %3072 = vmatprep.mubr.bf16.mxu0 0
        %3073 = vmatmul.mubr.bf16.gmra.mrb[0].mxu0 %v3035
        %v3074 = vpop.f32.mrb[0].mxu0
        %v3075 = vadd.f32 0.0, %v3074
        %v3076 = vpop.f32.mrb[0].mxu0
        %v3077 = vpop.f32.mrb[0].mxu0
        %v3078 = vadd.f32 0.0, %v3077
        %v3079 = vpop.f32.mrb[0].mxu0
        %3080 = vdwg.mxu0
        %3081 = vrot.lane.b32.xlu0 %v2678, 64
        %v3082 = vpop.permute.xlu0 %3081
        %v3084 = vsel %vm2888, %v2980, 0
        %v3087 = vsel %vm2987, %v3082, 0
        %3089 = vmatprep.subr.bf16.mxu0 0
        %3090 = vmatpush1.bf16.msra.mxu0 %v3087
        %3091 = vmatprep.subr.bf16.mxu0 0
        %3092 = vmatpush1.bf16.msra.mxu0 0
        %3093 = vmatprep.subr.bf16.mxu0 0
        %3094 = vmatpush1.bf16.msra.mxu0 0
        %3095 = vmatprep.subr.bf16.mxu0 0
        %3096 = vmatpush1.bf16.msra.mxu0 0
        %3097 = vmatprep.subr.bf16.mxu0 0
        %3098 = vmatpush1.bf16.msra.mxu0 0
        %3099 = vmatprep.subr.bf16.mxu0 0
        %3100 = vmatpush1.bf16.msra.mxu0 0
        %3101 = vmatprep.subr.bf16.mxu0 0
        %3102 = vmatpush1.bf16.msra.mxu0 0
        %3103 = vmatprep.subr.bf16.mxu0 0
        %3104 = vmatpush1.bf16.msra.mxu0 0
        %3105 = vmatprep.subr.bf16.mxu0 0
        %3106 = vmatpush1.bf16.msra.mxu0 0
        %3107 = vmatprep.subr.bf16.mxu0 0
        %3108 = vmatpush1.bf16.msra.mxu0 0
        %3109 = vmatprep.subr.bf16.mxu0 0
        %3110 = vmatpush1.bf16.msra.mxu0 0
        %3111 = vmatprep.subr.bf16.mxu0 0
        %3112 = vmatpush1.bf16.msra.mxu0 0
        %3113 = vmatprep.subr.bf16.mxu0 0
        %3114 = vmatpush1.bf16.msra.mxu0 0
        %3115 = vmatprep.subr.bf16.mxu0 0
        %3116 = vmatpush1.bf16.msra.mxu0 0
        %3117 = vmatprep.subr.bf16.mxu0 0
        %3118 = vmatpush1.bf16.msra.mxu0 0
        %3119 = vmatprep.subr.bf16.mxu0 0
        %3120 = vmatpush1.bf16.msra.mxu0 0
        %3121 = vmatprep.mubr.bf16.mxu0 0
        %3122 = vmatmul.mubr.bf16.gmra.mrb[0].mxu0 %v3084
        %v3123 = vpop.f32.mrb[0].mxu0
        %v3124 = vadd.f32 0.0, %v3123
        %v3125 = vpop.f32.mrb[0].mxu0
        %v3126 = vpop.f32.mrb[0].mxu0
        %v3127 = vadd.f32 0.0, %v3126
        %v3128 = vpop.f32.mrb[0].mxu0
        %3129 = vdwg.mxu0
        %3130 = vrot.lane.b32.xlu0 %v2679, 64
        %v3131 = vpop.permute.xlu0 %3130
        %v3133 = vsel %vm2888, %v2981, 0
        %v3136 = vsel %vm2987, %v3131, 0
        %3138 = vmatprep.subr.bf16.mxu0 0
        %3139 = vmatpush1.bf16.msra.mxu0 %v3136
        %3140 = vmatprep.subr.bf16.mxu0 0
        %3141 = vmatpush1.bf16.msra.mxu0 0
        %3142 = vmatprep.subr.bf16.mxu0 0
        %3143 = vmatpush1.bf16.msra.mxu0 0
        %3144 = vmatprep.subr.bf16.mxu0 0
        %3145 = vmatpush1.bf16.msra.mxu0 0
        %3146 = vmatprep.subr.bf16.mxu0 0
        %3147 = vmatpush1.bf16.msra.mxu0 0
        %3148 = vmatprep.subr.bf16.mxu0 0
        %3149 = vmatpush1.bf16.msra.mxu0 0
        %3150 = vmatprep.subr.bf16.mxu0 0
        %3151 = vmatpush1.bf16.msra.mxu0 0
        %3152 = vmatprep.subr.bf16.mxu0 0
        %3153 = vmatpush1.bf16.msra.mxu0 0
        %3154 = vmatprep.subr.bf16.mxu0 0
        %3155 = vmatpush1.bf16.msra.mxu0 0
        %3156 = vmatprep.subr.bf16.mxu0 0
        %3157 = vmatpush1.bf16.msra.mxu0 0
        %3158 = vmatprep.subr.bf16.mxu0 0
        %3159 = vmatpush1.bf16.msra.mxu0 0
        %3160 = vmatprep.subr.bf16.mxu0 0
        %3161 = vmatpush1.bf16.msra.mxu0 0
        %3162 = vmatprep.subr.bf16.mxu0 0
        %3163 = vmatpush1.bf16.msra.mxu0 0
        %3164 = vmatprep.subr.bf16.mxu0 0
        %3165 = vmatpush1.bf16.msra.mxu0 0
        %3166 = vmatprep.subr.bf16.mxu0 0
        %3167 = vmatpush1.bf16.msra.mxu0 0
        %3168 = vmatprep.subr.bf16.mxu0 0
        %3169 = vmatpush1.bf16.msra.mxu0 0
        %3170 = vmatprep.mubr.bf16.mxu0 0
        %3171 = vmatmul.mubr.bf16.gmra.mrb[0].mxu0 %v3133
        %v3172 = vpop.f32.mrb[0].mxu0
        %v3173 = vadd.f32 0.0, %v3172
        %v3174 = vpop.f32.mrb[0].mxu0
        %v3175 = vpop.f32.mrb[0].mxu0
        %v3176 = vadd.f32 0.0, %v3175
        %v3177 = vpop.f32.mrb[0].mxu0
        %3178 = vdwg.mxu0
        %3181 = vrot.lane.b32.xlu0 %v3075, 8
        %v3182 = vpop.permute.xlu0 %3181
        %3183 = vrot.lane.b32.xlu0 %v3078, 8
        %v3184 = vpop.permute.xlu0 %3183
        %3189 = vrot.lane.b32.xlu0 %v3124, 16
        %v3190 = vpop.permute.xlu0 %3189
        %3191 = vrot.lane.b32.xlu0 %v3127, 16
        %v3192 = vpop.permute.xlu0 %3191
        %3197 = vrot.lane.b32.xlu0 %v3173, 24
        %v3198 = vpop.permute.xlu0 %3197
        %3199 = vrot.lane.b32.xlu0 %v3176, 24
        %v3200 = vpop.permute.xlu0 %3199
        %v3203 = vsel %vm936, %v3026, %v3182
        %v3204 = vsel %vm936, %v3029, %v3184
        %v3205 = vsel %vm1452, %v3203, %v3190
        %v3206 = vsel %vm1452, %v3204, %v3192
        %v3207 = vsel %vm1455, %v3205, %v3198
        %v3208 = vsel %vm1455, %v3206, %v3200
        %v3209 = vld [vmem:[%s14] sm:$0xf]
        %v3210 = vld [vmem:[%s14 + $0x4] sm:$0xf]
        %v3211 = vld [vmem:[%s14 + $0x8] sm:$0xf]
        %v3212 = vld [vmem:[%s14 + $0xc] sm:$0xf]
        %v3213 = vpack.c.bf16 %v3208, %v3207
        %v3214 = vld [vmem:[%s15] sm:$0x1]
        %v3216 = vlaneseq
        %v3217 = vshrl.u32 %v3216, 7
        %v3218 = vsub.s32 0, %v3217
        %v3219 = vrot.slane %v3214, %v3218
        %v3225 = vunpack.c.l.b16 %v3209
        %v3226 = vunpack.c.l.b16 %v3210
        %v3227 = vunpack.c.l.b16 %v3211
        %v3228 = vunpack.c.l.b16 %v3212
        %v3229 = vpack.c.b16 %v3226, %v3225
        %v3230 = vpack.c.b16 %v3228, %v3227
        %v3234 = vsel %vm800, %v3213, 0
        %3236 = vmatprep.subr.bf16.mxu0 0
        %3237 = vmatpush1.bf16.msra.mxu0 %v3229
        %3238 = vmatprep.subr.bf16.mxu0 0
        %3239 = vmatpush1.bf16.msra.mxu0 %v3230
        %3240 = vmatprep.subr.bf16.mxu0 0
        %3241 = vmatpush1.bf16.msra.mxu0 0
        %3242 = vmatprep.subr.bf16.mxu0 0
        %3243 = vmatpush1.bf16.msra.mxu0 0
        %3244 = vmatprep.subr.bf16.mxu0 0
        %3245 = vmatpush1.bf16.msra.mxu0 0
        %3246 = vmatprep.subr.bf16.mxu0 0
        %3247 = vmatpush1.bf16.msra.mxu0 0
        %3248 = vmatprep.subr.bf16.mxu0 0
        %3249 = vmatpush1.bf16.msra.mxu0 0
        %3250 = vmatprep.subr.bf16.mxu0 0
        %3251 = vmatpush1.bf16.msra.mxu0 0
        %3252 = vmatprep.subr.bf16.mxu0 0
        %3253 = vmatpush1.bf16.msra.mxu0 0
        %3254 = vmatprep.subr.bf16.mxu0 0
        %3255 = vmatpush1.bf16.msra.mxu0 0
        %3256 = vmatprep.subr.bf16.mxu0 0
        %3257 = vmatpush1.bf16.msra.mxu0 0
        %3258 = vmatprep.subr.bf16.mxu0 0
        %3259 = vmatpush1.bf16.msra.mxu0 0
        %3260 = vmatprep.subr.bf16.mxu0 0
        %3261 = vmatpush1.bf16.msra.mxu0 0
        %3262 = vmatprep.subr.bf16.mxu0 0
        %3263 = vmatpush1.bf16.msra.mxu0 0
        %3264 = vmatprep.subr.bf16.mxu0 0
        %3265 = vmatpush1.bf16.msra.mxu0 0
        %3266 = vmatprep.subr.bf16.mxu0 0
        %3267 = vmatpush1.bf16.msra.mxu0 0
        %3268 = vmatprep.mubr.bf16.mxu0 0
        %3269 = vmatmul.mubr.bf16.gmra.mrb[0].mxu0 %v3234
        %v3270 = vpop.f32.mrb[0].mxu0
        %v3271 = vadd.f32 %v3219, %v3270
        %v3272 = vpop.f32.mrb[0].mxu0
        %v3273 = vpop.f32.mrb[0].mxu0
        %v3274 = vadd.f32 %v3219, %v3273
        %v3275 = vpop.f32.mrb[0].mxu0
        %3276 = vdwg.mxu0
        %v3277 = vadd.f32 %v2586, %v3271
        %v3278 = vadd.f32 %v2587, %v3274
        %v3279 = vsel %vm800, %v3277, 0.0
        %3280 = vadd.xlane.f32.xlu0 %v3279
        %v3281 = vpop.xlane.xlu0 %3280
        %v3282 = vsel %vm2329, %v3278, 0.0
        %3283 = vadd.xlane.f32.xlu0 %v3282
        %v3284 = vpop.xlane.xlu0 %3283
        %v3285 = vmul.f32 %v3281, %v1534
        %v3286 = vmul.f32 %v3284, %v1534
        %v3287 = vsub.f32 %v3277, %v3285
        %v3288 = vsub.f32 %v3278, %v3286
        %v3289 = vmul.f32 %v3287, %v3287
        %v3290 = vmul.f32 %v3288, %v3288
        %v3291 = vsel %vm800, %v3289, 0.0
        %3292 = vadd.xlane.f32.xlu0 %v3291
        %v3293 = vpop.xlane.xlu0 %3292
        %v3294 = vsel %vm2329, %v3290, 0.0
        %3295 = vadd.xlane.f32.xlu0 %v3294
        %v3296 = vpop.xlane.xlu0 %3295
        %v3297 = vmul.f32 %v3293, %v1534
        %v3298 = vmul.f32 %v3296, %v1534
        %v3299 = vadd.f32 %v3297, 1e-05
        %v3300 = vadd.f32 %v3298, 1e-05
        %v3301 = vrsqrt.pop %v3299
        %v3302 = vrsqrt.pop %v3300
        %v3303 = vmul.f32 %v3287, %v3301
        %v3304 = vmul.f32 %v3288, %v3302
        %v3305 = vlaneseq
        %v3306 = vshrl.u32 %v3305, 7
        %v3307 = vsub.s32 6, %v3306
        %v3308 = vrot.slane %v766, %v3307
        %v3309 = vmul.f32 %v3303, %v3308
        %v3310 = vmul.f32 %v3304, %v3308
        %v3311 = vlaneseq
        %v3312 = vshrl.u32 %v3311, 7
        %v3313 = vsub.s32 7, %v3312
        %v3314 = vrot.slane %v766, %v3313
        %v3315 = vadd.f32 %v3309, %v3314
        %v3316 = vadd.f32 %v3310, %v3314
        %3317 = vst.msk [vmem:[%s759] sm:$0xff] %vm800, %v3315
        %3318 = vst.msk [vmem:[%s759 + $0x8] sm:$0x3f] %vm2329, %v3316
        %v3319 = vsel %vm1452, %v2322, 0.0
        %v3320 = vsel %vm1452, %v2323, 0.0
        %3321 = vst [vmem:[%s764] sm:$0xff] %v3319
        %3322 = vst [vmem:[%s764 + $0x8] sm:$0x3f] %v3320
        %p3323 = scmp.lt.s32.totalorder %s43, 1
        %s3324 = scalar_select %p3323, %s43, 1
        %s3325 = smul.addr %s3324, 2
        %s3326 = smul.addr %s3325, 8
        %s3327 = scalar_lea.vmem %s21, %s3326
        %p3328 = scmp.lt.s32.totalorder %s43, 1
        %s3329 = scalar_select %p3328, %s43, 1
        %s3330 = smul.addr %s3329, 2
        %s3331 = smul.addr %s3330, 8
        %s3332 = scalar_lea.vmem %s22, %s3331
        // Predicated region
        $region117: #{tpu_custom_call.1} parent=99 // pred_check
          %p3333 = pneg %p496
        $region118: #{tpu_custom_call.1} parent=99 // pred_check_branch
          %3335 = sbr.rel (%p3333) target = $region120
        $region119: #{tpu_custom_call.1} parent=99 // pred_region
          _
        $region120: #{tpu_custom_call.1} parent=99 // pred_fallthru
          _
        // Predicated region
        $region121: #{tpu_custom_call.1} parent=99 // pred_check
          %p3336 = pneg %p522
        $region122: #{tpu_custom_call.1} parent=99 // pred_check_branch
          %3338 = sbr.rel (%p3336) target = $region124
        $region123: #{tpu_custom_call.1} parent=99 // pred_region
          _
        $region124: #{tpu_custom_call.1} parent=99 // pred_fallthru
          _
      $region100: #{tpu_custom_call.1} parent=5 // pred_fallthru
        _
      %p3339 = scmp.le.s32.totalorder 2, %s38
      // Predicated region
      $region125: #{tpu_custom_call.1} parent=5 // pred_check
        %p3340 = pneg %p3339
      $region126: #{tpu_custom_call.1} parent=5 // pred_check_branch
        %3342 = sbr.rel (%p3340) target = $region128
      $region127: #{tpu_custom_call.1} parent=5 // pred_region
        %s3343 = ssub.s32 %s38, 2
        // Predicated region
        $region129: #{tpu_custom_call.1} parent=127 // pred_check
          %p3344 = pneg %p502
        $region130: #{tpu_custom_call.1} parent=127 // pred_check_branch
          %3346 = sbr.rel (%p3344) target = $region132
        $region131: #{tpu_custom_call.1} parent=127 // pred_region
          %p3347 = scmp.lt.s32.totalorder %s44, 1
          %s3348 = scalar_select %p3347, %s44, 1
          %s3349 = smul.addr %s3348, 2
          %s3350 = smul.addr %s3349, 8
          %s3351 = scalar_lea.vmem %s21, %s3350
        $region132: #{tpu_custom_call.1} parent=127 // pred_fallthru
          _
        // Predicated region
        $region133: #{tpu_custom_call.1} parent=127 // pred_check
          %p3352 = pneg %p528
        $region134: #{tpu_custom_call.1} parent=127 // pred_check_branch
          %3354 = sbr.rel (%p3352) target = $region136
        $region135: #{tpu_custom_call.1} parent=127 // pred_region
          %p3355 = scmp.lt.s32.totalorder %s44, 1
          %s3356 = scalar_select %p3355, %s44, 1
          %s3357 = smul.addr %s3356, 2
          %s3358 = smul.addr %s3357, 8
          %s3359 = scalar_lea.vmem %s22, %s3358
        $region136: #{tpu_custom_call.1} parent=127 // pred_fallthru
          _
      $region128: #{tpu_custom_call.1} parent=5 // pred_fallthru
        _
    $region6: #{tpu_custom_call.1} parent=1 // loop_footer
      %s42 = sadd.s32 1, %s38
    $region7: #{tpu_custom_call.1} parent=1 // loop_footer_branch
      %37 = sbr.rel target = $region3
    $region8: #{tpu_custom_call.1} parent=1 // loop_exit
      _
    %3360 = vsyncpa [#allocation5], 1
    %s3361 = scalar_lea.sflag [#allocation5], 1
    %3362 = vsyncpa %s3361, 1
    %3363 = vsyncpa [#allocation7], 1
    %3364 = vsyncpa [#allocation10], 1

</llo_original>
